<compile_context>
chip_gen: v7x
topology: tpu7x:2x2x1
jax: 0.10.0
libtpu: 0.0.40
codegen_flags: <defaults>
</compile_context>

<pallas_src>
import functools
import numpy as np

import jax
import jax.numpy as jnp
from jax.experimental import pallas as pl
from jax.experimental.pallas import tpu as pltpu

# dtype fed to the MXU (accumulation is always f32 via preferred_element_type)
_MM_DTYPE = jnp.bfloat16

# Exact (erf) GELU matches PyTorch nn.GELU(); set True for the EUP-friendly
# tanh approximation (changes numerics vs. the PyTorch reference).
_APPROX_GELU = False


def _tpu_vmem_capacity():
    try:
        info = pltpu.get_tpu_info()
        cap = getattr(info, "vmem_capacity_bytes", None)
        if cap:
            return int(cap)
    except Exception:
        pass
    return 128 * 1024 * 1024


_VMEM_CAP = _tpu_vmem_capacity()
if _VMEM_CAP <= 96 * 1024 * 1024:          # v7x-class core (64 MiB VMEM)
    _VMEM_LIMIT = min(56 * 1024 * 1024, max(_VMEM_CAP - 8 * 1024 * 1024,
                                            32 * 1024 * 1024))
    _ROW_TARGET = 256
else:                                       # v5e / v6e (128 MiB VMEM)
    _VMEM_LIMIT = 100 * 1024 * 1024
    _ROW_TARGET = 1024


def _cparams(*sem):
    return pltpu.CompilerParams(dimension_semantics=tuple(sem),
                                vmem_limit_bytes=_VMEM_LIMIT)


def _round_up(x, m):
    return ((x + m - 1) // m) * m


def _row_tile(m, target):
    """Largest row tile (multiple of 8) that divides m and is <= target."""
    if m <= target:
        return m
    t = (target // 8) * 8
    while t >= 8:
        if m % t == 0:
            return t
        t -= 8
    return m


def _gelu(x):
    if _APPROX_GELU:
        return jax.nn.gelu(x, approximate=True)
    return 0.5 * x * (1.0 + jax.lax.erf(x * (1.0 / np.sqrt(2.0))))


# ----------------------------- Pallas kernels ------------------------------

def _linear_kernel(x_ref, w_ref, b_ref, o_ref, *, activation):
    y = jnp.dot(x_ref[...].astype(_MM_DTYPE), w_ref[...],
                preferred_element_type=jnp.float32)
    y = y + b_ref[...]
    if activation == "gelu":
        y = _gelu(y)
    elif activation == "relu":
        y = jnp.maximum(y, 0.0)
    o_ref[...] = y.astype(o_ref.dtype)


def _ln_qkv_kernel(x_ref, g_ref, beta_ref, w_ref, q_ref, k_ref, v_ref,
                   *, eps, heads, dm):
    # fused LayerNorm (f32 stats) + QKV matmul (bf16 MXU, f32 acc).
    # Emits per-head-contiguous Q/K/V: [1, heads, tm, dm] each (bf16).
    x = x_ref[0]                                    # [tm, D] f32
    mean = jnp.mean(x, axis=-1, keepdims=True)
    var = jnp.mean((x - mean) ** 2, axis=-1, keepdims=True)
    xn = (x - mean) * jax.lax.rsqrt(var + eps) * g_ref[...] + beta_ref[...]
    qkv = jnp.dot(xn.astype(_MM_DTYPE), w_ref[...],
                  preferred_element_type=jnp.float32)   # [tm, 3*inner]
    inner = heads * dm
    for h in range(heads):                              # static unroll
        q_ref[0, h] = qkv[:, h * dm:(h + 1) * dm].astype(q_ref.dtype)
        k_ref[0, h] = qkv[:, inner + h * dm:
                          inner + (h + 1) * dm].astype(k_ref.dtype)
        v_ref[0, h] = qkv[:, 2 * inner + h * dm:
                          2 * inner + (h + 1) * dm].astype(v_ref.dtype)


def _attn_kernel(q_ref, k_ref, v_ref, x_ref, wout_ref, bout_ref, o_ref,
                 cat_ref, *, heads):
    # q-tiled attention: all heads of one q-tile against the full K/V.
    # Softmax scale is already folded into the Q columns of Wqkv.
    q = q_ref[0]                         # [heads, tq, dm]  bf16
    k = k_ref[0]                         # [heads, N,  dm]  bf16
    v = v_ref[0]                         # [heads, N,  dm]  bf16
    s = jnp.einsum('hqd,hkd->hqk', q, k,
                   preferred_element_type=jnp.float32)        # [heads, tq, N]
    m = jnp.max(s, axis=-1, keepdims=True)
    e = jnp.exp(s - m)
    p = e * pl.reciprocal(jnp.sum(e, axis=-1, keepdims=True), approx=True)
    ctx = jnp.einsum('hqk,hkd->hqd', p.astype(_MM_DTYPE), v,
                     preferred_element_type=jnp.float32)      # [heads, tq, dm]
    dm = ctx.shape[-1]
    for h in range(heads):               # gather heads into contiguous buffer
        cat_ref[:, h * dm:(h + 1) * dm] = ctx[h].astype(_MM_DTYPE)
    # ONE out-projection matmul with K = heads*dm (fills the MXU depth)
    y = jnp.dot(cat_ref[...], wout_ref[...],
                preferred_element_type=jnp.float32) + bout_ref[...]
    o_ref[0] = (y + x_ref[0]).astype(o_ref.dtype)


def _ffn_block_kernel(x_ref, g_ref, beta_ref, w1_ref, b1_ref, w2_ref, b2_ref,
                      o_ref, *, eps):
    # fused LayerNorm + Linear + GELU + Linear + residual (row tile)
    x = x_ref[...]
    mean = jnp.mean(x, axis=-1, keepdims=True)
    var = jnp.mean((x - mean) ** 2, axis=-1, keepdims=True)
    xn = (x - mean) * jax.lax.rsqrt(var + eps) * g_ref[...] + beta_ref[...]
    h = jnp.dot(xn.astype(_MM_DTYPE), w1_ref[...],
                preferred_element_type=jnp.float32) + b1_ref[...]
    h = _gelu(h)
    y = jnp.dot(h.astype(_MM_DTYPE), w2_ref[...],
                preferred_element_type=jnp.float32) + b2_ref[...]
    o_ref[...] = (y + x).astype(o_ref.dtype)


def _conv1_stats_kernel(x_ref, w_ref, b_ref, h_ref, sum_ref, ssq_ref):
    # decoder pass 1: 1x1 conv (matmul) + per-tile partial sum/sumsq outputs
    # (grid stays "parallel"; partials are reduced in pass 2).
    h = jnp.dot(x_ref[...].astype(_MM_DTYPE), w_ref[...],
                preferred_element_type=jnp.float32) + b_ref[...]
    h_ref[...] = h.astype(h_ref.dtype)                 # bf16 HBM round trip
    sum_ref[0] = jnp.sum(h, axis=0, keepdims=True)
    ssq_ref[0] = jnp.sum(h * h, axis=0, keepdims=True)


def _bn_relu_conv2_kernel(h_ref, sum_ref, ssq_ref, g_ref, beta_ref,
                          w2_ref, b2_ref, o_ref, *, eps, inv_count):
    # pass 2: reduce partials -> BatchNorm (batch stats, biased var) + ReLU
    # + 1x1 conv (lane-padded class dim).
    s = jnp.sum(sum_ref[...], axis=0)                  # [1, C1]
    ss = jnp.sum(ssq_ref[...], axis=0)                 # [1, C1]
    mean = s * inv_count
    var = jnp.maximum(ss * inv_count - mean * mean, 0.0)
    h = h_ref[...].astype(jnp.float32)
    hn = (h - mean) * jax.lax.rsqrt(var + eps) * g_ref[...] + beta_ref[...]
    hn = jnp.maximum(hn, 0.0)
    y = jnp.dot(hn.astype(_MM_DTYPE), w2_ref[...],
                preferred_element_type=jnp.float32) + b2_ref[...]
    o_ref[...] = y.astype(o_ref.dtype)


def _upsample_w_kernel(x_ref, uw_ref, t_ref):
    # width pass, channels-last:  t[r, j, c] = sum_s uw[j, s] x[r, s, c]
    x = x_ref[0].astype(_MM_DTYPE)                     # [rn, cn, C]
    rn, cn, _ = x.shape
    W = uw_ref.shape[0]
    uw_b = jnp.broadcast_to(uw_ref[...][None], (rn, W, cn))
    t = jnp.einsum('rws,rsc->rwc', uw_b, x,
                   preferred_element_type=jnp.float32)       # [rn, W, C]
    t_ref[0] = t.astype(t_ref.dtype)


def _upsample_h_kernel(t_ref, uh_ref, o_ref):
    # height pass: one lane-dense 2-D matmul  [th, rn] @ [rn, W*C]
    o_ref[0] = jnp.dot(uh_ref[...], t_ref[0],
                       preferred_element_type=jnp.float32)


# ------------------------------ wrappers ------------------------------------

def linear(x2, w, b=None, activation=None):
    M, K = x2.shape
    N = w.shape[1]
    tm = _row_tile(M, _ROW_TARGET)
    b2 = jnp.zeros((1, N), jnp.float32) if b is None else b.reshape(1, N)
    return pl.pallas_call(
        functools.partial(_linear_kernel, activation=activation),
        grid=(M // tm,),
        in_specs=[pl.BlockSpec((tm, K), lambda i: (i, 0)),
                  pl.BlockSpec((K, N), lambda i: (0, 0)),
                  pl.BlockSpec((1, N), lambda i: (0, 0))],
        out_specs=pl.BlockSpec((tm, N), lambda i: (i, 0)),
        out_shape=jax.ShapeDtypeStruct((M, N), jnp.float32),
        compiler_params=_cparams("parallel"),
    )(x2, w.astype(_MM_DTYPE), b2)


def ln_qkv(x3, g, beta, wqkv, *, heads, dm, eps=1e-5):
    B, Np, D = x3.shape
    inner = heads * dm
    tm = _row_tile(Np, _ROW_TARGET)
    out_shape = [jax.ShapeDtypeStruct((B, heads, Np, dm), _MM_DTYPE)] * 3
    out_specs = [pl.BlockSpec((1, heads, tm, dm), lambda b, i: (b, 0, i, 0))] * 3
    return pl.pallas_call(
        functools.partial(_ln_qkv_kernel, eps=eps, heads=heads, dm=dm),
        grid=(B, Np // tm),
        in_specs=[pl.BlockSpec((1, tm, D), lambda b, i: (b, i, 0)),
                  pl.BlockSpec((1, D), lambda b, i: (0, 0)),
                  pl.BlockSpec((1, D), lambda b, i: (0, 0)),
                  pl.BlockSpec((D, 3 * inner), lambda b, i: (0, 0))],
        out_specs=out_specs,
        out_shape=out_shape,
        compiler_params=_cparams("parallel", "parallel"),
    )(x3, g.reshape(1, D), beta.reshape(1, D), wqkv.astype(_MM_DTYPE))


def attention_block(q, k, v, x3, wout, bout, *, heads):
    B, _, Np, dm = q.shape
    D = x3.shape[-1]
    inner = heads * dm
    tq = _row_tile(Np, min(_ROW_TARGET, 256))
    return pl.pallas_call(
        functools.partial(_attn_kernel, heads=heads),
        grid=(B, Np // tq),
        in_specs=[pl.BlockSpec((1, heads, tq, dm), lambda b, i: (b, 0, i, 0)),
                  pl.BlockSpec((1, heads, Np, dm), lambda b, i: (b, 0, 0, 0)),
                  pl.BlockSpec((1, heads, Np, dm), lambda b, i: (b, 0, 0, 0)),
                  pl.BlockSpec((1, tq, D), lambda b, i: (b, i, 0)),
                  pl.BlockSpec((inner, D), lambda b, i: (0, 0)),
                  pl.BlockSpec((1, D), lambda b, i: (0, 0))],
        out_specs=pl.BlockSpec((1, tq, D), lambda b, i: (b, i, 0)),
        out_shape=jax.ShapeDtypeStruct((B, Np, D), jnp.float32),
        scratch_shapes=[pltpu.VMEM((tq, inner), _MM_DTYPE)],
        compiler_params=_cparams("parallel", "parallel"),
    )(q, k, v, x3, wout.astype(_MM_DTYPE), bout.reshape(1, D))


def ffn_block(x2, g, beta, w1, b1, w2, b2, eps=1e-5):
    M, D = x2.shape
    Hd = w1.shape[1]
    tm = _row_tile(M, _ROW_TARGET)
    return pl.pallas_call(
        functools.partial(_ffn_block_kernel, eps=eps),
        grid=(M // tm,),
        in_specs=[pl.BlockSpec((tm, D), lambda i: (i, 0)),
                  pl.BlockSpec((1, D), lambda i: (0, 0)),
                  pl.BlockSpec((1, D), lambda i: (0, 0)),
                  pl.BlockSpec((D, Hd), lambda i: (0, 0)),
                  pl.BlockSpec((1, Hd), lambda i: (0, 0)),
                  pl.BlockSpec((Hd, D), lambda i: (0, 0)),
                  pl.BlockSpec((1, D), lambda i: (0, 0))],
        out_specs=pl.BlockSpec((tm, D), lambda i: (i, 0)),
        out_shape=jax.ShapeDtypeStruct((M, D), jnp.float32),
        compiler_params=_cparams("parallel"),
    )(x2, g.reshape(1, D), beta.reshape(1, D),
      w1.astype(_MM_DTYPE), b1.reshape(1, Hd),
      w2.astype(_MM_DTYPE), b2.reshape(1, D))


def conv1_with_bn_stats(x2, w1, b1):
    M, K = x2.shape
    C1 = w1.shape[1]
    tm = _row_tile(M, _ROW_TARGET)
    T = M // tm
    return pl.pallas_call(
        _conv1_stats_kernel,
        grid=(T,),
        in_specs=[pl.BlockSpec((tm, K), lambda i: (i, 0)),
                  pl.BlockSpec((K, C1), lambda i: (0, 0)),
                  pl.BlockSpec((1, C1), lambda i: (0, 0))],
        out_specs=[pl.BlockSpec((tm, C1), lambda i: (i, 0)),
                   pl.BlockSpec((1, 1, C1), lambda i: (i, 0, 0)),
                   pl.BlockSpec((1, 1, C1), lambda i: (i, 0, 0))],
        out_shape=[jax.ShapeDtypeStruct((M, C1), _MM_DTYPE),
                   jax.ShapeDtypeStruct((T, 1, C1), jnp.float32),
                   jax.ShapeDtypeStruct((T, 1, C1), jnp.float32)],
        compiler_params=_cparams("parallel"),
    )(x2, w1.astype(_MM_DTYPE), b1.reshape(1, C1))


def bn_relu_conv2(h, psum, pssq, g, beta, w2, b2, count, nc_pad):
    M, C1 = h.shape
    nc = w2.shape[1]
    w2p = jnp.pad(w2, ((0, 0), (0, nc_pad - nc))).astype(_MM_DTYPE)
    b2p = jnp.pad(b2.reshape(1, nc), ((0, 0), (0, nc_pad - nc)))
    T = psum.shape[0]
    tm = _row_tile(M, _ROW_TARGET)
    return pl.pallas_call(
        functools.partial(_bn_relu_conv2_kernel, eps=1e-5,
                          inv_count=1.0 / float(count)),
        grid=(M // tm,),
        in_specs=[pl.BlockSpec((tm, C1), lambda i: (i, 0)),
                  pl.BlockSpec((T, 1, C1), lambda i: (0, 0, 0)),
                  pl.BlockSpec((T, 1, C1), lambda i: (0, 0, 0)),
                  pl.BlockSpec((1, C1), lambda i: (0, 0)),
                  pl.BlockSpec((1, C1), lambda i: (0, 0)),
                  pl.BlockSpec((C1, nc_pad), lambda i: (0, 0)),
                  pl.BlockSpec((1, nc_pad), lambda i: (0, 0))],
        out_specs=pl.BlockSpec((tm, nc_pad), lambda i: (i, 0)),
        out_shape=jax.ShapeDtypeStruct((M, nc_pad), jnp.float32),
        compiler_params=_cparams("parallel"),
    )(h, psum, pssq, g.reshape(1, C1), beta.reshape(1, C1), w2p, b2p)


def upsample(feat_cl, uh, uw, nc_keep):
    """Bilinear upsample (align_corners=False), channels-last with the padded
    class dim in the lane dimension; final NCHW transpose + class slice in XLA."""
    B, rn, cn, C = feat_cl.shape
    H, W = uh.shape[0], uw.shape[0]
    # width pass
    t = pl.pallas_call(
        _upsample_w_kernel,
        grid=(B,),
        in_specs=[pl.BlockSpec((1, rn, cn, C), lambda b: (b, 0, 0, 0)),
                  pl.BlockSpec((W, cn), lambda b: (0, 0))],
        out_specs=pl.BlockSpec((1, rn, W, C), lambda b: (b, 0, 0, 0)),
        out_shape=jax.ShapeDtypeStruct((B, rn, W, C), _MM_DTYPE),
        compiler_params=_cparams("parallel"),
    )(feat_cl, uw.astype(_MM_DTYPE))
    t2 = t.reshape(B, rn, W * C)
    # height pass (row-tiled over the output height)
    th = _row_tile(H, 128)
    out = pl.pallas_call(
        _upsample_h_kernel,
        grid=(B, H // th),
        in_specs=[pl.BlockSpec((1, rn, W * C), lambda b, i: (b, 0, 0)),
                  pl.BlockSpec((th, rn), lambda b, i: (i, 0))],
        out_specs=pl.BlockSpec((1, th, W * C), lambda b, i: (b, i, 0)),
        out_shape=jax.ShapeDtypeStruct((B, H, W * C), jnp.float32),
        compiler_params=_cparams("parallel", "parallel"),
    )(t2, uh.astype(_MM_DTYPE))
    out = out.reshape(B, H, W, C)[:, :, :, :nc_keep]
    return out.transpose(0, 3, 1, 2)                      # NCHW


def bilinear_matrix(out_size, in_size):
    """Interpolation matrix for torch.nn.Upsample(mode='bilinear',
    align_corners=False) along one axis:  y = M @ x  with M [out, in]."""
    m = np.zeros((out_size, in_size), np.float32)
    scale = in_size / out_size
    for i in range(out_size):
        src = (i + 0.5) * scale - 0.5
        src = max(src, 0.0)
        lo = int(np.floor(src))
        lo = min(lo, in_size - 1)
        hi = min(lo + 1, in_size - 1)
        frac = src - lo
        m[i, lo] += 1.0 - frac
        m[i, hi] += frac
    return jnp.asarray(m)


# ------------------------------ SETR forward --------------------------------

def setr_forward(img, p, cfg):
    B, C, H, W = img.shape
    ph = pw = cfg["patch_size"]
    rn, cn = H // ph, W // pw
    Np = rn * cn
    heads, dm = cfg["heads"], cfg["d_model"]
    emb, nc = cfg["emb_dim"], cfg["num_classes"]
    inner = heads * dm
    nc_pad = _round_up(nc, 128)

    # patch embedding: 'b c (rn p1) (cn p2) -> b (rn cn) (p1 p2 c)' + Linear
    xp = (img.reshape(B, C, rn, ph, cn, pw)
             .transpose(0, 2, 4, 3, 5, 1)
             .reshape(B * Np, ph * pw * C))
    x = linear(xp, p["patch_w"], p["patch_b"]).reshape(B, Np, emb)
    x = x + p["pos_emb"]                        # pos embedding (dropout p=0)

    # fold the softmax scale into the Q columns of Wqkv (free at runtime)
    scale = dm ** (-0.5)
    qscale = jnp.concatenate(
        [jnp.full((inner,), scale, jnp.float32),
         jnp.ones((2 * inner,), jnp.float32)])[None, :]

    for lp in p["layers"]:
        wqkv_s = lp["wqkv"] * qscale
        # PreNorm(Attention) + residual : LN+QKV (per-head layout) then
        # q-tiled attention with a single fused out-projection.
        q, k, v = ln_qkv(x, lp["ln1_g"], lp["ln1_b"], wqkv_s,
                         heads=heads, dm=dm)
        x = attention_block(q, k, v, x, lp["wout"], lp["bout"], heads=heads)
        # PreNorm(FeedForward) + residual : 1 fused pallas_call
        x = ffn_block(x.reshape(B * Np, emb), lp["ln2_g"], lp["ln2_b"],
                      lp["wff1"], lp["bff1"], lp["wff2"], lp["bff2"]
                      ).reshape(B, Np, emb)

    # decoder: conv1x1 + BN(batch stats) + ReLU + conv1x1, channels-last.
    xt = x.reshape(B * Np, emb)
    h1, psum, pssq = conv1_with_bn_stats(xt, p["wc1"], p["bc1"])
    feat2d = bn_relu_conv2(h1, psum, pssq, p["bn_g"], p["bn_b"],
                           p["wc2"], p["bc2"], count=B * Np, nc_pad=nc_pad)
    feat_cl = feat2d.reshape(B, rn, cn, nc_pad)           # lane-dense, padded

    # bilinear upsample (align_corners=False) to image size, as matmuls
    uh = bilinear_matrix(H, rn)
    uw = bilinear_matrix(W, cn)
    return upsample(feat_cl, uh, uw, nc)                  # [B, nc, H, W]


# ------------------------------ param init ----------------------------------

def make_params(cfg, key):
    keys = iter(jax.random.split(key, 128))

    def rnd(shape, s=0.02):
        return s * jax.random.normal(next(keys), shape, jnp.float32)

    emb, heads, dm = cfg["emb_dim"], cfg["heads"], cfg["d_model"]
    inner = heads * dm
    mlp, nc = cfg["mlp_dim"], cfg["num_classes"]
    patch_dim = cfg["channels"] * cfg["patch_size"] ** 2
    Np = (cfg["image_size"] // cfg["patch_size"]) ** 2

    layers = []
    for _ in range(cfg["depth"]):
        layers.append(dict(
            ln1_g=jnp.ones((emb,), jnp.float32), ln1_b=jnp.zeros((emb,), jnp.float32),
            wqkv=rnd((emb, 3 * inner)),
            wout=rnd((inner, emb)), bout=rnd((emb,)),
            ln2_g=jnp.ones((emb,), jnp.float32), ln2_b=jnp.zeros((emb,), jnp.float32),
            wff1=rnd((emb, mlp)), bff1=rnd((mlp,)),
            wff2=rnd((mlp, emb)), bff2=rnd((emb,)),
        ))

    return dict(
        patch_w=rnd((patch_dim, emb)), patch_b=rnd((emb,)),
        pos_emb=rnd((1, Np, emb)),
        layers=layers,
        wc1=rnd((mlp, 256)), bc1=rnd((256,)),
        bn_g=jnp.ones((256,), jnp.float32), bn_b=jnp.zeros((256,), jnp.float32),
        wc2=rnd((256, nc)), bc2=rnd((nc,)),
    )


# --------------------------------- main --------------------------------------

if __name__ == "__main__":
    cfg = dict(
        image_size=16, patch_size=4, num_classes=4,
        emb_dim=32, depth=2, heads=2, mlp_dim=32,
        d_model=16, channels=3,
    )
    # The PyTorch module applies Conv2d(mlp_dim, 256) to emb_dim-wide features,
    # so it only works when mlp_dim == emb_dim (same constraint kept here).
    assert cfg["mlp_dim"] == cfg["emb_dim"]

    key = jax.random.PRNGKey(0)
    k_img, k_par = jax.random.split(key)
    img = jax.random.normal(k_img, (2, cfg["channels"],
                                    cfg["image_size"], cfg["image_size"]),
                            jnp.float32)
    params = make_params(cfg, k_par)

    fwd = jax.jit(functools.partial(setr_forward, cfg=cfg))
    out = jax.block_until_ready(fwd(img, params))

    assert out.shape == (2, cfg["num_classes"], cfg["image_size"], cfg["image_size"])
    assert out.dtype == jnp.float32
    assert bool(jnp.all(jnp.isfinite(out)))
    print("KERNEL_OK")
</pallas_src>

<mosaic_0001>
module attributes {stable_mosaic.version = 11 : i64} {
  func.func @_ln_qkv_kernel(%arg0: i32, %arg1: i32, %arg2: memref<1x16x32xf32, #tpu.memory_space<vmem>>, %arg3: memref<1x32xf32, #tpu.memory_space<vmem>>, %arg4: memref<1x32xf32, #tpu.memory_space<vmem>>, %arg5: memref<32x96xbf16, #tpu.memory_space<vmem>>, %arg6: memref<1x2x16x16xbf16, #tpu.memory_space<vmem>>, %arg7: memref<1x2x16x16xbf16, #tpu.memory_space<vmem>>, %arg8: memref<1x2x16x16xbf16, #tpu.memory_space<vmem>>) attributes {dimension_semantics = [#tpu.dimension_semantics<parallel>, #tpu.dimension_semantics<parallel>], iteration_bounds = array<i64: 2, 1>, scalar_prefetch = 0 : i64, scratch_operands = 0 : i64, tpu.core_type = #tpu.core_type<tc>, window_params = [{transform_indices = @transform_0, window_bounds = array<i64: 1, 16, 32>}, {pipeline_mode = #tpu.pipeline_mode<synchronous>, transform_indices = @transform_1, window_bounds = array<i64: 1, 32>}, {pipeline_mode = #tpu.pipeline_mode<synchronous>, transform_indices = @transform_2, window_bounds = array<i64: 1, 32>}, {pipeline_mode = #tpu.pipeline_mode<synchronous>, transform_indices = @transform_3, window_bounds = array<i64: 32, 96>}, {transform_indices = @transform_4, window_bounds = array<i64: 1, 2, 16, 16>}, {transform_indices = @transform_5, window_bounds = array<i64: 1, 2, 16, 16>}, {transform_indices = @transform_6, window_bounds = array<i64: 1, 2, 16, 16>}]} {
    %c0 = arith.constant 0 : index
    %c0_0 = arith.constant 0 : index
    %c0_1 = arith.constant 0 : index
    %0 = vector.load %arg2[%c0, %c0_0, %c0_1] : memref<1x16x32xf32, #tpu.memory_space<vmem>>, vector<1x16x32xf32>
    %1 = vector.shape_cast %0 : vector<1x16x32xf32> to vector<16x32xf32>
    %cst = arith.constant dense<0.000000e+00> : vector<16xf32>
    %2 = vector.multi_reduction <add>, %1, %cst [1] : vector<16x32xf32> to vector<16xf32>
    %3 = vector.shape_cast %2 : vector<16xf32> to vector<16x1xf32>
    %cst_2 = arith.constant 3.200000e+01 : f32
    %4 = vector.broadcast %cst_2 : f32 to vector<16x1xf32>
    %5 = arith.divf %3, %4 : vector<16x1xf32>
    %6 = vector.broadcast %5 : vector<16x1xf32> to vector<16x32xf32>
    %7 = arith.subf %1, %6 : vector<16x32xf32>
    %8 = arith.mulf %7, %7 : vector<16x32xf32>
    %cst_3 = arith.constant dense<0.000000e+00> : vector<16xf32>
    %9 = vector.multi_reduction <add>, %8, %cst_3 [1] : vector<16x32xf32> to vector<16xf32>
    %10 = vector.shape_cast %9 : vector<16xf32> to vector<16x1xf32>
    %cst_4 = arith.constant 3.200000e+01 : f32
    %11 = vector.broadcast %cst_4 : f32 to vector<16x1xf32>
    %12 = arith.divf %10, %11 : vector<16x1xf32>
    %13 = vector.broadcast %5 : vector<16x1xf32> to vector<16x32xf32>
    %14 = arith.subf %1, %13 : vector<16x32xf32>
    %cst_5 = arith.constant 9.99999974E-6 : f32
    %15 = vector.broadcast %cst_5 : f32 to vector<16x1xf32>
    %16 = arith.addf %12, %15 : vector<16x1xf32>
    %17 = math.rsqrt %16 : vector<16x1xf32>
    %18 = vector.broadcast %17 : vector<16x1xf32> to vector<16x32xf32>
    %19 = arith.mulf %14, %18 : vector<16x32xf32>
    %c0_6 = arith.constant 0 : index
    %c0_7 = arith.constant 0 : index
    %20 = vector.load %arg3[%c0_6, %c0_7] : memref<1x32xf32, #tpu.memory_space<vmem>>, vector<1x32xf32>
    %21 = vector.broadcast %20 : vector<1x32xf32> to vector<16x32xf32>
    %22 = arith.mulf %19, %21 : vector<16x32xf32>
    %c0_8 = arith.constant 0 : index
    %c0_9 = arith.constant 0 : index
    %23 = vector.load %arg4[%c0_8, %c0_9] : memref<1x32xf32, #tpu.memory_space<vmem>>, vector<1x32xf32>
    %24 = vector.broadcast %23 : vector<1x32xf32> to vector<16x32xf32>
    %25 = arith.addf %22, %24 : vector<16x32xf32>
    %26 = arith.truncf %25 : vector<16x32xf32> to vector<16x32xbf16>
    %c0_10 = arith.constant 0 : index
    %c0_11 = arith.constant 0 : index
    %27 = vector.load %arg5[%c0_10, %c0_11] : memref<32x96xbf16, #tpu.memory_space<vmem>>, vector<32x96xbf16>
    %cst_12 = arith.constant dense<0.000000e+00> : vector<16x96xf32>
    %28 = tpu.matmul %26, %27, %cst_12 {dimension_numbers = #tpu.dot_dimension_numbers<[1], [0], [0], [1], [0, 0, 1, 1], [], []>} : vector<16x32xbf16>, vector<32x96xbf16>, vector<16x96xf32> -> vector<16x96xf32>
    %29 = vector.extract_strided_slice %28 {offsets = [0, 0], sizes = [16, 16], strides = [1, 1]} : vector<16x96xf32> to vector<16x16xf32>
    %30 = arith.truncf %29 : vector<16x16xf32> to vector<16x16xbf16>
    %c0_13 = arith.constant 0 : index
    %c0_14 = arith.constant 0 : index
    %c0_15 = arith.constant 0 : index
    %c0_16 = arith.constant 0 : index
    %31 = vector.load %arg6[%c0_13, %c0_14, %c0_15, %c0_16] : memref<1x2x16x16xbf16, #tpu.memory_space<vmem>>, vector<1x1x16x16xbf16>
    %32 = vector.shape_cast %31 : vector<1x1x16x16xbf16> to vector<16x16xbf16>
    %33 = vector.shape_cast %30 : vector<16x16xbf16> to vector<1x1x16x16xbf16>
    tpu.vector_store %arg6[%c0_13, %c0_14, %c0_15, %c0_16], %33 {strides = array<i32>} : memref<1x2x16x16xbf16, #tpu.memory_space<vmem>>, vector<1x1x16x16xbf16>,
    %34 = vector.extract_strided_slice %28 {offsets = [0, 32], sizes = [16, 16], strides = [1, 1]} : vector<16x96xf32> to vector<16x16xf32>
    %35 = arith.truncf %34 : vector<16x16xf32> to vector<16x16xbf16>
    %c0_17 = arith.constant 0 : index
    %c0_18 = arith.constant 0 : index
    %c0_19 = arith.constant 0 : index
    %c0_20 = arith.constant 0 : index
    %36 = vector.load %arg7[%c0_17, %c0_18, %c0_19, %c0_20] : memref<1x2x16x16xbf16, #tpu.memory_space<vmem>>, vector<1x1x16x16xbf16>
    %37 = vector.shape_cast %36 : vector<1x1x16x16xbf16> to vector<16x16xbf16>
    %38 = vector.shape_cast %35 : vector<16x16xbf16> to vector<1x1x16x16xbf16>
    tpu.vector_store %arg7[%c0_17, %c0_18, %c0_19, %c0_20], %38 {strides = array<i32>} : memref<1x2x16x16xbf16, #tpu.memory_space<vmem>>, vector<1x1x16x16xbf16>,
    %39 = vector.extract_strided_slice %28 {offsets = [0, 64], sizes = [16, 16], strides = [1, 1]} : vector<16x96xf32> to vector<16x16xf32>
    %40 = arith.truncf %39 : vector<16x16xf32> to vector<16x16xbf16>
    %c0_21 = arith.constant 0 : index
    %c0_22 = arith.constant 0 : index
    %c0_23 = arith.constant 0 : index
    %c0_24 = arith.constant 0 : index
    %41 = vector.load %arg8[%c0_21, %c0_22, %c0_23, %c0_24] : memref<1x2x16x16xbf16, #tpu.memory_space<vmem>>, vector<1x1x16x16xbf16>
    %42 = vector.shape_cast %41 : vector<1x1x16x16xbf16> to vector<16x16xbf16>
    %43 = vector.shape_cast %40 : vector<16x16xbf16> to vector<1x1x16x16xbf16>
    tpu.vector_store %arg8[%c0_21, %c0_22, %c0_23, %c0_24], %43 {strides = array<i32>} : memref<1x2x16x16xbf16, #tpu.memory_space<vmem>>, vector<1x1x16x16xbf16>,
    %44 = vector.extract_strided_slice %28 {offsets = [0, 16], sizes = [16, 16], strides = [1, 1]} : vector<16x96xf32> to vector<16x16xf32>
    %45 = arith.truncf %44 : vector<16x16xf32> to vector<16x16xbf16>
    %c0_25 = arith.constant 0 : index
    %c1 = arith.constant 1 : index
    %c0_26 = arith.constant 0 : index
    %c0_27 = arith.constant 0 : index
    %46 = vector.load %arg6[%c0_25, %c1, %c0_26, %c0_27] : memref<1x2x16x16xbf16, #tpu.memory_space<vmem>>, vector<1x1x16x16xbf16>
    %47 = vector.shape_cast %46 : vector<1x1x16x16xbf16> to vector<16x16xbf16>
    %48 = vector.shape_cast %45 : vector<16x16xbf16> to vector<1x1x16x16xbf16>
    tpu.vector_store %arg6[%c0_25, %c1, %c0_26, %c0_27], %48 {strides = array<i32>} : memref<1x2x16x16xbf16, #tpu.memory_space<vmem>>, vector<1x1x16x16xbf16>,
    %49 = vector.extract_strided_slice %28 {offsets = [0, 48], sizes = [16, 16], strides = [1, 1]} : vector<16x96xf32> to vector<16x16xf32>
    %50 = arith.truncf %49 : vector<16x16xf32> to vector<16x16xbf16>
    %c0_28 = arith.constant 0 : index
    %c1_29 = arith.constant 1 : index
    %c0_30 = arith.constant 0 : index
    %c0_31 = arith.constant 0 : index
    %51 = vector.load %arg7[%c0_28, %c1_29, %c0_30, %c0_31] : memref<1x2x16x16xbf16, #tpu.memory_space<vmem>>, vector<1x1x16x16xbf16>
    %52 = vector.shape_cast %51 : vector<1x1x16x16xbf16> to vector<16x16xbf16>
    %53 = vector.shape_cast %50 : vector<16x16xbf16> to vector<1x1x16x16xbf16>
    tpu.vector_store %arg7[%c0_28, %c1_29, %c0_30, %c0_31], %53 {strides = array<i32>} : memref<1x2x16x16xbf16, #tpu.memory_space<vmem>>, vector<1x1x16x16xbf16>,
    %54 = vector.extract_strided_slice %28 {offsets = [0, 80], sizes = [16, 16], strides = [1, 1]} : vector<16x96xf32> to vector<16x16xf32>
    %55 = arith.truncf %54 : vector<16x16xf32> to vector<16x16xbf16>
    %c0_32 = arith.constant 0 : index
    %c1_33 = arith.constant 1 : index
    %c0_34 = arith.constant 0 : index
    %c0_35 = arith.constant 0 : index
    %56 = vector.load %arg8[%c0_32, %c1_33, %c0_34, %c0_35] : memref<1x2x16x16xbf16, #tpu.memory_space<vmem>>, vector<1x1x16x16xbf16>
    %57 = vector.shape_cast %56 : vector<1x1x16x16xbf16> to vector<16x16xbf16>
    %58 = vector.shape_cast %55 : vector<16x16xbf16> to vector<1x1x16x16xbf16>
    tpu.vector_store %arg8[%c0_32, %c1_33, %c0_34, %c0_35], %58 {strides = array<i32>} : memref<1x2x16x16xbf16, #tpu.memory_space<vmem>>, vector<1x1x16x16xbf16>,
    return
  }
  func.func @transform_0(%arg0: i32, %arg1: i32) -> (i32, i32, i32) {
    %c0_i32 = arith.constant 0 : i32
    %c0_i32_0 = arith.constant 0 : i32
    return %arg0, %arg1, %c0_i32 : i32, i32, i32
  }
  func.func @transform_1(%arg0: i32, %arg1: i32) -> (i32, i32) {
    %c0_i32 = arith.constant 0 : i32
    %c0_i32_0 = arith.constant 0 : i32
    %c0_i32_1 = arith.constant 0 : i32
    return %c0_i32, %c0_i32_0 : i32, i32
  }
  func.func @transform_2(%arg0: i32, %arg1: i32) -> (i32, i32) {
    %c0_i32 = arith.constant 0 : i32
    %c0_i32_0 = arith.constant 0 : i32
    %c0_i32_1 = arith.constant 0 : i32
    return %c0_i32, %c0_i32_0 : i32, i32
  }
  func.func @transform_3(%arg0: i32, %arg1: i32) -> (i32, i32) {
    %c0_i32 = arith.constant 0 : i32
    %c0_i32_0 = arith.constant 0 : i32
    %c0_i32_1 = arith.constant 0 : i32
    return %c0_i32, %c0_i32_0 : i32, i32
  }
  func.func @transform_4(%arg0: i32, %arg1: i32) -> (i32, i32, i32, i32) {
    %c0_i32 = arith.constant 0 : i32
    %c0_i32_0 = arith.constant 0 : i32
    %c0_i32_1 = arith.constant 0 : i32
    return %arg0, %c0_i32, %arg1, %c0_i32_0 : i32, i32, i32, i32
  }
  func.func @transform_5(%arg0: i32, %arg1: i32) -> (i32, i32, i32, i32) {
    %c0_i32 = arith.constant 0 : i32
    %c0_i32_0 = arith.constant 0 : i32
    %c0_i32_1 = arith.constant 0 : i32
    return %arg0, %c0_i32, %arg1, %c0_i32_0 : i32, i32, i32, i32
  }
  func.func @transform_6(%arg0: i32, %arg1: i32) -> (i32, i32, i32, i32) {
    %c0_i32 = arith.constant 0 : i32
    %c0_i32_0 = arith.constant 0 : i32
    %c0_i32_1 = arith.constant 0 : i32
    return %arg0, %c0_i32, %arg1, %c0_i32_0 : i32, i32, i32, i32
  }
}

module attributes {stable_mosaic.version = 11 : i64} {
  func.func @_linear_kernel(%arg0: i32, %arg1: memref<32x48xf32, #tpu.memory_space<vmem>>, %arg2: memref<48x32xbf16, #tpu.memory_space<vmem>>, %arg3: memref<1x32xf32, #tpu.memory_space<vmem>>, %arg4: memref<32x32xf32, #tpu.memory_space<vmem>>) attributes {dimension_semantics = [#tpu.dimension_semantics<parallel>], iteration_bounds = array<i64: 1>, scalar_prefetch = 0 : i64, scratch_operands = 0 : i64, tpu.core_type = #tpu.core_type<tc>, window_params = [{transform_indices = @transform_0, window_bounds = array<i64: 32, 48>}, {pipeline_mode = #tpu.pipeline_mode<synchronous>, transform_indices = @transform_1, window_bounds = array<i64: 48, 32>}, {pipeline_mode = #tpu.pipeline_mode<synchronous>, transform_indices = @transform_2, window_bounds = array<i64: 1, 32>}, {transform_indices = @transform_3, window_bounds = array<i64: 32, 32>}]} {
    %c0 = arith.constant 0 : index
    %c0_0 = arith.constant 0 : index
    %0 = vector.load %arg1[%c0, %c0_0] : memref<32x48xf32, #tpu.memory_space<vmem>>, vector<32x48xf32>
    %1 = arith.truncf %0 : vector<32x48xf32> to vector<32x48xbf16>
    %c0_1 = arith.constant 0 : index
    %c0_2 = arith.constant 0 : index
    %2 = vector.load %arg2[%c0_1, %c0_2] : memref<48x32xbf16, #tpu.memory_space<vmem>>, vector<48x32xbf16>
    %cst = arith.constant dense<0.000000e+00> : vector<32x32xf32>
    %3 = tpu.matmul %1, %2, %cst {dimension_numbers = #tpu.dot_dimension_numbers<[1], [0], [0], [1], [0, 0, 1, 1], [], []>} : vector<32x48xbf16>, vector<48x32xbf16>, vector<32x32xf32> -> vector<32x32xf32>
    %c0_3 = arith.constant 0 : index
    %c0_4 = arith.constant 0 : index
    %4 = vector.load %arg3[%c0_3, %c0_4] : memref<1x32xf32, #tpu.memory_space<vmem>>, vector<1x32xf32>
    %5 = vector.broadcast %4 : vector<1x32xf32> to vector<32x32xf32>
    %6 = arith.addf %3, %5 : vector<32x32xf32>
    %c0_5 = arith.constant 0 : index
    %c0_6 = arith.constant 0 : index
    %7 = vector.load %arg4[%c0_5, %c0_6] : memref<32x32xf32, #tpu.memory_space<vmem>>, vector<32x32xf32>
    tpu.vector_store %arg4[%c0_5, %c0_6], %6 {strides = array<i32>} : memref<32x32xf32, #tpu.memory_space<vmem>>, vector<32x32xf32>,
    return
  }
  func.func @transform_0(%arg0: i32) -> (i32, i32) {
    %c0_i32 = arith.constant 0 : i32
    %c0_i32_0 = arith.constant 0 : i32
    return %arg0, %c0_i32 : i32, i32
  }
  func.func @transform_1(%arg0: i32) -> (i32, i32) {
    %c0_i32 = arith.constant 0 : i32
    %c0_i32_0 = arith.constant 0 : i32
    %c0_i32_1 = arith.constant 0 : i32
    return %c0_i32, %c0_i32_0 : i32, i32
  }
  func.func @transform_2(%arg0: i32) -> (i32, i32) {
    %c0_i32 = arith.constant 0 : i32
    %c0_i32_0 = arith.constant 0 : i32
    %c0_i32_1 = arith.constant 0 : i32
    return %c0_i32, %c0_i32_0 : i32, i32
  }
  func.func @transform_3(%arg0: i32) -> (i32, i32) {
    %c0_i32 = arith.constant 0 : i32
    %c0_i32_0 = arith.constant 0 : i32
    return %arg0, %c0_i32 : i32, i32
  }
}

module attributes {stable_mosaic.version = 11 : i64} {
  func.func @_ffn_block_kernel(%arg0: i32, %arg1: memref<32x32xf32, #tpu.memory_space<vmem>>, %arg2: memref<1x32xf32, #tpu.memory_space<vmem>>, %arg3: memref<1x32xf32, #tpu.memory_space<vmem>>, %arg4: memref<32x32xbf16, #tpu.memory_space<vmem>>, %arg5: memref<1x32xf32, #tpu.memory_space<vmem>>, %arg6: memref<32x32xbf16, #tpu.memory_space<vmem>>, %arg7: memref<1x32xf32, #tpu.memory_space<vmem>>, %arg8: memref<32x32xf32, #tpu.memory_space<vmem>>) attributes {dimension_semantics = [#tpu.dimension_semantics<parallel>], iteration_bounds = array<i64: 1>, scalar_prefetch = 0 : i64, scratch_operands = 0 : i64, tpu.core_type = #tpu.core_type<tc>, window_params = [{transform_indices = @transform_0, window_bounds = array<i64: 32, 32>}, {pipeline_mode = #tpu.pipeline_mode<synchronous>, transform_indices = @transform_1, window_bounds = array<i64: 1, 32>}, {pipeline_mode = #tpu.pipeline_mode<synchronous>, transform_indices = @transform_2, window_bounds = array<i64: 1, 32>}, {pipeline_mode = #tpu.pipeline_mode<synchronous>, transform_indices = @transform_3, window_bounds = array<i64: 32, 32>}, {pipeline_mode = #tpu.pipeline_mode<synchronous>, transform_indices = @transform_4, window_bounds = array<i64: 1, 32>}, {pipeline_mode = #tpu.pipeline_mode<synchronous>, transform_indices = @transform_5, window_bounds = array<i64: 32, 32>}, {pipeline_mode = #tpu.pipeline_mode<synchronous>, transform_indices = @transform_6, window_bounds = array<i64: 1, 32>}, {transform_indices = @transform_7, window_bounds = array<i64: 32, 32>}]} {
    %c0 = arith.constant 0 : index
    %c0_0 = arith.constant 0 : index
    %0 = vector.load %arg1[%c0, %c0_0] : memref<32x32xf32, #tpu.memory_space<vmem>>, vector<32x32xf32>
    %cst = arith.constant dense<0.000000e+00> : vector<32xf32>
    %1 = vector.multi_reduction <add>, %0, %cst [1] : vector<32x32xf32> to vector<32xf32>
    %2 = vector.shape_cast %1 : vector<32xf32> to vector<32x1xf32>
    %cst_1 = arith.constant 3.200000e+01 : f32
    %3 = vector.broadcast %cst_1 : f32 to vector<32x1xf32>
    %4 = arith.divf %2, %3 : vector<32x1xf32>
    %5 = vector.broadcast %4 : vector<32x1xf32> to vector<32x32xf32>
    %6 = arith.subf %0, %5 : vector<32x32xf32>
    %7 = arith.mulf %6, %6 : vector<32x32xf32>
    %cst_2 = arith.constant dense<0.000000e+00> : vector<32xf32>
    %8 = vector.multi_reduction <add>, %7, %cst_2 [1] : vector<32x32xf32> to vector<32xf32>
    %9 = vector.shape_cast %8 : vector<32xf32> to vector<32x1xf32>
    %cst_3 = arith.constant 3.200000e+01 : f32
    %10 = vector.broadcast %cst_3 : f32 to vector<32x1xf32>
    %11 = arith.divf %9, %10 : vector<32x1xf32>
    %12 = vector.broadcast %4 : vector<32x1xf32> to vector<32x32xf32>
    %13 = arith.subf %0, %12 : vector<32x32xf32>
    %cst_4 = arith.constant 9.99999974E-6 : f32
    %14 = vector.broadcast %cst_4 : f32 to vector<32x1xf32>
    %15 = arith.addf %11, %14 : vector<32x1xf32>
    %16 = math.rsqrt %15 : vector<32x1xf32>
    %17 = vector.broadcast %16 : vector<32x1xf32> to vector<32x32xf32>
    %18 = arith.mulf %13, %17 : vector<32x32xf32>
    %c0_5 = arith.constant 0 : index
    %c0_6 = arith.constant 0 : index
    %19 = vector.load %arg2[%c0_5, %c0_6] : memref<1x32xf32, #tpu.memory_space<vmem>>, vector<1x32xf32>
    %20 = vector.broadcast %19 : vector<1x32xf32> to vector<32x32xf32>
    %21 = arith.mulf %18, %20 : vector<32x32xf32>
    %c0_7 = arith.constant 0 : index
    %c0_8 = arith.constant 0 : index
    %22 = vector.load %arg3[%c0_7, %c0_8] : memref<1x32xf32, #tpu.memory_space<vmem>>, vector<1x32xf32>
    %23 = vector.broadcast %22 : vector<1x32xf32> to vector<32x32xf32>
    %24 = arith.addf %21, %23 : vector<32x32xf32>
    %25 = arith.truncf %24 : vector<32x32xf32> to vector<32x32xbf16>
    %c0_9 = arith.constant 0 : index
    %c0_10 = arith.constant 0 : index
    %26 = vector.load %arg4[%c0_9, %c0_10] : memref<32x32xbf16, #tpu.memory_space<vmem>>, vector<32x32xbf16>
    %cst_11 = arith.constant dense<0.000000e+00> : vector<32x32xf32>
    %27 = tpu.matmul %25, %26, %cst_11 {dimension_numbers = #tpu.dot_dimension_numbers<[1], [0], [0], [1], [0, 0, 1, 1], [], []>} : vector<32x32xbf16>, vector<32x32xbf16>, vector<32x32xf32> -> vector<32x32xf32>
    %c0_12 = arith.constant 0 : index
    %c0_13 = arith.constant 0 : index
    %28 = vector.load %arg5[%c0_12, %c0_13] : memref<1x32xf32, #tpu.memory_space<vmem>>, vector<1x32xf32>
    %29 = vector.broadcast %28 : vector<1x32xf32> to vector<32x32xf32>
    %30 = arith.addf %27, %29 : vector<32x32xf32>
    %cst_14 = arith.constant 5.000000e-01 : f32
    %31 = vector.broadcast %cst_14 : f32 to vector<32x32xf32>
    %32 = arith.mulf %31, %30 : vector<32x32xf32>
    %cst_15 = arith.constant 0.707106769 : f32
    %33 = vector.broadcast %cst_15 : f32 to vector<32x32xf32>
    %34 = arith.mulf %30, %33 : vector<32x32xf32>
    %35 = math.erf %34 : vector<32x32xf32>
    %cst_16 = arith.constant 1.000000e+00 : f32
    %36 = vector.broadcast %cst_16 : f32 to vector<32x32xf32>
    %37 = arith.addf %36, %35 : vector<32x32xf32>
    %38 = arith.mulf %32, %37 : vector<32x32xf32>
    %39 = arith.truncf %38 : vector<32x32xf32> to vector<32x32xbf16>
    %c0_17 = arith.constant 0 : index
    %c0_18 = arith.constant 0 : index
    %40 = vector.load %arg6[%c0_17, %c0_18] : memref<32x32xbf16, #tpu.memory_space<vmem>>, vector<32x32xbf16>
    %cst_19 = arith.constant dense<0.000000e+00> : vector<32x32xf32>
    %41 = tpu.matmul %39, %40, %cst_19 {dimension_numbers = #tpu.dot_dimension_numbers<[1], [0], [0], [1], [0, 0, 1, 1], [], []>} : vector<32x32xbf16>, vector<32x32xbf16>, vector<32x32xf32> -> vector<32x32xf32>
    %c0_20 = arith.constant 0 : index
    %c0_21 = arith.constant 0 : index
    %42 = vector.load %arg7[%c0_20, %c0_21] : memref<1x32xf32, #tpu.memory_space<vmem>>, vector<1x32xf32>
    %43 = vector.broadcast %42 : vector<1x32xf32> to vector<32x32xf32>
    %44 = arith.addf %41, %43 : vector<32x32xf32>
    %45 = arith.addf %44, %0 : vector<32x32xf32>
    %c0_22 = arith.constant 0 : index
    %c0_23 = arith.constant 0 : index
    %46 = vector.load %arg8[%c0_22, %c0_23] : memref<32x32xf32, #tpu.memory_space<vmem>>, vector<32x32xf32>
    tpu.vector_store %arg8[%c0_22, %c0_23], %45 {strides = array<i32>} : memref<32x32xf32, #tpu.memory_space<vmem>>, vector<32x32xf32>,
    return
  }
  func.func @transform_0(%arg0: i32) -> (i32, i32) {
    %c0_i32 = arith.constant 0 : i32
    %c0_i32_0 = arith.constant 0 : i32
    return %arg0, %c0_i32 : i32, i32
  }
  func.func @transform_1(%arg0: i32) -> (i32, i32) {
    %c0_i32 = arith.constant 0 : i32
    %c0_i32_0 = arith.constant 0 : i32
    %c0_i32_1 = arith.constant 0 : i32
    return %c0_i32, %c0_i32_0 : i32, i32
  }
  func.func @transform_2(%arg0: i32) -> (i32, i32) {
    %c0_i32 = arith.constant 0 : i32
    %c0_i32_0 = arith.constant 0 : i32
    %c0_i32_1 = arith.constant 0 : i32
    return %c0_i32, %c0_i32_0 : i32, i32
  }
  func.func @transform_3(%arg0: i32) -> (i32, i32) {
    %c0_i32 = arith.constant 0 : i32
    %c0_i32_0 = arith.constant 0 : i32
    %c0_i32_1 = arith.constant 0 : i32
    return %c0_i32, %c0_i32_0 : i32, i32
  }
  func.func @transform_4(%arg0: i32) -> (i32, i32) {
    %c0_i32 = arith.constant 0 : i32
    %c0_i32_0 = arith.constant 0 : i32
    %c0_i32_1 = arith.constant 0 : i32
    return %c0_i32, %c0_i32_0 : i32, i32
  }
  func.func @transform_5(%arg0: i32) -> (i32, i32) {
    %c0_i32 = arith.constant 0 : i32
    %c0_i32_0 = arith.constant 0 : i32
    %c0_i32_1 = arith.constant 0 : i32
    return %c0_i32, %c0_i32_0 : i32, i32
  }
  func.func @transform_6(%arg0: i32) -> (i32, i32) {
    %c0_i32 = arith.constant 0 : i32
    %c0_i32_0 = arith.constant 0 : i32
    %c0_i32_1 = arith.constant 0 : i32
    return %c0_i32, %c0_i32_0 : i32, i32
  }
  func.func @transform_7(%arg0: i32) -> (i32, i32) {
    %c0_i32 = arith.constant 0 : i32
    %c0_i32_0 = arith.constant 0 : i32
    return %arg0, %c0_i32 : i32, i32
  }
}

module attributes {stable_mosaic.version = 11 : i64} {
  func.func @_attn_kernel(%arg0: i32, %arg1: i32, %arg2: memref<1x2x16x16xbf16, #tpu.memory_space<vmem>>, %arg3: memref<1x2x16x16xbf16, #tpu.memory_space<vmem>>, %arg4: memref<1x2x16x16xbf16, #tpu.memory_space<vmem>>, %arg5: memref<1x16x32xf32, #tpu.memory_space<vmem>>, %arg6: memref<32x32xbf16, #tpu.memory_space<vmem>>, %arg7: memref<1x32xf32, #tpu.memory_space<vmem>>, %arg8: memref<1x16x32xf32, #tpu.memory_space<vmem>>, %arg9: memref<16x32xbf16, #tpu.memory_space<vmem>>) attributes {dimension_semantics = [#tpu.dimension_semantics<parallel>, #tpu.dimension_semantics<parallel>], iteration_bounds = array<i64: 2, 1>, scalar_prefetch = 0 : i64, scratch_operands = 1 : i64, tpu.core_type = #tpu.core_type<tc>, window_params = [{transform_indices = @transform_0, window_bounds = array<i64: 1, 2, 16, 16>}, {transform_indices = @transform_1, window_bounds = array<i64: 1, 2, 16, 16>}, {transform_indices = @transform_2, window_bounds = array<i64: 1, 2, 16, 16>}, {transform_indices = @transform_3, window_bounds = array<i64: 1, 16, 32>}, {pipeline_mode = #tpu.pipeline_mode<synchronous>, transform_indices = @transform_4, window_bounds = array<i64: 32, 32>}, {pipeline_mode = #tpu.pipeline_mode<synchronous>, transform_indices = @transform_5, window_bounds = array<i64: 1, 32>}, {transform_indices = @transform_6, window_bounds = array<i64: 1, 16, 32>}]} {
    %c0 = arith.constant 0 : index
    %c0_0 = arith.constant 0 : index
    %c0_1 = arith.constant 0 : index
    %c0_2 = arith.constant 0 : index
    %0 = vector.load %arg2[%c0, %c0_0, %c0_1, %c0_2] : memref<1x2x16x16xbf16, #tpu.memory_space<vmem>>, vector<1x2x16x16xbf16>
    %1 = vector.shape_cast %0 : vector<1x2x16x16xbf16> to vector<2x16x16xbf16>
    %c0_3 = arith.constant 0 : index
    %c0_4 = arith.constant 0 : index
    %c0_5 = arith.constant 0 : index
    %c0_6 = arith.constant 0 : index
    %2 = vector.load %arg3[%c0_3, %c0_4, %c0_5, %c0_6] : memref<1x2x16x16xbf16, #tpu.memory_space<vmem>>, vector<1x2x16x16xbf16>
    %3 = vector.shape_cast %2 : vector<1x2x16x16xbf16> to vector<2x16x16xbf16>
    %c0_7 = arith.constant 0 : index
    %c0_8 = arith.constant 0 : index
    %c0_9 = arith.constant 0 : index
    %c0_10 = arith.constant 0 : index
    %4 = vector.load %arg4[%c0_7, %c0_8, %c0_9, %c0_10] : memref<1x2x16x16xbf16, #tpu.memory_space<vmem>>, vector<1x2x16x16xbf16>
    %5 = vector.shape_cast %4 : vector<1x2x16x16xbf16> to vector<2x16x16xbf16>
    "tpu.trace_start"() <{level = 10 : i32, message = "hqd,hkd->hqk"}> : () -> ()
    %cst = arith.constant dense<0.000000e+00> : vector<2x16x16xf32>
    %6 = tpu.matmul %1, %3, %cst {dimension_numbers = #tpu.dot_dimension_numbers<[2], [2], [1], [1], [0, 0, 0, 1, 1, 1], [0], [0]>} : vector<2x16x16xbf16>, vector<2x16x16xbf16>, vector<2x16x16xf32> -> vector<2x16x16xf32>
    "tpu.trace_stop"() : () -> ()
    %cst_11 = arith.constant dense<0xFF800000> : vector<2x16xf32>
    %7 = vector.multi_reduction <maximumf>, %6, %cst_11 [2] : vector<2x16x16xf32> to vector<2x16xf32>
    %8 = vector.shape_cast %7 : vector<2x16xf32> to vector<2x16x1xf32>
    %9 = vector.broadcast %8 : vector<2x16x1xf32> to vector<2x16x16xf32>
    %10 = arith.subf %6, %9 : vector<2x16x16xf32>
    %11 = math.exp %10 : vector<2x16x16xf32>
    %cst_12 = arith.constant dense<0.000000e+00> : vector<2x16xf32>
    %12 = vector.multi_reduction <add>, %11, %cst_12 [2] : vector<2x16x16xf32> to vector<2x16xf32>
    %13 = vector.shape_cast %12 : vector<2x16xf32> to vector<2x16x1xf32>
    %14 = tpu.reciprocal %13 {approx = true} : vector<2x16x1xf32> -> vector<2x16x1xf32>
    %15 = vector.broadcast %14 : vector<2x16x1xf32> to vector<2x16x16xf32>
    %16 = arith.mulf %11, %15 : vector<2x16x16xf32>
    %17 = arith.truncf %16 : vector<2x16x16xf32> to vector<2x16x16xbf16>
    "tpu.trace_start"() <{level = 10 : i32, message = "hqk,hkd->hqd"}> : () -> ()
    %cst_13 = arith.constant dense<0.000000e+00> : vector<2x16x16xf32>
    %18 = tpu.matmul %17, %5, %cst_13 {dimension_numbers = #tpu.dot_dimension_numbers<[2], [1], [1], [2], [0, 0, 0, 1, 1, 2], [0], [0]>} : vector<2x16x16xbf16>, vector<2x16x16xbf16>, vector<2x16x16xf32> -> vector<2x16x16xf32>
    "tpu.trace_stop"() : () -> ()
    %19 = vector.extract_strided_slice %18 {offsets = [0, 0, 0], sizes = [1, 16, 16], strides = [1, 1, 1]} : vector<2x16x16xf32> to vector<1x16x16xf32>
    %20 = vector.shape_cast %19 : vector<1x16x16xf32> to vector<16x16xf32>
    %21 = arith.truncf %20 : vector<16x16xf32> to vector<16x16xbf16>
    %c0_14 = arith.constant 0 : index
    %c0_15 = arith.constant 0 : index
    %22 = vector.load %arg9[%c0_14, %c0_15] : memref<16x32xbf16, #tpu.memory_space<vmem>>, vector<16x16xbf16>
    tpu.vector_store %arg9[%c0_14, %c0_15], %21 {strides = array<i32>} : memref<16x32xbf16, #tpu.memory_space<vmem>>, vector<16x16xbf16>,
    %23 = vector.extract_strided_slice %18 {offsets = [1, 0, 0], sizes = [1, 16, 16], strides = [1, 1, 1]} : vector<2x16x16xf32> to vector<1x16x16xf32>
    %24 = vector.shape_cast %23 : vector<1x16x16xf32> to vector<16x16xf32>
    %25 = arith.truncf %24 : vector<16x16xf32> to vector<16x16xbf16>
    %c0_16 = arith.constant 0 : index
    %c16 = arith.constant 16 : index
    %26 = vector.load %arg9[%c0_16, %c16] : memref<16x32xbf16, #tpu.memory_space<vmem>>, vector<16x16xbf16>
    tpu.vector_store %arg9[%c0_16, %c16], %25 {strides = array<i32>} : memref<16x32xbf16, #tpu.memory_space<vmem>>, vector<16x16xbf16>,
    %c0_17 = arith.constant 0 : index
    %c0_18 = arith.constant 0 : index
    %27 = vector.load %arg9[%c0_17, %c0_18] : memref<16x32xbf16, #tpu.memory_space<vmem>>, vector<16x32xbf16>
    %c0_19 = arith.constant 0 : index
    %c0_20 = arith.constant 0 : index
    %28 = vector.load %arg6[%c0_19, %c0_20] : memref<32x32xbf16, #tpu.memory_space<vmem>>, vector<32x32xbf16>
    %cst_21 = arith.constant dense<0.000000e+00> : vector<16x32xf32>
    %29 = tpu.matmul %27, %28, %cst_21 {dimension_numbers = #tpu.dot_dimension_numbers<[1], [0], [0], [1], [0, 0, 1, 1], [], []>} : vector<16x32xbf16>, vector<32x32xbf16>, vector<16x32xf32> -> vector<16x32xf32>
    %c0_22 = arith.constant 0 : index
    %c0_23 = arith.constant 0 : index
    %30 = vector.load %arg7[%c0_22, %c0_23] : memref<1x32xf32, #tpu.memory_space<vmem>>, vector<1x32xf32>
    %31 = vector.broadcast %30 : vector<1x32xf32> to vector<16x32xf32>
    %32 = arith.addf %29, %31 : vector<16x32xf32>
    %c0_24 = arith.constant 0 : index
    %c0_25 = arith.constant 0 : index
    %c0_26 = arith.constant 0 : index
    %33 = vector.load %arg5[%c0_24, %c0_25, %c0_26] : memref<1x16x32xf32, #tpu.memory_space<vmem>>, vector<1x16x32xf32>
    %34 = vector.shape_cast %33 : vector<1x16x32xf32> to vector<16x32xf32>
    %35 = arith.addf %32, %34 : vector<16x32xf32>
    %c0_27 = arith.constant 0 : index
    %c0_28 = arith.constant 0 : index
    %c0_29 = arith.constant 0 : index
    %36 = vector.load %arg8[%c0_27, %c0_28, %c0_29] : memref<1x16x32xf32, #tpu.memory_space<vmem>>, vector<1x16x32xf32>
    %37 = vector.shape_cast %36 : vector<1x16x32xf32> to vector<16x32xf32>
    %38 = vector.shape_cast %35 : vector<16x32xf32> to vector<1x16x32xf32>
    tpu.vector_store %arg8[%c0_27, %c0_28, %c0_29], %38 {strides = array<i32>} : memref<1x16x32xf32, #tpu.memory_space<vmem>>, vector<1x16x32xf32>,
    return
  }
  func.func @transform_0(%arg0: i32, %arg1: i32) -> (i32, i32, i32, i32) {
    %c0_i32 = arith.constant 0 : i32
    %c0_i32_0 = arith.constant 0 : i32
    %c0_i32_1 = arith.constant 0 : i32
    return %arg0, %c0_i32, %arg1, %c0_i32_0 : i32, i32, i32, i32
  }
  func.func @transform_1(%arg0: i32, %arg1: i32) -> (i32, i32, i32, i32) {
    %c0_i32 = arith.constant 0 : i32
    %c0_i32_0 = arith.constant 0 : i32
    %c0_i32_1 = arith.constant 0 : i32
    %c0_i32_2 = arith.constant 0 : i32
    return %arg0, %c0_i32, %c0_i32_0, %c0_i32_1 : i32, i32, i32, i32
  }
  func.func @transform_2(%arg0: i32, %arg1: i32) -> (i32, i32, i32, i32) {
    %c0_i32 = arith.constant 0 : i32
    %c0_i32_0 = arith.constant 0 : i32
    %c0_i32_1 = arith.constant 0 : i32
    %c0_i32_2 = arith.constant 0 : i32
    return %arg0, %c0_i32, %c0_i32_0, %c0_i32_1 : i32, i32, i32, i32
  }
  func.func @transform_3(%arg0: i32, %arg1: i32) -> (i32, i32, i32) {
    %c0_i32 = arith.constant 0 : i32
    %c0_i32_0 = arith.constant 0 : i32
    return %arg0, %arg1, %c0_i32 : i32, i32, i32
  }
  func.func @transform_4(%arg0: i32, %arg1: i32) -> (i32, i32) {
    %c0_i32 = arith.constant 0 : i32
    %c0_i32_0 = arith.constant 0 : i32
    %c0_i32_1 = arith.constant 0 : i32
    return %c0_i32, %c0_i32_0 : i32, i32
  }
  func.func @transform_5(%arg0: i32, %arg1: i32) -> (i32, i32) {
    %c0_i32 = arith.constant 0 : i32
    %c0_i32_0 = arith.constant 0 : i32
    %c0_i32_1 = arith.constant 0 : i32
    return %c0_i32, %c0_i32_0 : i32, i32
  }
  func.func @transform_6(%arg0: i32, %arg1: i32) -> (i32, i32, i32) {
    %c0_i32 = arith.constant 0 : i32
    %c0_i32_0 = arith.constant 0 : i32
    return %arg0, %arg1, %c0_i32 : i32, i32, i32
  }
}

module attributes {stable_mosaic.version = 11 : i64} {
  func.func @_conv1_stats_kernel(%arg0: i32, %arg1: memref<32x32xf32, #tpu.memory_space<vmem>>, %arg2: memref<32x256xbf16, #tpu.memory_space<vmem>>, %arg3: memref<1x256xf32, #tpu.memory_space<vmem>>, %arg4: memref<32x256xbf16, #tpu.memory_space<vmem>>, %arg5: memref<1x1x256xf32, #tpu.memory_space<vmem>>, %arg6: memref<1x1x256xf32, #tpu.memory_space<vmem>>) attributes {dimension_semantics = [#tpu.dimension_semantics<parallel>], iteration_bounds = array<i64: 1>, scalar_prefetch = 0 : i64, scratch_operands = 0 : i64, tpu.core_type = #tpu.core_type<tc>, window_params = [{transform_indices = @transform_0, window_bounds = array<i64: 32, 32>}, {pipeline_mode = #tpu.pipeline_mode<synchronous>, transform_indices = @transform_1, window_bounds = array<i64: 32, 256>}, {pipeline_mode = #tpu.pipeline_mode<synchronous>, transform_indices = @transform_2, window_bounds = array<i64: 1, 256>}, {transform_indices = @transform_3, window_bounds = array<i64: 32, 256>}, {transform_indices = @transform_4, window_bounds = array<i64: 1, 1, 256>}, {transform_indices = @transform_5, window_bounds = array<i64: 1, 1, 256>}]} {
    %c0 = arith.constant 0 : index
    %c0_0 = arith.constant 0 : index
    %0 = vector.load %arg1[%c0, %c0_0] : memref<32x32xf32, #tpu.memory_space<vmem>>, vector<32x32xf32>
    %1 = arith.truncf %0 : vector<32x32xf32> to vector<32x32xbf16>
    %c0_1 = arith.constant 0 : index
    %c0_2 = arith.constant 0 : index
    %2 = vector.load %arg2[%c0_1, %c0_2] : memref<32x256xbf16, #tpu.memory_space<vmem>>, vector<32x256xbf16>
    %cst = arith.constant dense<0.000000e+00> : vector<32x256xf32>
    %3 = tpu.matmul %1, %2, %cst {dimension_numbers = #tpu.dot_dimension_numbers<[1], [0], [0], [1], [0, 0, 1, 1], [], []>} : vector<32x32xbf16>, vector<32x256xbf16>, vector<32x256xf32> -> vector<32x256xf32>
    %c0_3 = arith.constant 0 : index
    %c0_4 = arith.constant 0 : index
    %4 = vector.load %arg3[%c0_3, %c0_4] : memref<1x256xf32, #tpu.memory_space<vmem>>, vector<1x256xf32>
    %5 = vector.broadcast %4 : vector<1x256xf32> to vector<32x256xf32>
    %6 = arith.addf %3, %5 : vector<32x256xf32>
    %7 = arith.truncf %6 : vector<32x256xf32> to vector<32x256xbf16>
    %c0_5 = arith.constant 0 : index
    %c0_6 = arith.constant 0 : index
    %8 = vector.load %arg4[%c0_5, %c0_6] : memref<32x256xbf16, #tpu.memory_space<vmem>>, vector<32x256xbf16>
    tpu.vector_store %arg4[%c0_5, %c0_6], %7 {strides = array<i32>} : memref<32x256xbf16, #tpu.memory_space<vmem>>, vector<32x256xbf16>,
    %cst_7 = arith.constant dense<0.000000e+00> : vector<256xf32>
    %9 = vector.multi_reduction <add>, %6, %cst_7 [0] : vector<32x256xf32> to vector<256xf32>
    %10 = vector.shape_cast %9 : vector<256xf32> to vector<1x256xf32>
    %c0_8 = arith.constant 0 : index
    %c0_9 = arith.constant 0 : index
    %c0_10 = arith.constant 0 : index
    %11 = vector.load %arg5[%c0_8, %c0_9, %c0_10] : memref<1x1x256xf32, #tpu.memory_space<vmem>>, vector<1x1x256xf32>
    %12 = vector.shape_cast %11 : vector<1x1x256xf32> to vector<1x256xf32>
    %13 = vector.shape_cast %10 : vector<1x256xf32> to vector<1x1x256xf32>
    tpu.vector_store %arg5[%c0_8, %c0_9, %c0_10], %13 {strides = array<i32>} : memref<1x1x256xf32, #tpu.memory_space<vmem>>, vector<1x1x256xf32>,
    %14 = arith.mulf %6, %6 : vector<32x256xf32>
    %cst_11 = arith.constant dense<0.000000e+00> : vector<256xf32>
    %15 = vector.multi_reduction <add>, %14, %cst_11 [0] : vector<32x256xf32> to vector<256xf32>
    %16 = vector.shape_cast %15 : vector<256xf32> to vector<1x256xf32>
    %c0_12 = arith.constant 0 : index
    %c0_13 = arith.constant 0 : index
    %c0_14 = arith.constant 0 : index
    %17 = vector.load %arg6[%c0_12, %c0_13, %c0_14] : memref<1x1x256xf32, #tpu.memory_space<vmem>>, vector<1x1x256xf32>
    %18 = vector.shape_cast %17 : vector<1x1x256xf32> to vector<1x256xf32>
    %19 = vector.shape_cast %16 : vector<1x256xf32> to vector<1x1x256xf32>
    tpu.vector_store %arg6[%c0_12, %c0_13, %c0_14], %19 {strides = array<i32>} : memref<1x1x256xf32, #tpu.memory_space<vmem>>, vector<1x1x256xf32>,
    return
  }
  func.func @transform_0(%arg0: i32) -> (i32, i32) {
    %c0_i32 = arith.constant 0 : i32
    %c0_i32_0 = arith.constant 0 : i32
    return %arg0, %c0_i32 : i32, i32
  }
  func.func @transform_1(%arg0: i32) -> (i32, i32) {
    %c0_i32 = arith.constant 0 : i32
    %c0_i32_0 = arith.constant 0 : i32
    %c0_i32_1 = arith.constant 0 : i32
    return %c0_i32, %c0_i32_0 : i32, i32
  }
  func.func @transform_2(%arg0: i32) -> (i32, i32) {
    %c0_i32 = arith.constant 0 : i32
    %c0_i32_0 = arith.constant 0 : i32
    %c0_i32_1 = arith.constant 0 : i32
    return %c0_i32, %c0_i32_0 : i32, i32
  }
  func.func @transform_3(%arg0: i32) -> (i32, i32) {
    %c0_i32 = arith.constant 0 : i32
    %c0_i32_0 = arith.constant 0 : i32
    return %arg0, %c0_i32 : i32, i32
  }
  func.func @transform_4(%arg0: i32) -> (i32, i32, i32) {
    %c0_i32 = arith.constant 0 : i32
    %c0_i32_0 = arith.constant 0 : i32
    %c0_i32_1 = arith.constant 0 : i32
    return %arg0, %c0_i32, %c0_i32_0 : i32, i32, i32
  }
  func.func @transform_5(%arg0: i32) -> (i32, i32, i32) {
    %c0_i32 = arith.constant 0 : i32
    %c0_i32_0 = arith.constant 0 : i32
    %c0_i32_1 = arith.constant 0 : i32
    return %arg0, %c0_i32, %c0_i32_0 : i32, i32, i32
  }
}

module attributes {stable_mosaic.version = 11 : i64} {
  func.func @_bn_relu_conv2_kernel(%arg0: i32, %arg1: memref<32x256xbf16, #tpu.memory_space<vmem>>, %arg2: memref<1x1x256xf32, #tpu.memory_space<vmem>>, %arg3: memref<1x1x256xf32, #tpu.memory_space<vmem>>, %arg4: memref<1x256xf32, #tpu.memory_space<vmem>>, %arg5: memref<1x256xf32, #tpu.memory_space<vmem>>, %arg6: memref<256x128xbf16, #tpu.memory_space<vmem>>, %arg7: memref<1x128xf32, #tpu.memory_space<vmem>>, %arg8: memref<32x128xf32, #tpu.memory_space<vmem>>) attributes {dimension_semantics = [#tpu.dimension_semantics<parallel>], iteration_bounds = array<i64: 1>, scalar_prefetch = 0 : i64, scratch_operands = 0 : i64, tpu.core_type = #tpu.core_type<tc>, window_params = [{transform_indices = @transform_0, window_bounds = array<i64: 32, 256>}, {pipeline_mode = #tpu.pipeline_mode<synchronous>, transform_indices = @transform_1, window_bounds = array<i64: 1, 1, 256>}, {pipeline_mode = #tpu.pipeline_mode<synchronous>, transform_indices = @transform_2, window_bounds = array<i64: 1, 1, 256>}, {pipeline_mode = #tpu.pipeline_mode<synchronous>, transform_indices = @transform_3, window_bounds = array<i64: 1, 256>}, {pipeline_mode = #tpu.pipeline_mode<synchronous>, transform_indices = @transform_4, window_bounds = array<i64: 1, 256>}, {pipeline_mode = #tpu.pipeline_mode<synchronous>, transform_indices = @transform_5, window_bounds = array<i64: 256, 128>}, {pipeline_mode = #tpu.pipeline_mode<synchronous>, transform_indices = @transform_6, window_bounds = array<i64: 1, 128>}, {transform_indices = @transform_7, window_bounds = array<i64: 32, 128>}]} {
    %c0 = arith.constant 0 : index
    %c0_0 = arith.constant 0 : index
    %c0_1 = arith.constant 0 : index
    %0 = vector.load %arg2[%c0, %c0_0, %c0_1] : memref<1x1x256xf32, #tpu.memory_space<vmem>>, vector<1x1x256xf32>
    %cst = arith.constant dense<0.000000e+00> : vector<1x256xf32>
    %1 = vector.multi_reduction <add>, %0, %cst [0] : vector<1x1x256xf32> to vector<1x256xf32>
    %c0_2 = arith.constant 0 : index
    %c0_3 = arith.constant 0 : index
    %c0_4 = arith.constant 0 : index
    %2 = vector.load %arg3[%c0_2, %c0_3, %c0_4] : memref<1x1x256xf32, #tpu.memory_space<vmem>>, vector<1x1x256xf32>
    %cst_5 = arith.constant dense<0.000000e+00> : vector<1x256xf32>
    %3 = vector.multi_reduction <add>, %2, %cst_5 [0] : vector<1x1x256xf32> to vector<1x256xf32>
    %cst_6 = arith.constant 3.125000e-02 : f32
    %4 = vector.broadcast %cst_6 : f32 to vector<1x256xf32>
    %5 = arith.mulf %1, %4 : vector<1x256xf32>
    %cst_7 = arith.constant 3.125000e-02 : f32
    %6 = vector.broadcast %cst_7 : f32 to vector<1x256xf32>
    %7 = arith.mulf %3, %6 : vector<1x256xf32>
    %8 = arith.mulf %5, %5 : vector<1x256xf32>
    %9 = arith.subf %7, %8 : vector<1x256xf32>
    %cst_8 = arith.constant 0.000000e+00 : f32
    %10 = vector.broadcast %cst_8 : f32 to vector<1x256xf32>
    %11 = arith.maximumf %9, %10 : vector<1x256xf32>
    %c0_9 = arith.constant 0 : index
    %c0_10 = arith.constant 0 : index
    %12 = vector.load %arg1[%c0_9, %c0_10] : memref<32x256xbf16, #tpu.memory_space<vmem>>, vector<32x256xbf16>
    %13 = arith.extf %12 : vector<32x256xbf16> to vector<32x256xf32>
    %14 = vector.broadcast %5 : vector<1x256xf32> to vector<32x256xf32>
    %15 = arith.subf %13, %14 : vector<32x256xf32>
    %cst_11 = arith.constant 9.99999974E-6 : f32
    %16 = vector.broadcast %cst_11 : f32 to vector<1x256xf32>
    %17 = arith.addf %11, %16 : vector<1x256xf32>
    %18 = math.rsqrt %17 : vector<1x256xf32>
    %19 = vector.broadcast %18 : vector<1x256xf32> to vector<32x256xf32>
    %20 = arith.mulf %15, %19 : vector<32x256xf32>
    %c0_12 = arith.constant 0 : index
    %c0_13 = arith.constant 0 : index
    %21 = vector.load %arg4[%c0_12, %c0_13] : memref<1x256xf32, #tpu.memory_space<vmem>>, vector<1x256xf32>
    %22 = vector.broadcast %21 : vector<1x256xf32> to vector<32x256xf32>
    %23 = arith.mulf %20, %22 : vector<32x256xf32>
    %c0_14 = arith.constant 0 : index
    %c0_15 = arith.constant 0 : index
    %24 = vector.load %arg5[%c0_14, %c0_15] : memref<1x256xf32, #tpu.memory_space<vmem>>, vector<1x256xf32>
    %25 = vector.broadcast %24 : vector<1x256xf32> to vector<32x256xf32>
    %26 = arith.addf %23, %25 : vector<32x256xf32>
    %cst_16 = arith.constant 0.000000e+00 : f32
    %27 = vector.broadcast %cst_16 : f32 to vector<32x256xf32>
    %28 = arith.maximumf %26, %27 : vector<32x256xf32>
    %29 = arith.truncf %28 : vector<32x256xf32> to vector<32x256xbf16>
    %c0_17 = arith.constant 0 : index
    %c0_18 = arith.constant 0 : index
    %30 = vector.load %arg6[%c0_17, %c0_18] : memref<256x128xbf16, #tpu.memory_space<vmem>>, vector<256x128xbf16>
    %cst_19 = arith.constant dense<0.000000e+00> : vector<32x128xf32>
    %31 = tpu.matmul %29, %30, %cst_19 {dimension_numbers = #tpu.dot_dimension_numbers<[1], [0], [0], [1], [0, 0, 1, 1], [], []>} : vector<32x256xbf16>, vector<256x128xbf16>, vector<32x128xf32> -> vector<32x128xf32>
    %c0_20 = arith.constant 0 : index
    %c0_21 = arith.constant 0 : index
    %32 = vector.load %arg7[%c0_20, %c0_21] : memref<1x128xf32, #tpu.memory_space<vmem>>, vector<1x128xf32>
    %33 = vector.broadcast %32 : vector<1x128xf32> to vector<32x128xf32>
    %34 = arith.addf %31, %33 : vector<32x128xf32>
    %c0_22 = arith.constant 0 : index
    %c0_23 = arith.constant 0 : index
    %35 = vector.load %arg8[%c0_22, %c0_23] : memref<32x128xf32, #tpu.memory_space<vmem>>, vector<32x128xf32>
    tpu.vector_store %arg8[%c0_22, %c0_23], %34 {strides = array<i32>} : memref<32x128xf32, #tpu.memory_space<vmem>>, vector<32x128xf32>,
    return
  }
  func.func @transform_0(%arg0: i32) -> (i32, i32) {
    %c0_i32 = arith.constant 0 : i32
    %c0_i32_0 = arith.constant 0 : i32
    return %arg0, %c0_i32 : i32, i32
  }
  func.func @transform_1(%arg0: i32) -> (i32, i32, i32) {
    %c0_i32 = arith.constant 0 : i32
    %c0_i32_0 = arith.constant 0 : i32
    %c0_i32_1 = arith.constant 0 : i32
    %c0_i32_2 = arith.constant 0 : i32
    return %c0_i32, %c0_i32_0, %c0_i32_1 : i32, i32, i32
  }
  func.func @transform_2(%arg0: i32) -> (i32, i32, i32) {
    %c0_i32 = arith.constant 0 : i32
    %c0_i32_0 = arith.constant 0 : i32
    %c0_i32_1 = arith.constant 0 : i32
    %c0_i32_2 = arith.constant 0 : i32
    return %c0_i32, %c0_i32_0, %c0_i32_1 : i32, i32, i32
  }
  func.func @transform_3(%arg0: i32) -> (i32, i32) {
    %c0_i32 = arith.constant 0 : i32
    %c0_i32_0 = arith.constant 0 : i32
    %c0_i32_1 = arith.constant 0 : i32
    return %c0_i32, %c0_i32_0 : i32, i32
  }
  func.func @transform_4(%arg0: i32) -> (i32, i32) {
    %c0_i32 = arith.constant 0 : i32
    %c0_i32_0 = arith.constant 0 : i32
    %c0_i32_1 = arith.constant 0 : i32
    return %c0_i32, %c0_i32_0 : i32, i32
  }
  func.func @transform_5(%arg0: i32) -> (i32, i32) {
    %c0_i32 = arith.constant 0 : i32
    %c0_i32_0 = arith.constant 0 : i32
    %c0_i32_1 = arith.constant 0 : i32
    return %c0_i32, %c0_i32_0 : i32, i32
  }
  func.func @transform_6(%arg0: i32) -> (i32, i32) {
    %c0_i32 = arith.constant 0 : i32
    %c0_i32_0 = arith.constant 0 : i32
    %c0_i32_1 = arith.constant 0 : i32
    return %c0_i32, %c0_i32_0 : i32, i32
  }
  func.func @transform_7(%arg0: i32) -> (i32, i32) {
    %c0_i32 = arith.constant 0 : i32
    %c0_i32_0 = arith.constant 0 : i32
    return %arg0, %c0_i32 : i32, i32
  }
}

module attributes {stable_mosaic.version = 11 : i64} {
  func.func @_upsample_w_kernel(%arg0: i32, %arg1: memref<1x4x4x128xf32, #tpu.memory_space<vmem>>, %arg2: memref<16x4xbf16, #tpu.memory_space<vmem>>, %arg3: memref<1x4x16x128xbf16, #tpu.memory_space<vmem>>) attributes {dimension_semantics = [#tpu.dimension_semantics<parallel>], iteration_bounds = array<i64: 2>, scalar_prefetch = 0 : i64, scratch_operands = 0 : i64, tpu.core_type = #tpu.core_type<tc>, window_params = [{transform_indices = @transform_0, window_bounds = array<i64: 1, 4, 4, 128>}, {pipeline_mode = #tpu.pipeline_mode<synchronous>, transform_indices = @transform_1, window_bounds = array<i64: 16, 4>}, {transform_indices = @transform_2, window_bounds = array<i64: 1, 4, 16, 128>}]} {
    %c0 = arith.constant 0 : index
    %c0_0 = arith.constant 0 : index
    %c0_1 = arith.constant 0 : index
    %c0_2 = arith.constant 0 : index
    %0 = vector.load %arg1[%c0, %c0_0, %c0_1, %c0_2] : memref<1x4x4x128xf32, #tpu.memory_space<vmem>>, vector<1x4x4x128xf32>
    %1 = vector.shape_cast %0 : vector<1x4x4x128xf32> to vector<4x4x128xf32>
    %2 = arith.truncf %1 : vector<4x4x128xf32> to vector<4x4x128xbf16>
    %c0_3 = arith.constant 0 : index
    %c0_4 = arith.constant 0 : index
    %3 = vector.load %arg2[%c0_3, %c0_4] : memref<16x4xbf16, #tpu.memory_space<vmem>>, vector<16x4xbf16>
    %4 = vector.shape_cast %3 : vector<16x4xbf16> to vector<1x16x4xbf16>
    %5 = vector.shape_cast %4 : vector<1x16x4xbf16> to vector<1x16x4xbf16>
    %6 = vector.broadcast %5 : vector<1x16x4xbf16> to vector<4x16x4xbf16>
    "tpu.trace_start"() <{level = 10 : i32, message = "rws,rsc->rwc"}> : () -> ()
    %cst = arith.constant dense<0.000000e+00> : vector<4x16x128xf32>
    %7 = tpu.matmul %6, %2, %cst {dimension_numbers = #tpu.dot_dimension_numbers<[2], [1], [1], [2], [0, 0, 0, 1, 1, 2], [0], [0]>} : vector<4x16x4xbf16>, vector<4x4x128xbf16>, vector<4x16x128xf32> -> vector<4x16x128xf32>
    "tpu.trace_stop"() : () -> ()
    %8 = arith.truncf %7 : vector<4x16x128xf32> to vector<4x16x128xbf16>
    %c0_5 = arith.constant 0 : index
    %c0_6 = arith.constant 0 : index
    %c0_7 = arith.constant 0 : index
    %c0_8 = arith.constant 0 : index
    %9 = vector.load %arg3[%c0_5, %c0_6, %c0_7, %c0_8] : memref<1x4x16x128xbf16, #tpu.memory_space<vmem>>, vector<1x4x16x128xbf16>
    %10 = vector.shape_cast %9 : vector<1x4x16x128xbf16> to vector<4x16x128xbf16>
    %11 = vector.shape_cast %8 : vector<4x16x128xbf16> to vector<1x4x16x128xbf16>
    tpu.vector_store %arg3[%c0_5, %c0_6, %c0_7, %c0_8], %11 {strides = array<i32>} : memref<1x4x16x128xbf16, #tpu.memory_space<vmem>>, vector<1x4x16x128xbf16>,
    return
  }
  func.func @transform_0(%arg0: i32) -> (i32, i32, i32, i32) {
    %c0_i32 = arith.constant 0 : i32
    %c0_i32_0 = arith.constant 0 : i32
    %c0_i32_1 = arith.constant 0 : i32
    %c0_i32_2 = arith.constant 0 : i32
    return %arg0, %c0_i32, %c0_i32_0, %c0_i32_1 : i32, i32, i32, i32
  }
  func.func @transform_1(%arg0: i32) -> (i32, i32) {
    %c0_i32 = arith.constant 0 : i32
    %c0_i32_0 = arith.constant 0 : i32
    %c0_i32_1 = arith.constant 0 : i32
    return %c0_i32, %c0_i32_0 : i32, i32
  }
  func.func @transform_2(%arg0: i32) -> (i32, i32, i32, i32) {
    %c0_i32 = arith.constant 0 : i32
    %c0_i32_0 = arith.constant 0 : i32
    %c0_i32_1 = arith.constant 0 : i32
    %c0_i32_2 = arith.constant 0 : i32
    return %arg0, %c0_i32, %c0_i32_0, %c0_i32_1 : i32, i32, i32, i32
  }
}

module attributes {stable_mosaic.version = 11 : i64} {
  func.func @_upsample_h_kernel(%arg0: i32, %arg1: i32, %arg2: memref<1x4x2048xbf16, #tpu.memory_space<vmem>>, %arg3: memref<16x4xbf16, #tpu.memory_space<vmem>>, %arg4: memref<1x16x2048xf32, #tpu.memory_space<vmem>>) attributes {dimension_semantics = [#tpu.dimension_semantics<parallel>, #tpu.dimension_semantics<parallel>], iteration_bounds = array<i64: 2, 1>, scalar_prefetch = 0 : i64, scratch_operands = 0 : i64, tpu.core_type = #tpu.core_type<tc>, window_params = [{transform_indices = @transform_0, window_bounds = array<i64: 1, 4, 2048>}, {transform_indices = @transform_1, window_bounds = array<i64: 16, 4>}, {transform_indices = @transform_2, window_bounds = array<i64: 1, 16, 2048>}]} {
    %c0 = arith.constant 0 : index
    %c0_0 = arith.constant 0 : index
    %0 = vector.load %arg3[%c0, %c0_0] : memref<16x4xbf16, #tpu.memory_space<vmem>>, vector<16x4xbf16>
    %c0_1 = arith.constant 0 : index
    %c0_2 = arith.constant 0 : index
    %c0_3 = arith.constant 0 : index
    %1 = vector.load %arg2[%c0_1, %c0_2, %c0_3] : memref<1x4x2048xbf16, #tpu.memory_space<vmem>>, vector<1x4x2048xbf16>
    %2 = vector.shape_cast %1 : vector<1x4x2048xbf16> to vector<4x2048xbf16>
    %cst = arith.constant dense<0.000000e+00> : vector<16x2048xf32>
    %3 = tpu.matmul %0, %2, %cst {dimension_numbers = #tpu.dot_dimension_numbers<[1], [0], [0], [1], [0, 0, 1, 1], [], []>} : vector<16x4xbf16>, vector<4x2048xbf16>, vector<16x2048xf32> -> vector<16x2048xf32>
    %c0_4 = arith.constant 0 : index
    %c0_5 = arith.constant 0 : index
    %c0_6 = arith.constant 0 : index
    %4 = vector.load %arg4[%c0_4, %c0_5, %c0_6] : memref<1x16x2048xf32, #tpu.memory_space<vmem>>, vector<1x16x2048xf32>
    %5 = vector.shape_cast %4 : vector<1x16x2048xf32> to vector<16x2048xf32>
    %6 = vector.shape_cast %3 : vector<16x2048xf32> to vector<1x16x2048xf32>
    tpu.vector_store %arg4[%c0_4, %c0_5, %c0_6], %6 {strides = array<i32>} : memref<1x16x2048xf32, #tpu.memory_space<vmem>>, vector<1x16x2048xf32>,
    return
  }
  func.func @transform_0(%arg0: i32, %arg1: i32) -> (i32, i32, i32) {
    %c0_i32 = arith.constant 0 : i32
    %c0_i32_0 = arith.constant 0 : i32
    %c0_i32_1 = arith.constant 0 : i32
    return %arg0, %c0_i32, %c0_i32_0 : i32, i32, i32
  }
  func.func @transform_1(%arg0: i32, %arg1: i32) -> (i32, i32) {
    %c0_i32 = arith.constant 0 : i32
    %c0_i32_0 = arith.constant 0 : i32
    return %arg1, %c0_i32 : i32, i32
  }
  func.func @transform_2(%arg0: i32, %arg1: i32) -> (i32, i32, i32) {
    %c0_i32 = arith.constant 0 : i32
    %c0_i32_0 = arith.constant 0 : i32
    return %arg0, %arg1, %c0_i32 : i32, i32, i32
  }
}

</mosaic_0001>

<llo_original>
// kernel: setr_forward.14
$region0: #{setr_forward.14}
  #allocation0 [shape = 'u32[]', space=smem, size = 0x4, offset = 0x4, fixed_abs, tag = 'smem constant byte address 0x4 - core index']
  #allocation1 [shape = 'u32[144,128]{1,0:T(1,128)}', space=vmem, size = 0x12000, scoped, tag = 'internal scratch']
  %s0 = inlined_call_operand.hbm [shape: f32[32,32], index: 0, kind: input, shape index: {}]
  %s1 = inlined_call_operand.hbm [shape: f32[1,32], index: 1, kind: input, shape index: {}]
  %s2 = inlined_call_operand.hbm [shape: f32[1,32], index: 2, kind: input, shape index: {}]
  %s3 = inlined_call_operand.hbm [shape: bf16[32,32], index: 3, kind: input, shape index: {}]
  %s4 = inlined_call_operand.hbm [shape: f32[1,32], index: 4, kind: input, shape index: {}]
  %s5 = inlined_call_operand.hbm [shape: bf16[32,32], index: 5, kind: input, shape index: {}]
  %s6 = inlined_call_operand.hbm [shape: f32[1,32], index: 6, kind: input, shape index: {}]
  %s7 = inlined_call_operand.hbm [shape: f32[32,32], index: 7, kind: output, shape index: {}]
  %s8 = sld [smem:[#allocation0]]
  $region66: #{setr_forward.14} parent=0
    _
  %s10 = ssub.s32 1, %s8
  %s11 = scalar_select 0, %s10, %s8
  $region1: #{setr_forward.14} parent=0
    #allocation2 [shape = 'u8[16384]{0}', space=vmem, size = 0x4000, scoped, tag = 'input window, operand 0, single buffered']
    #allocation3 [shape = 's32[1]{0}', space=sflag, size = 0x4, scoped, tag = 'scoped memory for setr_forward.14']
    #allocation4 [shape = 's32[1]{0}', space=sflag, size = 0x4, scoped, tag = 'scoped memory for setr_forward.14']
    #allocation5 [shape = 'u8[512]{0}', space=vmem, size = 0x400, scoped, tag = 'input window, operand 1, single buffered']
    #allocation6 [shape = 's32[1]{0}', space=sflag, size = 0x4, scoped, tag = 'scoped memory for setr_forward.14']
    #allocation7 [shape = 'u8[512]{0}', space=vmem, size = 0x400, scoped, tag = 'input window, operand 2, single buffered']
    #allocation8 [shape = 'u8[8192]{0}', space=vmem, size = 0x2000, scoped, tag = 'input window, operand 3, single buffered']
    #allocation9 [shape = 's32[1]{0}', space=sflag, size = 0x4, scoped, tag = 'scoped memory for setr_forward.14']
    #allocation10 [shape = 'u8[512]{0}', space=vmem, size = 0x400, scoped, tag = 'input window, operand 4, single buffered']
    #allocation11 [shape = 'u8[8192]{0}', space=vmem, size = 0x2000, scoped, tag = 'input window, operand 5, single buffered']
    #allocation12 [shape = 's32[1]{0}', space=sflag, size = 0x4, scoped, tag = 'scoped memory for setr_forward.14']
    #allocation13 [shape = 'u8[512]{0}', space=vmem, size = 0x400, scoped, tag = 'input window, operand 6, single buffered']
    #allocation14 [shape = 'u8[16384]{0}', space=vmem, size = 0x4000, scoped, tag = 'output window, operand 0, single buffered']
    %12 = vsyncpa [#allocation3], 0
    %13 = vsyncpa [#allocation6], 0
    %14 = vsyncpa [#allocation9], 0
    %15 = vsyncpa [#allocation12], 0
    %16 = vsyncpa [#allocation4], 0
    // Predicated region
    $region2: #{setr_forward.14} parent=1 // pred_check
      _
    $region3: #{setr_forward.14} parent=1 // pred_check_branch
      %18 = sbr.rel (0) target = $region5
    $region4: #{setr_forward.14} parent=1 // pred_region
      %s20 = ssub.s32 512, 512
      %21 = vsyncadd [#allocation3], %s20
      %s22 = sshll.u32 [#allocation2], 4
      %s23 = int_to_ptr.vmem [resolvable:$true] %s22
      %28 = dma.hbm_to_vmem [thread:$0]  %s0, 512, %s23, [#allocation3], 128, 128, 8
    $region5: #{setr_forward.14} parent=1 // pred_fallthru
      _
    // Predicated region
    $region6: #{setr_forward.14} parent=1 // pred_check
      _
    $region7: #{setr_forward.14} parent=1 // pred_check_branch
      %30 = sbr.rel (0) target = $region9
    $region8: #{setr_forward.14} parent=1 // pred_region
      %s32 = ssub.s32 16, 16
      %33 = vsyncadd [#allocation6], %s32
      %s35 = sshll.u32 [#allocation5], 4
      %s36 = int_to_ptr.vmem [resolvable:$true] %s35
      %38 = dma.hbm_to_vmem [thread:$0]  %s1, 16, %s36, [#allocation6]
    $region9: #{setr_forward.14} parent=1 // pred_fallthru
      _
    // Predicated region
    $region10: #{setr_forward.14} parent=1 // pred_check
      _
    $region11: #{setr_forward.14} parent=1 // pred_check_branch
      %40 = sbr.rel (0) target = $region13
    $region12: #{setr_forward.14} parent=1 // pred_region
      %s42 = ssub.s32 16, 16
      %43 = vsyncadd [#allocation6], %s42
      %s45 = sshll.u32 [#allocation7], 4
      %s46 = int_to_ptr.vmem [resolvable:$true] %s45
      %48 = dma.hbm_to_vmem [thread:$0]  %s2, 16, %s46, [#allocation6]
    $region13: #{setr_forward.14} parent=1 // pred_fallthru
      _
    // Predicated region
    $region14: #{setr_forward.14} parent=1 // pred_check
      _
    $region15: #{setr_forward.14} parent=1 // pred_check_branch
      %50 = sbr.rel (0) target = $region17
    $region16: #{setr_forward.14} parent=1 // pred_region
      %s52 = ssub.s32 256, 256
      %53 = vsyncadd [#allocation9], %s52
      %s54 = sshll.u32 [#allocation8], 4
      %s55 = int_to_ptr.vmem [resolvable:$true] %s54
      %60 = dma.hbm_to_vmem [thread:$0]  %s3, 256, %s55, [#allocation9], 64, 64, 4
    $region17: #{setr_forward.14} parent=1 // pred_fallthru
      _
    // Predicated region
    $region18: #{setr_forward.14} parent=1 // pred_check
      _
    $region19: #{setr_forward.14} parent=1 // pred_check_branch
      %62 = sbr.rel (0) target = $region21
    $region20: #{setr_forward.14} parent=1 // pred_region
      %s64 = ssub.s32 16, 16
      %65 = vsyncadd [#allocation9], %s64
      %s67 = sshll.u32 [#allocation10], 4
      %s68 = int_to_ptr.vmem [resolvable:$true] %s67
      %70 = dma.hbm_to_vmem [thread:$0]  %s4, 16, %s68, [#allocation9]
    $region21: #{setr_forward.14} parent=1 // pred_fallthru
      _
    // Predicated region
    $region22: #{setr_forward.14} parent=1 // pred_check
      _
    $region23: #{setr_forward.14} parent=1 // pred_check_branch
      %72 = sbr.rel (0) target = $region25
    $region24: #{setr_forward.14} parent=1 // pred_region
      %s74 = ssub.s32 256, 256
      %75 = vsyncadd [#allocation12], %s74
      %s76 = sshll.u32 [#allocation11], 4
      %s77 = int_to_ptr.vmem [resolvable:$true] %s76
      %82 = dma.hbm_to_vmem [thread:$0]  %s5, 256, %s77, [#allocation12], 64, 64, 4
    $region25: #{setr_forward.14} parent=1 // pred_fallthru
      _
    // Predicated region
    $region26: #{setr_forward.14} parent=1 // pred_check
      _
    $region27: #{setr_forward.14} parent=1 // pred_check_branch
      %84 = sbr.rel (0) target = $region29
    $region28: #{setr_forward.14} parent=1 // pred_region
      %s86 = ssub.s32 16, 16
      %87 = vsyncadd [#allocation12], %s86
      %s89 = sshll.u32 [#allocation13], 4
      %s90 = int_to_ptr.vmem [resolvable:$true] %s89
      %92 = dma.hbm_to_vmem [thread:$0]  %s6, 16, %s90, [#allocation12]
    $region29: #{setr_forward.14} parent=1 // pred_fallthru
      _
    // Predicated region
    $region30: #{setr_forward.14} parent=1 // pred_check
      _
    $region31: #{setr_forward.14} parent=1 // pred_check_branch
      %94 = sbr.rel (0) target = $region33
    $region32: #{setr_forward.14} parent=1 // pred_region
      %95 = dma.done [#allocation3], 512
    $region33: #{setr_forward.14} parent=1 // pred_fallthru
      _
    // Predicated region
    $region34: #{setr_forward.14} parent=1 // pred_check
      _
    $region35: #{setr_forward.14} parent=1 // pred_check_branch
      %97 = sbr.rel (0) target = $region37
    $region36: #{setr_forward.14} parent=1 // pred_region
      %98 = dma.done [#allocation6], 16
    $region37: #{setr_forward.14} parent=1 // pred_fallthru
      _
    // Predicated region
    $region38: #{setr_forward.14} parent=1 // pred_check
      _
    $region39: #{setr_forward.14} parent=1 // pred_check_branch
      %100 = sbr.rel (0) target = $region41
    $region40: #{setr_forward.14} parent=1 // pred_region
      %101 = dma.done [#allocation6], 16
    $region41: #{setr_forward.14} parent=1 // pred_fallthru
      _
    // Predicated region
    $region42: #{setr_forward.14} parent=1 // pred_check
      _
    $region43: #{setr_forward.14} parent=1 // pred_check_branch
      %103 = sbr.rel (0) target = $region45
    $region44: #{setr_forward.14} parent=1 // pred_region
      %104 = dma.done [#allocation9], 256
    $region45: #{setr_forward.14} parent=1 // pred_fallthru
      _
    // Predicated region
    $region46: #{setr_forward.14} parent=1 // pred_check
      _
    $region47: #{setr_forward.14} parent=1 // pred_check_branch
      %106 = sbr.rel (0) target = $region49
    $region48: #{setr_forward.14} parent=1 // pred_region
      %107 = dma.done [#allocation9], 16
    $region49: #{setr_forward.14} parent=1 // pred_fallthru
      _
    // Predicated region
    $region50: #{setr_forward.14} parent=1 // pred_check
      _
    $region51: #{setr_forward.14} parent=1 // pred_check_branch
      %109 = sbr.rel (0) target = $region53
    $region52: #{setr_forward.14} parent=1 // pred_region
      %110 = dma.done [#allocation12], 256
    $region53: #{setr_forward.14} parent=1 // pred_fallthru
      _
    // Predicated region
    $region54: #{setr_forward.14} parent=1 // pred_check
      _
    $region55: #{setr_forward.14} parent=1 // pred_check_branch
      %112 = sbr.rel (0) target = $region57
    $region56: #{setr_forward.14} parent=1 // pred_region
      %113 = dma.done [#allocation12], 16
    $region57: #{setr_forward.14} parent=1 // pred_fallthru
      _
    %v115 = vld [vmem:[#allocation2] sm:$0xff]
    %v116 = vld [vmem:[#allocation2 + $0x8] sm:$0xff]
    %v117 = vld [vmem:[#allocation2 + $0x10] sm:$0xff]
    %v118 = vld [vmem:[#allocation2 + $0x18] sm:$0xff]
    %vm119 = vcmask 261120
    %v120 = vsel %vm119, %v115, 0.0
    %121 = vadd.xlane.f32.xlu0 %v120
    %v122 = vpop.xlane.xlu0 %121
    %v123 = vsel %vm119, %v116, 0.0
    %124 = vadd.xlane.f32.xlu0 %v123
    %v125 = vpop.xlane.xlu0 %124
    %v126 = vsel %vm119, %v117, 0.0
    %127 = vadd.xlane.f32.xlu0 %v126
    %v128 = vpop.xlane.xlu0 %127
    %v129 = vsel %vm119, %v118, 0.0
    %130 = vadd.xlane.f32.xlu0 %v129
    %v131 = vpop.xlane.xlu0 %130
    %v132 = vrcp.pop 32.0
    %v133 = vmul.f32 %v122, %v132
    %v134 = vmul.f32 %v125, %v132
    %v135 = vmul.f32 %v128, %v132
    %v136 = vmul.f32 %v131, %v132
    %v137 = vsub.f32 %v115, %v133
    %v138 = vsub.f32 %v116, %v134
    %v139 = vsub.f32 %v117, %v135
    %v140 = vsub.f32 %v118, %v136
    %v141 = vmul.f32 %v137, %v137
    %v142 = vmul.f32 %v138, %v138
    %v143 = vmul.f32 %v139, %v139
    %v144 = vmul.f32 %v140, %v140
    %v145 = vsel %vm119, %v141, 0.0
    %146 = vadd.xlane.f32.xlu0 %v145
    %v147 = vpop.xlane.xlu0 %146
    %v148 = vsel %vm119, %v142, 0.0
    %149 = vadd.xlane.f32.xlu0 %v148
    %v150 = vpop.xlane.xlu0 %149
    %v151 = vsel %vm119, %v143, 0.0
    %152 = vadd.xlane.f32.xlu0 %v151
    %v153 = vpop.xlane.xlu0 %152
    %v154 = vsel %vm119, %v144, 0.0
    %155 = vadd.xlane.f32.xlu0 %v154
    %v156 = vpop.xlane.xlu0 %155
    %v157 = vmul.f32 %v147, %v132
    %v158 = vmul.f32 %v150, %v132
    %v159 = vmul.f32 %v153, %v132
    %v160 = vmul.f32 %v156, %v132
    %v161 = vadd.f32 %v157, 1e-05
    %v162 = vadd.f32 %v158, 1e-05
    %v163 = vadd.f32 %v159, 1e-05
    %v164 = vadd.f32 %v160, 1e-05
    %v165 = vrsqrt.pop %v161
    %v166 = vrsqrt.pop %v162
    %v167 = vrsqrt.pop %v163
    %v168 = vrsqrt.pop %v164
    %v169 = vmul.f32 %v137, %v165
    %v170 = vmul.f32 %v138, %v166
    %v171 = vmul.f32 %v139, %v167
    %v172 = vmul.f32 %v140, %v168
    %v173 = vld [vmem:[#allocation5] sm:$0x1]
    %v175 = vlaneseq
    %v176 = vshrl.u32 %v175, 7
    %v177 = vsub.s32 0, %v176
    %v178 = vrot.slane %v173, %v177
    %v180 = vmul.f32 %v169, %v178
    %v181 = vmul.f32 %v170, %v178
    %v182 = vmul.f32 %v171, %v178
    %v183 = vmul.f32 %v172, %v178
    %v184 = vld [vmem:[#allocation7] sm:$0x1]
    %v186 = vlaneseq
    %v187 = vshrl.u32 %v186, 7
    %v188 = vsub.s32 0, %v187
    %v189 = vrot.slane %v184, %v188
    %v191 = vadd.f32 %v180, %v189
    %v192 = vadd.f32 %v181, %v189
    %v193 = vadd.f32 %v182, %v189
    %v194 = vadd.f32 %v183, %v189
    %v195 = vpack.c.bf16 %v192, %v191
    %v196 = vpack.c.bf16 %v194, %v193
    %v197 = vld [vmem:[#allocation8] sm:$0xf]
    %v198 = vld [vmem:[#allocation8 + $0x4] sm:$0xf]
    %v199 = vld [vmem:[#allocation8 + $0x8] sm:$0xf]
    %v200 = vld [vmem:[#allocation8 + $0xc] sm:$0xf]
    %v201 = vld [vmem:[#allocation10] sm:$0x1]
    %v203 = vlaneseq
    %v204 = vshrl.u32 %v203, 7
    %v205 = vsub.s32 0, %v204
    %v206 = vrot.slane %v201, %v205
    %v212 = vunpack.c.l.b16 %v197
    %v213 = vunpack.c.l.b16 %v198
    %v214 = vunpack.c.l.b16 %v199
    %v215 = vunpack.c.l.b16 %v200
    %v216 = vpack.c.b16 %v213, %v212
    %v217 = vpack.c.b16 %v215, %v214
    %v221 = vsel %vm119, %v195, 0
    %v224 = vsel %vm119, %v196, 0
    %226 = vmatprep.subr.bf16.mxu0 0
    %227 = vmatpush1.bf16.msra.mxu0 %v216
    %228 = vmatprep.subr.bf16.mxu0 0
    %229 = vmatpush1.bf16.msra.mxu0 %v217
    %230 = vmatprep.subr.bf16.mxu0 0
    %231 = vmatpush1.bf16.msra.mxu0 0
    %232 = vmatprep.subr.bf16.mxu0 0
    %233 = vmatpush1.bf16.msra.mxu0 0
    %234 = vmatprep.subr.bf16.mxu0 0
    %235 = vmatpush1.bf16.msra.mxu0 0
    %236 = vmatprep.subr.bf16.mxu0 0
    %237 = vmatpush1.bf16.msra.mxu0 0
    %238 = vmatprep.subr.bf16.mxu0 0
    %239 = vmatpush1.bf16.msra.mxu0 0
    %240 = vmatprep.subr.bf16.mxu0 0
    %241 = vmatpush1.bf16.msra.mxu0 0
    %242 = vmatprep.subr.bf16.mxu0 0
    %243 = vmatpush1.bf16.msra.mxu0 0
    %244 = vmatprep.subr.bf16.mxu0 0
    %245 = vmatpush1.bf16.msra.mxu0 0
    %246 = vmatprep.subr.bf16.mxu0 0
    %247 = vmatpush1.bf16.msra.mxu0 0
    %248 = vmatprep.subr.bf16.mxu0 0
    %249 = vmatpush1.bf16.msra.mxu0 0
    %250 = vmatprep.subr.bf16.mxu0 0
    %251 = vmatpush1.bf16.msra.mxu0 0
    %252 = vmatprep.subr.bf16.mxu0 0
    %253 = vmatpush1.bf16.msra.mxu0 0
    %254 = vmatprep.subr.bf16.mxu0 0
    %255 = vmatpush1.bf16.msra.mxu0 0
    %256 = vmatprep.subr.bf16.mxu0 0
    %257 = vmatpush1.bf16.msra.mxu0 0
    %258 = vmatprep.mubr.bf16.mxu0 0
    %259 = vmatmul.mubr.bf16.gmra.mrb[0].mxu0 %v221
    %v260 = vpop.f32.mrb[0].mxu0
    %v261 = vadd.f32 %v206, %v260
    %v262 = vpop.f32.mrb[0].mxu0
    %v263 = vpop.f32.mrb[0].mxu0
    %v264 = vadd.f32 %v206, %v263
    %v265 = vpop.f32.mrb[0].mxu0
    %266 = vmatprep.mubr.bf16.mxu0 0
    %267 = vmatmul.mubr.bf16.gmra.mrb[0].mxu0 %v224
    %v268 = vpop.f32.mrb[0].mxu0
    %v269 = vadd.f32 %v206, %v268
    %v270 = vpop.f32.mrb[0].mxu0
    %v271 = vpop.f32.mrb[0].mxu0
    %v272 = vadd.f32 %v206, %v271
    %v273 = vpop.f32.mrb[0].mxu0
    %274 = vdwg.mxu0
    %v275 = vmul.f32 %v261, 0.5
    %v276 = vmul.f32 %v264, 0.5
    %v277 = vmul.f32 %v269, 0.5
    %v278 = vmul.f32 %v272, 0.5
    %v279 = vmul.f32 %v261, 0.70710677
    %v280 = vmul.f32 %v264, 0.70710677
    %v281 = vmul.f32 %v269, 0.70710677
    %v282 = vmul.f32 %v272, 0.70710677
    %v283 = verf.f32.pop %v279
    %v284 = verf.f32.pop %v280
    %v285 = verf.f32.pop %v281
    %v286 = verf.f32.pop %v282
    %v287 = vadd.f32 %v283, 1.0
    %v288 = vadd.f32 %v284, 1.0
    %v289 = vadd.f32 %v285, 1.0
    %v290 = vadd.f32 %v286, 1.0
    %v291 = vmul.f32 %v275, %v287
    %v292 = vmul.f32 %v276, %v288
    %v293 = vmul.f32 %v277, %v289
    %v294 = vmul.f32 %v278, %v290
    %v295 = vpack.c.bf16 %v292, %v291
    %v296 = vpack.c.bf16 %v294, %v293
    %v297 = vld [vmem:[#allocation11] sm:$0xf]
    %v298 = vld [vmem:[#allocation11 + $0x4] sm:$0xf]
    %v299 = vld [vmem:[#allocation11 + $0x8] sm:$0xf]
    %v300 = vld [vmem:[#allocation11 + $0xc] sm:$0xf]
    %v301 = vld [vmem:[#allocation13] sm:$0x1]
    %v303 = vlaneseq
    %v304 = vshrl.u32 %v303, 7
    %v305 = vsub.s32 0, %v304
    %v306 = vrot.slane %v301, %v305
    %v312 = vunpack.c.l.b16 %v297
    %v313 = vunpack.c.l.b16 %v298
    %v314 = vunpack.c.l.b16 %v299
    %v315 = vunpack.c.l.b16 %v300
    %v316 = vpack.c.b16 %v313, %v312
    %v317 = vpack.c.b16 %v315, %v314
    %v321 = vsel %vm119, %v295, 0
    %v324 = vsel %vm119, %v296, 0
    %326 = vmatprep.subr.bf16.mxu0 0
    %327 = vmatpush1.bf16.msra.mxu0 %v316
    %328 = vmatprep.subr.bf16.mxu0 0
    %329 = vmatpush1.bf16.msra.mxu0 %v317
    %330 = vmatprep.subr.bf16.mxu0 0
    %331 = vmatpush1.bf16.msra.mxu0 0
    %332 = vmatprep.subr.bf16.mxu0 0
    %333 = vmatpush1.bf16.msra.mxu0 0
    %334 = vmatprep.subr.bf16.mxu0 0
    %335 = vmatpush1.bf16.msra.mxu0 0
    %336 = vmatprep.subr.bf16.mxu0 0
    %337 = vmatpush1.bf16.msra.mxu0 0
    %338 = vmatprep.subr.bf16.mxu0 0
    %339 = vmatpush1.bf16.msra.mxu0 0
    %340 = vmatprep.subr.bf16.mxu0 0
    %341 = vmatpush1.bf16.msra.mxu0 0
    %342 = vmatprep.subr.bf16.mxu0 0
    %343 = vmatpush1.bf16.msra.mxu0 0
    %344 = vmatprep.subr.bf16.mxu0 0
    %345 = vmatpush1.bf16.msra.mxu0 0
    %346 = vmatprep.subr.bf16.mxu0 0
    %347 = vmatpush1.bf16.msra.mxu0 0
    %348 = vmatprep.subr.bf16.mxu0 0
    %349 = vmatpush1.bf16.msra.mxu0 0
    %350 = vmatprep.subr.bf16.mxu0 0
    %351 = vmatpush1.bf16.msra.mxu0 0
    %352 = vmatprep.subr.bf16.mxu0 0
    %353 = vmatpush1.bf16.msra.mxu0 0
    %354 = vmatprep.subr.bf16.mxu0 0
    %355 = vmatpush1.bf16.msra.mxu0 0
    %356 = vmatprep.subr.bf16.mxu0 0
    %357 = vmatpush1.bf16.msra.mxu0 0
    %358 = vmatprep.mubr.bf16.mxu0 0
    %359 = vmatmul.mubr.bf16.gmra.mrb[0].mxu0 %v321
    %v360 = vpop.f32.mrb[0].mxu0
    %v361 = vadd.f32 %v306, %v360
    %v362 = vpop.f32.mrb[0].mxu0
    %v363 = vpop.f32.mrb[0].mxu0
    %v364 = vadd.f32 %v306, %v363
    %v365 = vpop.f32.mrb[0].mxu0
    %366 = vmatprep.mubr.bf16.mxu0 0
    %367 = vmatmul.mubr.bf16.gmra.mrb[0].mxu0 %v324
    %v368 = vpop.f32.mrb[0].mxu0
    %v369 = vadd.f32 %v306, %v368
    %v370 = vpop.f32.mrb[0].mxu0
    %v371 = vpop.f32.mrb[0].mxu0
    %v372 = vadd.f32 %v306, %v371
    %v373 = vpop.f32.mrb[0].mxu0
    %374 = vdwg.mxu0
    %v375 = vadd.f32 %v361, %v115
    %v376 = vadd.f32 %v364, %v116
    %v377 = vadd.f32 %v369, %v117
    %v378 = vadd.f32 %v372, %v118
    %379 = vst.msk [vmem:[#allocation14] sm:$0xff] %vm119, %v375
    %380 = vst.msk [vmem:[#allocation14 + $0x8] sm:$0xff] %vm119, %v376
    %381 = vst.msk [vmem:[#allocation14 + $0x10] sm:$0xff] %vm119, %v377
    %382 = vst.msk [vmem:[#allocation14 + $0x18] sm:$0xff] %vm119, %v378
    // Predicated region
    $region58: #{setr_forward.14} parent=1 // pred_check
      _
    $region59: #{setr_forward.14} parent=1 // pred_check_branch
      %384 = sbr.rel (0) target = $region61
    $region60: #{setr_forward.14} parent=1 // pred_region
      %s386 = ssub.s32 512, 512
      %387 = vsyncadd [#allocation4], %s386
      %s388 = sshll.u32 [#allocation14], 4
      %s389 = int_to_ptr.vmem [resolvable:$true] %s388
      %394 = dma.vmem_to_hbm [thread:$0]  %s389, 512, %s7, [#allocation4], 128, 128, 8
    $region61: #{setr_forward.14} parent=1 // pred_fallthru
      _
    // Predicated region
    $region62: #{setr_forward.14} parent=1 // pred_check
      _
    $region63: #{setr_forward.14} parent=1 // pred_check_branch
      %396 = sbr.rel (0) target = $region65
    $region64: #{setr_forward.14} parent=1 // pred_region
      %397 = dma.done [#allocation4], 512
    $region65: #{setr_forward.14} parent=1 // pred_fallthru
      _
    %398 = vsyncpa [#allocation3], 1
    %399 = vsyncpa [#allocation6], 1
    %400 = vsyncpa [#allocation9], 1
    %401 = vsyncpa [#allocation12], 1
    %402 = vsyncpa [#allocation4], 1

// kernel: setr_forward.12
$region0: #{setr_forward.12}
  #allocation0 [shape = 'u32[]', space=smem, size = 0x4, offset = 0x4, fixed_abs, tag = 'smem constant byte address 0x4 - core index']
  #allocation1 [shape = 'u32[144,128]{1,0:T(1,128)}', space=vmem, size = 0x12000, scoped, tag = 'internal scratch']
  %s0 = inlined_call_operand.hbm [shape: f32[2,16,32], index: 0, kind: input, shape index: {}]
  %s1 = inlined_call_operand.hbm [shape: f32[1,32], index: 1, kind: input, shape index: {}]
  %s2 = inlined_call_operand.hbm [shape: f32[1,32], index: 2, kind: input, shape index: {}]
  %s3 = inlined_call_operand.hbm [shape: bf16[32,96], index: 3, kind: input, shape index: {}]
  %s4 = inlined_call_operand.hbm [shape: bf16[2,2,16,16], index: 4, kind: output, shape index: {0}]
  %s5 = inlined_call_operand.hbm [shape: bf16[2,2,16,16], index: 5, kind: output, shape index: {1}]
  %s6 = inlined_call_operand.hbm [shape: bf16[2,2,16,16], index: 6, kind: output, shape index: {2}]
  %7 = xla_tuple %s4, %s5, %s6
  %s8 = sld [smem:[#allocation0]]
  $region81: #{setr_forward.12} parent=0
    _
  %s10 = ssub.s32 1, %s8
  %s11 = scalar_select 0, %s10, %s8
  $region1: #{setr_forward.12} parent=0
    #allocation2 [shape = 'u8[16384]{0}', space=vmem, size = 0x4000, scoped, tag = 'input window, operand 0']
    #allocation3 [shape = 's32[2]{0}', space=sflag, size = 0x8, scoped, tag = 'scoped memory for setr_forward.12']
    #allocation4 [shape = 's32[2]{0}', space=sflag, size = 0x8, scoped, tag = 'scoped memory for setr_forward.12']
    #allocation5 [shape = 'u8[512]{0}', space=vmem, size = 0x400, scoped, tag = 'input window, operand 1, single buffered']
    #allocation6 [shape = 's32[1]{0}', space=sflag, size = 0x4, scoped, tag = 'scoped memory for setr_forward.12']
    #allocation7 [shape = 'u8[512]{0}', space=vmem, size = 0x400, scoped, tag = 'input window, operand 2, single buffered']
    #allocation8 [shape = 'u8[8192]{0}', space=vmem, size = 0x2000, scoped, tag = 'input window, operand 3, single buffered']
    #allocation9 [shape = 's32[1]{0}', space=sflag, size = 0x4, scoped, tag = 'scoped memory for setr_forward.12']
    #allocation10 [shape = 'u8[16384]{0}', space=vmem, size = 0x4000, scoped, tag = 'output window, operand 0']
    #allocation11 [shape = 'u8[16384]{0}', space=vmem, size = 0x4000, scoped, tag = 'output window, operand 1']
    #allocation12 [shape = 's32[2]{0}', space=sflag, size = 0x8, scoped, tag = 'scoped memory for setr_forward.12']
    #allocation13 [shape = 'u8[16384]{0}', space=vmem, size = 0x4000, scoped, tag = 'output window, operand 2']
    %12 = vsyncpa [#allocation3], 0
    %s13 = scalar_lea.sflag [#allocation3], 1
    %14 = vsyncpa %s13, 0
    %15 = vsyncpa [#allocation6], 0
    %16 = vsyncpa [#allocation9], 0
    %17 = vsyncpa [#allocation4], 0
    %s18 = scalar_lea.sflag [#allocation4], 1
    %19 = vsyncpa %s18, 0
    %20 = vsyncpa [#allocation12], 0
    %s21 = scalar_lea.sflag [#allocation12], 1
    %22 = vsyncpa %s21, 0
    loop: start=0, step=1, limit=4
    $region2: #{setr_forward.12} parent=1 // loop_pre_header
      _
    $region3: #{setr_forward.12} parent=1 // loop_header
      %s24 = sphi 0, %s28
      %p25 = scmp.ge.s32.totalorder %s24, 4
      %s31 = sphi 0, %s43
      %s32 = sphi 0, %s39
      %s33 = sphi 0, %s31
      %s34 = sphi 0, %s32
      %s35 = sphi 0, %s33
      %s36 = sphi 0, %s34
      %s48 = sphi 0, %s50
      %s51 = sphi 0, %s48
      %s52 = sphi 0, %s51
      %s68 = sphi 0, %s52
      %s72 = sphi 0, %s72
      %s74 = sphi 0, %s72
      %s75 = sphi 0, %s74
      %s89 = sphi 0, %s75
      %s93 = sphi 0, %s93
      %s95 = sphi 0, %s93
      %s96 = sphi 0, %s95
      %s110 = sphi 0, %s96
      %s114 = sphi 0, %s114
      %s116 = sphi 0, %s114
      %s117 = sphi 0, %s116
      %s131 = sphi 0, %s117
      %s139 = sphi 0, %s141
      %s142 = sphi 0, %s139
      %s143 = sphi 0, %s142
      %s159 = sphi 0, %s143
      %s167 = sphi 0, %s169
      %s170 = sphi 0, %s167
      %s171 = sphi 0, %s170
      %s187 = sphi 0, %s171
      %s195 = sphi 0, %s197
      %s198 = sphi 0, %s195
      %s199 = sphi 0, %s198
      %s215 = sphi 0, %s199
    $region4: #{setr_forward.12} parent=1 // loop_header_branch
      %27 = sbr.rel (%p25) target = $region8
    $region5: #{setr_forward.12} parent=1 // loop_body
      %s29 = ssub.s32 %s24, 1
      %s30 = ssub.s32 %s24, 2
      %s37 = sadd.s32 1, %s32
      %p38 = scmp.ge.s32.totalorder %s37, 1
      %s39 = scalar_select %p38, 0, %s37
      %s40 = sadd.s32 1, %s31
      %s41 = scalar_select %p38, %s40, %s31
      %p42 = scmp.ge.s32.totalorder %s41, 2
      %s43 = scalar_select %p42, 0, %s41
      %s44 = ssub.s32 %s31, %s43
      %s45 = ssub.s32 %s32, %s39
      %s46 = sor.u32 %s44, %s45
      %p47 = scmp.eq.s32.totalorder %s46, 0
      %s49 = sadd.s32 %s48, 1
      %s50 = scalar_select %p47, %s48, %s49
      %p53 = pneg %p47
      %p54 = scmp.eq.s32.totalorder %s24, 1
      %p55 = por %p53, %p54
      %p56 = scmp.ne.s32.totalorder %s48, %s51
      %p57 = scmp.eq.s32.totalorder %s24, 0
      %p58 = por %p56, %p57
      %p59 = scmp.ne.s32.totalorder %s48, %s51
      %p60 = scmp.eq.s32.totalorder %s29, 1
      %p61 = por %p59, %p60
      %p62 = scmp.ne.s32.totalorder %s51, %s52
      %p63 = scmp.eq.s32.totalorder %s29, 0
      %p64 = por %p62, %p63
      %p65 = scmp.ne.s32.totalorder %s51, %s52
      %p66 = scmp.eq.s32.totalorder %s30, 1
      %p67 = por %p65, %p66
      %p69 = scmp.ne.s32.totalorder %s52, %s68
      %p70 = scmp.eq.s32.totalorder %s30, 0
      %p71 = por %p69, %p70
      %s73 = sadd.s32 %s72, 1
      %p76 = scmp.eq.s32.totalorder %s24, 1
      %p77 = scmp.ne.s32.totalorder %s72, %s74
      %p78 = scmp.eq.s32.totalorder %s24, 0
      %p79 = por %p77, %p78
      %p80 = scmp.ne.s32.totalorder %s72, %s74
      %p81 = scmp.eq.s32.totalorder %s29, 1
      %p82 = por %p80, %p81
      %p83 = scmp.ne.s32.totalorder %s74, %s75
      %p84 = scmp.eq.s32.totalorder %s29, 0
      %p85 = por %p83, %p84
      %p86 = scmp.ne.s32.totalorder %s74, %s75
      %p87 = scmp.eq.s32.totalorder %s30, 1
      %p88 = por %p86, %p87
      %p90 = scmp.ne.s32.totalorder %s75, %s89
      %p91 = scmp.eq.s32.totalorder %s30, 0
      %p92 = por %p90, %p91
      %s94 = sadd.s32 %s93, 1
      %p97 = scmp.eq.s32.totalorder %s24, 1
      %p98 = scmp.ne.s32.totalorder %s93, %s95
      %p99 = scmp.eq.s32.totalorder %s24, 0
      %p100 = por %p98, %p99
      %p101 = scmp.ne.s32.totalorder %s93, %s95
      %p102 = scmp.eq.s32.totalorder %s29, 1
      %p103 = por %p101, %p102
      %p104 = scmp.ne.s32.totalorder %s95, %s96
      %p105 = scmp.eq.s32.totalorder %s29, 0
      %p106 = por %p104, %p105
      %p107 = scmp.ne.s32.totalorder %s95, %s96
      %p108 = scmp.eq.s32.totalorder %s30, 1
      %p109 = por %p107, %p108
      %p111 = scmp.ne.s32.totalorder %s96, %s110
      %p112 = scmp.eq.s32.totalorder %s30, 0
      %p113 = por %p111, %p112
      %s115 = sadd.s32 %s114, 1
      %p118 = scmp.eq.s32.totalorder %s24, 1
      %p119 = scmp.ne.s32.totalorder %s114, %s116
      %p120 = scmp.eq.s32.totalorder %s24, 0
      %p121 = por %p119, %p120
      %p122 = scmp.ne.s32.totalorder %s114, %s116
      %p123 = scmp.eq.s32.totalorder %s29, 1
      %p124 = por %p122, %p123
      %p125 = scmp.ne.s32.totalorder %s116, %s117
      %p126 = scmp.eq.s32.totalorder %s29, 0
      %p127 = por %p125, %p126
      %p128 = scmp.ne.s32.totalorder %s116, %s117
      %p129 = scmp.eq.s32.totalorder %s30, 1
      %p130 = por %p128, %p129
      %p132 = scmp.ne.s32.totalorder %s117, %s131
      %p133 = scmp.eq.s32.totalorder %s30, 0
      %p134 = por %p132, %p133
      %s135 = ssub.s32 %s31, %s43
      %s136 = ssub.s32 %s32, %s39
      %s137 = sor.u32 %s135, %s136
      %p138 = scmp.eq.s32.totalorder %s137, 0
      %s140 = sadd.s32 %s139, 1
      %s141 = scalar_select %p138, %s139, %s140
      %p144 = pneg %p138
      %p145 = scmp.eq.s32.totalorder %s24, 1
      %p146 = por %p144, %p145
      %p147 = scmp.ne.s32.totalorder %s139, %s142
      %p148 = scmp.eq.s32.totalorder %s24, 0
      %p149 = por %p147, %p148
      %p150 = scmp.ne.s32.totalorder %s139, %s142
      %p151 = scmp.eq.s32.totalorder %s29, 1
      %p152 = por %p150, %p151
      %p153 = scmp.ne.s32.totalorder %s142, %s143
      %p154 = scmp.eq.s32.totalorder %s29, 0
      %p155 = por %p153, %p154
      %p156 = scmp.ne.s32.totalorder %s142, %s143
      %p157 = scmp.eq.s32.totalorder %s30, 1
      %p158 = por %p156, %p157
      %p160 = scmp.ne.s32.totalorder %s143, %s159
      %p161 = scmp.eq.s32.totalorder %s30, 0
      %p162 = por %p160, %p161
      %s163 = ssub.s32 %s31, %s43
      %s164 = ssub.s32 %s32, %s39
      %s165 = sor.u32 %s163, %s164
      %p166 = scmp.eq.s32.totalorder %s165, 0
      %s168 = sadd.s32 %s167, 1
      %s169 = scalar_select %p166, %s167, %s168
      %p172 = pneg %p166
      %p173 = scmp.eq.s32.totalorder %s24, 1
      %p174 = por %p172, %p173
      %p175 = scmp.ne.s32.totalorder %s167, %s170
      %p176 = scmp.eq.s32.totalorder %s24, 0
      %p177 = por %p175, %p176
      %p178 = scmp.ne.s32.totalorder %s167, %s170
      %p179 = scmp.eq.s32.totalorder %s29, 1
      %p180 = por %p178, %p179
      %p181 = scmp.ne.s32.totalorder %s170, %s171
      %p182 = scmp.eq.s32.totalorder %s29, 0
      %p183 = por %p181, %p182
      %p184 = scmp.ne.s32.totalorder %s170, %s171
      %p185 = scmp.eq.s32.totalorder %s30, 1
      %p186 = por %p184, %p185
      %p188 = scmp.ne.s32.totalorder %s171, %s187
      %p189 = scmp.eq.s32.totalorder %s30, 0
      %p190 = por %p188, %p189
      %s191 = ssub.s32 %s31, %s43
      %s192 = ssub.s32 %s32, %s39
      %s193 = sor.u32 %s191, %s192
      %p194 = scmp.eq.s32.totalorder %s193, 0
      %s196 = sadd.s32 %s195, 1
      %s197 = scalar_select %p194, %s195, %s196
      %p200 = pneg %p194
      %p201 = scmp.eq.s32.totalorder %s24, 1
      %p202 = por %p200, %p201
      %p203 = scmp.ne.s32.totalorder %s195, %s198
      %p204 = scmp.eq.s32.totalorder %s24, 0
      %p205 = por %p203, %p204
      %p206 = scmp.ne.s32.totalorder %s195, %s198
      %p207 = scmp.eq.s32.totalorder %s29, 1
      %p208 = por %p206, %p207
      %p209 = scmp.ne.s32.totalorder %s198, %s199
      %p210 = scmp.eq.s32.totalorder %s29, 0
      %p211 = por %p209, %p210
      %p212 = scmp.ne.s32.totalorder %s198, %s199
      %p213 = scmp.eq.s32.totalorder %s30, 1
      %p214 = por %p212, %p213
      %p216 = scmp.ne.s32.totalorder %s199, %s215
      %p217 = scmp.eq.s32.totalorder %s30, 0
      %p218 = por %p216, %p217
      %p219 = scmp.le.s32.totalorder 1, %s24
      %p220 = scmp.lt.s32.totalorder %s24, 3
      %p221 = pnand %p219, %p220
      %p222 = pneg %p221
      // Predicated region
      $region9: #{setr_forward.12} parent=5 // pred_check
        _
      $region10: #{setr_forward.12} parent=5 // pred_check_branch
        %224 = sbr.rel (%p221) target = $region12
      $region11: #{setr_forward.12} parent=5 // pred_region
        %s225 = ssub.s32 %s24, 1
        // Predicated region
        $region13: #{setr_forward.12} parent=11 // pred_check
          %p226 = pneg %p85
        $region14: #{setr_forward.12} parent=11 // pred_check_branch
          %228 = sbr.rel (%p226) target = $region16
        $region15: #{setr_forward.12} parent=11 // pred_region
          %s230 = ssub.s32 16, 16
          %231 = vsyncadd [#allocation6], %s230
          %s233 = sshll.u32 [#allocation5], 4
          %s234 = int_to_ptr.vmem [resolvable:$true] %s233
          %236 = dma.hbm_to_vmem [thread:$0]  %s1, 16, %s234, [#allocation6]
        $region16: #{setr_forward.12} parent=11 // pred_fallthru
          _
        // Predicated region
        $region17: #{setr_forward.12} parent=11 // pred_check
          %p237 = pneg %p106
        $region18: #{setr_forward.12} parent=11 // pred_check_branch
          %239 = sbr.rel (%p237) target = $region20
        $region19: #{setr_forward.12} parent=11 // pred_region
          %s241 = ssub.s32 16, 16
          %242 = vsyncadd [#allocation6], %s241
          %s244 = sshll.u32 [#allocation7], 4
          %s245 = int_to_ptr.vmem [resolvable:$true] %s244
          %247 = dma.hbm_to_vmem [thread:$0]  %s2, 16, %s245, [#allocation6]
        $region20: #{setr_forward.12} parent=11 // pred_fallthru
          _
        // Predicated region
        $region21: #{setr_forward.12} parent=11 // pred_check
          %p248 = pneg %p127
        $region22: #{setr_forward.12} parent=11 // pred_check_branch
          %250 = sbr.rel (%p248) target = $region24
        $region23: #{setr_forward.12} parent=11 // pred_region
          %s252 = ssub.s32 256, 256
          %253 = vsyncadd [#allocation9], %s252
          %s254 = sshll.u32 [#allocation8], 4
          %s255 = int_to_ptr.vmem [resolvable:$true] %s254
          %260 = dma.hbm_to_vmem [thread:$0]  %s3, 256, %s255, [#allocation9], 64, 64, 4
        $region24: #{setr_forward.12} parent=11 // pred_fallthru
          _
      $region12: #{setr_forward.12} parent=5 // pred_fallthru
        _
      %p261 = scmp.lt.s32.totalorder %s24, 2
      // Predicated region
      $region25: #{setr_forward.12} parent=5 // pred_check
        %p262 = pneg %p261
      $region26: #{setr_forward.12} parent=5 // pred_check_branch
        %264 = sbr.rel (%p262) target = $region28
      $region27: #{setr_forward.12} parent=5 // pred_region
        // Predicated region
        $region29: #{setr_forward.12} parent=27 // pred_check
          %p265 = pneg %p58
        $region30: #{setr_forward.12} parent=27 // pred_check_branch
          %267 = sbr.rel (%p265) target = $region32
        $region31: #{setr_forward.12} parent=27 // pred_region
          %s268 = sand.u32 %s48, 1
          %s269 = scalar_lea.sflag [#allocation3], %s268
          %s270 = sand.u32 %s48, 1
          %s271 = smul.addr %s270, 16
          %s272 = scalar_lea.vmem [#allocation2], %s271
          %s273 = smul.u32 2, %s32
          %s275 = ssub.s32 256, 256
          %276 = vsyncadd %s269, %s275
          %s277 = smul.addr %s31, 2
          %s278 = sadd.s32 %s273, %s277
          %s279 = smul.addr %s278, 128
          %s280 = scalar_lea.hbm %s0, %s279
          %s281 = sshll.u32 %s272, 4
          %s282 = int_to_ptr.vmem [resolvable:$true] %s281
          %287 = dma.hbm_to_vmem [thread:$0]  %s280, 256, %s282, %s269, 128, 128, 8
        $region32: #{setr_forward.12} parent=27 // pred_fallthru
          _
      $region28: #{setr_forward.12} parent=5 // pred_fallthru
        _
      %p288 = scmp.le.s32.totalorder 1, %s24
      %p289 = scmp.lt.s32.totalorder %s24, 3
      %p290 = pnand %p288, %p289
      %p291 = pneg %p290
      // Predicated region
      $region33: #{setr_forward.12} parent=5 // pred_check
        _
      $region34: #{setr_forward.12} parent=5 // pred_check_branch
        %293 = sbr.rel (%p290) target = $region36
      $region35: #{setr_forward.12} parent=5 // pred_region
        %s294 = ssub.s32 %s24, 1
        %s295 = sand.u32 %s51, 1
        %s296 = scalar_lea.sflag [#allocation3], %s295
        %s297 = sand.u32 %s51, 1
        %s298 = smul.addr %s297, 16
        %s299 = scalar_lea.vmem [#allocation2], %s298
        // Predicated region
        $region37: #{setr_forward.12} parent=35 // pred_check
          %p300 = pneg %p64
        $region38: #{setr_forward.12} parent=35 // pred_check_branch
          %302 = sbr.rel (%p300) target = $region40
        $region39: #{setr_forward.12} parent=35 // pred_region
          %303 = dma.done %s296, 256
        $region40: #{setr_forward.12} parent=35 // pred_fallthru
          _
        // Predicated region
        $region41: #{setr_forward.12} parent=35 // pred_check
          %p304 = pneg %p85
        $region42: #{setr_forward.12} parent=35 // pred_check_branch
          %306 = sbr.rel (%p304) target = $region44
        $region43: #{setr_forward.12} parent=35 // pred_region
          %307 = dma.done [#allocation6], 16
        $region44: #{setr_forward.12} parent=35 // pred_fallthru
          _
        // Predicated region
        $region45: #{setr_forward.12} parent=35 // pred_check
          %p308 = pneg %p106
        $region46: #{setr_forward.12} parent=35 // pred_check_branch
          %310 = sbr.rel (%p308) target = $region48
        $region47: #{setr_forward.12} parent=35 // pred_region
          %311 = dma.done [#allocation6], 16
        $region48: #{setr_forward.12} parent=35 // pred_fallthru
          _
        // Predicated region
        $region49: #{setr_forward.12} parent=35 // pred_check
          %p312 = pneg %p127
        $region50: #{setr_forward.12} parent=35 // pred_check_branch
          %314 = sbr.rel (%p312) target = $region52
        $region51: #{setr_forward.12} parent=35 // pred_region
          %315 = dma.done [#allocation9], 256
        $region52: #{setr_forward.12} parent=35 // pred_fallthru
          _
        %s316 = sand.u32 %s51, 1
        %s317 = scalar_lea.sflag [#allocation3], %s316
        %s318 = sand.u32 %s51, 1
        %s319 = smul.addr %s318, 16
        %s320 = scalar_lea.vmem [#allocation2], %s319
        %p321 = pneg %p64
        %p322 = pneg %p61
        %p323 = pneg %p85
        %p324 = pneg %p82
        %p325 = pneg %p106
        %p326 = pneg %p103
        %p327 = pneg %p127
        %p328 = pneg %p124
        %p329 = pneg %p155
        %p330 = pneg %p152
        %s331 = sand.u32 %s142, 1
        %s332 = scalar_lea.sflag [#allocation4], %s331
        %s333 = sand.u32 %s142, 1
        %s334 = smul.addr %s333, 16
        %s335 = scalar_lea.vmem [#allocation10], %s334
        %p336 = pneg %p183
        %p337 = pneg %p180
        %s338 = sand.u32 %s29, 1
        %s339 = scalar_lea.sflag [#allocation12], %s338
        %s340 = sand.u32 %s170, 1
        %s341 = smul.addr %s340, 16
        %s342 = scalar_lea.vmem [#allocation11], %s341
        %p343 = pneg %p211
        %p344 = pneg %p208
        %s345 = sand.u32 %s29, 1
        %s346 = scalar_lea.sflag [#allocation12], %s345
        %s347 = sand.u32 %s198, 1
        %s348 = smul.addr %s347, 16
        %s349 = scalar_lea.vmem [#allocation13], %s348
        %s350 = smul.u32 2, %s34
        %s351 = smul.u32 2, %s34
        %s352 = smul.u32 2, %s34
        %s353 = smul.u32 2, %s34
        %v355 = vld [vmem:[%s299] sm:$0xff]
        %v356 = vld [vmem:[%s299 + $0x8] sm:$0xff]
        %vm357 = vcmask 261120
        %v358 = vsel %vm357, %v355, 0.0
        %359 = vadd.xlane.f32.xlu0 %v358
        %v360 = vpop.xlane.xlu0 %359
        %v361 = vsel %vm357, %v356, 0.0
        %362 = vadd.xlane.f32.xlu0 %v361
        %v363 = vpop.xlane.xlu0 %362
        %v364 = vrcp.pop 32.0
        %v365 = vmul.f32 %v360, %v364
        %v366 = vmul.f32 %v363, %v364
        %v367 = vsub.f32 %v355, %v365
        %v368 = vsub.f32 %v356, %v366
        %v369 = vmul.f32 %v367, %v367
        %v370 = vmul.f32 %v368, %v368
        %v371 = vsel %vm357, %v369, 0.0
        %372 = vadd.xlane.f32.xlu0 %v371
        %v373 = vpop.xlane.xlu0 %372
        %v374 = vsel %vm357, %v370, 0.0
        %375 = vadd.xlane.f32.xlu0 %v374
        %v376 = vpop.xlane.xlu0 %375
        %v377 = vmul.f32 %v373, %v364
        %v378 = vmul.f32 %v376, %v364
        %v379 = vadd.f32 %v377, 1e-05
        %v380 = vadd.f32 %v378, 1e-05
        %v381 = vrsqrt.pop %v379
        %v382 = vrsqrt.pop %v380
        %v383 = vmul.f32 %v367, %v381
        %v384 = vmul.f32 %v368, %v382
        %v385 = vld [vmem:[#allocation5] sm:$0x1]
        %v387 = vlaneseq
        %v388 = vshrl.u32 %v387, 7
        %v389 = vsub.s32 0, %v388
        %v390 = vrot.slane %v385, %v389
        %v392 = vmul.f32 %v383, %v390
        %v393 = vmul.f32 %v384, %v390
        %v394 = vld [vmem:[#allocation7] sm:$0x1]
        %v396 = vlaneseq
        %v397 = vshrl.u32 %v396, 7
        %v398 = vsub.s32 0, %v397
        %v399 = vrot.slane %v394, %v398
        %v401 = vadd.f32 %v392, %v399
        %v402 = vadd.f32 %v393, %v399
        %v403 = vpack.c.bf16 %v402, %v401
        %v404 = vld [vmem:[#allocation8] sm:$0xf]
        %v405 = vld [vmem:[#allocation8 + $0x4] sm:$0xf]
        %v406 = vld [vmem:[#allocation8 + $0x8] sm:$0xf]
        %v407 = vld [vmem:[#allocation8 + $0xc] sm:$0xf]
        %v412 = vunpack.c.l.b16 %v404
        %v413 = vunpack.c.l.b16 %v405
        %v414 = vunpack.c.l.b16 %v406
        %v415 = vunpack.c.l.b16 %v407
        %v416 = vpack.c.b16 %v413, %v412
        %v417 = vpack.c.b16 %v415, %v414
        %v421 = vsel %vm357, %v403, 0
        %423 = vmatprep.subr.bf16.mxu0 0
        %424 = vmatpush1.bf16.msra.mxu0 %v416
        %425 = vmatprep.subr.bf16.mxu0 0
        %426 = vmatpush1.bf16.msra.mxu0 %v417
        %427 = vmatprep.subr.bf16.mxu0 0
        %428 = vmatpush1.bf16.msra.mxu0 0
        %429 = vmatprep.subr.bf16.mxu0 0
        %430 = vmatpush1.bf16.msra.mxu0 0
        %431 = vmatprep.subr.bf16.mxu0 0
        %432 = vmatpush1.bf16.msra.mxu0 0
        %433 = vmatprep.subr.bf16.mxu0 0
        %434 = vmatpush1.bf16.msra.mxu0 0
        %435 = vmatprep.subr.bf16.mxu0 0
        %436 = vmatpush1.bf16.msra.mxu0 0
        %437 = vmatprep.subr.bf16.mxu0 0
        %438 = vmatpush1.bf16.msra.mxu0 0
        %439 = vmatprep.subr.bf16.mxu0 0
        %440 = vmatpush1.bf16.msra.mxu0 0
        %441 = vmatprep.subr.bf16.mxu0 0
        %442 = vmatpush1.bf16.msra.mxu0 0
        %443 = vmatprep.subr.bf16.mxu0 0
        %444 = vmatpush1.bf16.msra.mxu0 0
        %445 = vmatprep.subr.bf16.mxu0 0
        %446 = vmatpush1.bf16.msra.mxu0 0
        %447 = vmatprep.subr.bf16.mxu0 0
        %448 = vmatpush1.bf16.msra.mxu0 0
        %449 = vmatprep.subr.bf16.mxu0 0
        %450 = vmatpush1.bf16.msra.mxu0 0
        %451 = vmatprep.subr.bf16.mxu0 0
        %452 = vmatpush1.bf16.msra.mxu0 0
        %453 = vmatprep.subr.bf16.mxu0 0
        %454 = vmatpush1.bf16.msra.mxu0 0
        %455 = vmatprep.mubr.bf16.mxu0 0
        %456 = vmatmul.mubr.bf16.gmra.mrb[0].mxu0 %v421
        %v457 = vpop.f32.mrb[0].mxu0
        %v458 = vadd.f32 0.0, %v457
        %v459 = vpop.f32.mrb[0].mxu0
        %v460 = vpop.f32.mrb[0].mxu0
        %v461 = vadd.f32 0.0, %v460
        %v462 = vpop.f32.mrb[0].mxu0
        %463 = vdwg.mxu0
        %v464 = vpack.c.bf16 %v461, %v458
        %v466 = vunpack.c.l.b16 %v464
        %v467 = vunpack.c.h.b16 %v464
        %v468 = vpack.c.b16 %v466, %v466
        %v469 = vpack.c.b16 %v467, %v467
        %vm472 = vcmask 125952
        %473 = vst.msk [vmem:[%s335] sm:$0xf] %vm472, %v468
        %474 = vst.msk [vmem:[%s335 + $0x4] sm:$0xf] %vm472, %v469
        %475 = vrot.lane.b32.xlu0 %v468, 96
        %v476 = vpop.permute.xlu0 %475
        %477 = vrot.lane.b32.xlu0 %v469, 96
        %v478 = vpop.permute.xlu0 %477
        %481 = vst.msk [vmem:[%s342] sm:$0xf] %vm472, %v476
        %482 = vst.msk [vmem:[%s342 + $0x4] sm:$0xf] %vm472, %v478
        %483 = vrot.lane.b32.xlu0 %v468, 64
        %v484 = vpop.permute.xlu0 %483
        %485 = vrot.lane.b32.xlu0 %v469, 64
        %v486 = vpop.permute.xlu0 %485
        %489 = vst.msk [vmem:[%s349] sm:$0xf] %vm472, %v484
        %490 = vst.msk [vmem:[%s349 + $0x4] sm:$0xf] %vm472, %v486
        %491 = vrot.lane.b32.xlu0 %v468, 112
        %v492 = vpop.permute.xlu0 %491
        %493 = vrot.lane.b32.xlu0 %v469, 112
        %v494 = vpop.permute.xlu0 %493
        %s497 = scalar_lea.vmem %s335, 8 [#allocation10]
        %498 = vst.msk [vmem:[%s497] sm:$0xf] %vm472, %v492
        %499 = vst.msk [vmem:[%s497 + $0x4] sm:$0xf] %vm472, %v494
        %500 = vrot.lane.b32.xlu0 %v468, 80
        %v501 = vpop.permute.xlu0 %500
        %502 = vrot.lane.b32.xlu0 %v469, 80
        %v503 = vpop.permute.xlu0 %502
        %s506 = scalar_lea.vmem %s342, 8 [#allocation11]
        %507 = vst.msk [vmem:[%s506] sm:$0xf] %vm472, %v501
        %508 = vst.msk [vmem:[%s506 + $0x4] sm:$0xf] %vm472, %v503
        %509 = vrot.lane.b32.xlu0 %v468, 48
        %v510 = vpop.permute.xlu0 %509
        %511 = vrot.lane.b32.xlu0 %v469, 48
        %v512 = vpop.permute.xlu0 %511
        %s515 = scalar_lea.vmem %s349, 8 [#allocation13]
        %516 = vst.msk [vmem:[%s515] sm:$0xf] %vm472, %v510
        %517 = vst.msk [vmem:[%s515 + $0x4] sm:$0xf] %vm472, %v512
        %s518 = sand.u32 %s142, 1
        %s519 = scalar_lea.sflag [#allocation4], %s518
        %s520 = sand.u32 %s142, 1
        %s521 = smul.addr %s520, 16
        %s522 = scalar_lea.vmem [#allocation10], %s521
        %s523 = sand.u32 %s29, 1
        %s524 = scalar_lea.sflag [#allocation12], %s523
        %s525 = sand.u32 %s170, 1
        %s526 = smul.addr %s525, 16
        %s527 = scalar_lea.vmem [#allocation11], %s526
        %s528 = sand.u32 %s29, 1
        %s529 = scalar_lea.sflag [#allocation12], %s528
        %s530 = sand.u32 %s198, 1
        %s531 = smul.addr %s530, 16
        %s532 = scalar_lea.vmem [#allocation13], %s531
        // Predicated region
        $region53: #{setr_forward.12} parent=35 // pred_check
          %p533 = pneg %p152
        $region54: #{setr_forward.12} parent=35 // pred_check_branch
          %535 = sbr.rel (%p533) target = $region56
        $region55: #{setr_forward.12} parent=35 // pred_region
          %s536 = smul.u32 2, %s34
          %s538 = ssub.s32 256, 256
          %539 = vsyncadd %s519, %s538
          %s540 = smul.addr %s33, 4
          %s541 = sadd.s32 %s536, %s540
          %s542 = smul.addr %s541, 64
          %s543 = scalar_lea.hbm %s4, %s542
          %s544 = sshll.u32 %s522, 4
          %s545 = int_to_ptr.vmem [resolvable:$true] %s544
          %550 = dma.vmem_to_hbm [thread:$0]  %s545, 256, %s543, %s519, 64, 64, 4
        $region56: #{setr_forward.12} parent=35 // pred_fallthru
          _
        // Predicated region
        $region57: #{setr_forward.12} parent=35 // pred_check
          %p551 = pneg %p180
        $region58: #{setr_forward.12} parent=35 // pred_check_branch
          %553 = sbr.rel (%p551) target = $region60
        $region59: #{setr_forward.12} parent=35 // pred_region
          %s554 = smul.u32 2, %s34
          %s556 = ssub.s32 256, 256
          %557 = vsyncadd %s524, %s556
          %s558 = smul.addr %s33, 4
          %s559 = sadd.s32 %s554, %s558
          %s560 = smul.addr %s559, 64
          %s561 = scalar_lea.hbm %s5, %s560
          %s562 = sshll.u32 %s527, 4
          %s563 = int_to_ptr.vmem [resolvable:$true] %s562
          %568 = dma.vmem_to_hbm [thread:$0]  %s563, 256, %s561, %s524, 64, 64, 4
        $region60: #{setr_forward.12} parent=35 // pred_fallthru
          _
        // Predicated region
        $region61: #{setr_forward.12} parent=35 // pred_check
          %p569 = pneg %p208
        $region62: #{setr_forward.12} parent=35 // pred_check_branch
          %571 = sbr.rel (%p569) target = $region64
        $region63: #{setr_forward.12} parent=35 // pred_region
          %s572 = smul.u32 2, %s34
          %s574 = ssub.s32 256, 256
          %575 = vsyncadd %s529, %s574
          %s576 = smul.addr %s33, 4
          %s577 = sadd.s32 %s572, %s576
          %s578 = smul.addr %s577, 64
          %s579 = scalar_lea.hbm %s6, %s578
          %s580 = sshll.u32 %s532, 4
          %s581 = int_to_ptr.vmem [resolvable:$true] %s580
          %586 = dma.vmem_to_hbm [thread:$0]  %s581, 256, %s579, %s529, 64, 64, 4
        $region64: #{setr_forward.12} parent=35 // pred_fallthru
          _
      $region36: #{setr_forward.12} parent=5 // pred_fallthru
        _
      %p587 = scmp.le.s32.totalorder 2, %s24
      // Predicated region
      $region65: #{setr_forward.12} parent=5 // pred_check
        %p588 = pneg %p587
      $region66: #{setr_forward.12} parent=5 // pred_check_branch
        %590 = sbr.rel (%p588) target = $region68
      $region67: #{setr_forward.12} parent=5 // pred_region
        %s591 = ssub.s32 %s24, 2
        // Predicated region
        $region69: #{setr_forward.12} parent=67 // pred_check
          %p592 = pneg %p158
        $region70: #{setr_forward.12} parent=67 // pred_check_branch
          %594 = sbr.rel (%p592) target = $region72
        $region71: #{setr_forward.12} parent=67 // pred_region
          %s595 = sand.u32 %s143, 1
          %s596 = scalar_lea.sflag [#allocation4], %s595
          %s597 = sand.u32 %s143, 1
          %s598 = smul.addr %s597, 16
          %s599 = scalar_lea.vmem [#allocation10], %s598
          %600 = dma.done %s596, 256
        $region72: #{setr_forward.12} parent=67 // pred_fallthru
          _
        // Predicated region
        $region73: #{setr_forward.12} parent=67 // pred_check
          %p601 = pneg %p186
        $region74: #{setr_forward.12} parent=67 // pred_check_branch
          %603 = sbr.rel (%p601) target = $region76
        $region75: #{setr_forward.12} parent=67 // pred_region
          %s604 = sand.u32 %s30, 1
          %s605 = scalar_lea.sflag [#allocation12], %s604
          %s606 = sand.u32 %s171, 1
          %s607 = smul.addr %s606, 16
          %s608 = scalar_lea.vmem [#allocation11], %s607
          %609 = dma.done %s605, 256
        $region76: #{setr_forward.12} parent=67 // pred_fallthru
          _
        // Predicated region
        $region77: #{setr_forward.12} parent=67 // pred_check
          %p610 = pneg %p214
        $region78: #{setr_forward.12} parent=67 // pred_check_branch
          %612 = sbr.rel (%p610) target = $region80
        $region79: #{setr_forward.12} parent=67 // pred_region
          %s613 = sand.u32 %s30, 1
          %s614 = scalar_lea.sflag [#allocation12], %s613
          %s615 = sand.u32 %s199, 1
          %s616 = smul.addr %s615, 16
          %s617 = scalar_lea.vmem [#allocation13], %s616
          %618 = dma.done %s614, 256
        $region80: #{setr_forward.12} parent=67 // pred_fallthru
          _
      $region68: #{setr_forward.12} parent=5 // pred_fallthru
        _
    $region6: #{setr_forward.12} parent=1 // loop_footer
      %s28 = sadd.s32 1, %s24
    $region7: #{setr_forward.12} parent=1 // loop_footer_branch
      %23 = sbr.rel target = $region3
    $region8: #{setr_forward.12} parent=1 // loop_exit
      _
    %619 = vsyncpa [#allocation3], 1
    %s620 = scalar_lea.sflag [#allocation3], 1
    %621 = vsyncpa %s620, 1
    %622 = vsyncpa [#allocation6], 1
    %623 = vsyncpa [#allocation9], 1
    %624 = vsyncpa [#allocation4], 1
    %s625 = scalar_lea.sflag [#allocation4], 1
    %626 = vsyncpa %s625, 1
    %627 = vsyncpa [#allocation12], 1
    %s628 = scalar_lea.sflag [#allocation12], 1
    %629 = vsyncpa %s628, 1

// kernel: setr_forward.11
$region0: #{setr_forward.11}
  #allocation0 [shape = 'u32[]', space=smem, size = 0x4, offset = 0x4, fixed_abs, tag = 'smem constant byte address 0x4 - core index']
  #allocation1 [shape = 'u32[144,128]{1,0:T(1,128)}', space=vmem, size = 0x12000, scoped, tag = 'internal scratch']
  %s0 = inlined_call_operand.hbm [shape: f32[32,48], index: 0, kind: input, shape index: {}]
  %s1 = inlined_call_operand.hbm [shape: bf16[48,32], index: 1, kind: input, shape index: {}]
  %s2 = inlined_call_operand.hbm [shape: f32[1,32], index: 2, kind: input, shape index: {}]
  %s3 = inlined_call_operand.hbm [shape: f32[32,32], index: 3, kind: output, shape index: {}]
  %s4 = sld [smem:[#allocation0]]
  $region34: #{setr_forward.11} parent=0
    _
  %s6 = ssub.s32 1, %s4
  %s7 = scalar_select 0, %s6, %s4
  $region1: #{setr_forward.11} parent=0
    #allocation2 [shape = 'u8[16384]{0}', space=vmem, size = 0x4000, scoped, tag = 'input window, operand 0, single buffered']
    #allocation3 [shape = 's32[1]{0}', space=sflag, size = 0x4, scoped, tag = 'scoped memory for setr_forward.11']
    #allocation4 [shape = 's32[1]{0}', space=sflag, size = 0x4, scoped, tag = 'scoped memory for setr_forward.11']
    #allocation5 [shape = 'u8[12288]{0}', space=vmem, size = 0x3000, scoped, tag = 'input window, operand 1, single buffered']
    #allocation6 [shape = 's32[1]{0}', space=sflag, size = 0x4, scoped, tag = 'scoped memory for setr_forward.11']
    #allocation7 [shape = 'u8[512]{0}', space=vmem, size = 0x400, scoped, tag = 'input window, operand 2, single buffered']
    #allocation8 [shape = 'u8[16384]{0}', space=vmem, size = 0x4000, scoped, tag = 'output window, operand 0, single buffered']
    %8 = vsyncpa [#allocation3], 0
    %9 = vsyncpa [#allocation6], 0
    %10 = vsyncpa [#allocation4], 0
    // Predicated region
    $region2: #{setr_forward.11} parent=1 // pred_check
      _
    $region3: #{setr_forward.11} parent=1 // pred_check_branch
      %12 = sbr.rel (0) target = $region5
    $region4: #{setr_forward.11} parent=1 // pred_region
      %s14 = ssub.s32 512, 512
      %15 = vsyncadd [#allocation3], %s14
      %s16 = sshll.u32 [#allocation2], 4
      %s17 = int_to_ptr.vmem [resolvable:$true] %s16
      %22 = dma.hbm_to_vmem [thread:$0]  %s0, 512, %s17, [#allocation3], 128, 128, 8
    $region5: #{setr_forward.11} parent=1 // pred_fallthru
      _
    // Predicated region
    $region6: #{setr_forward.11} parent=1 // pred_check
      _
    $region7: #{setr_forward.11} parent=1 // pred_check_branch
      %24 = sbr.rel (0) target = $region9
    $region8: #{setr_forward.11} parent=1 // pred_region
      %s26 = ssub.s32 384, 384
      %27 = vsyncadd [#allocation6], %s26
      %s28 = sshll.u32 [#allocation5], 4
      %s29 = int_to_ptr.vmem [resolvable:$true] %s28
      %34 = dma.hbm_to_vmem [thread:$0]  %s1, 384, %s29, [#allocation6], 64, 64, 4
    $region9: #{setr_forward.11} parent=1 // pred_fallthru
      _
    // Predicated region
    $region10: #{setr_forward.11} parent=1 // pred_check
      _
    $region11: #{setr_forward.11} parent=1 // pred_check_branch
      %36 = sbr.rel (0) target = $region13
    $region12: #{setr_forward.11} parent=1 // pred_region
      %s38 = ssub.s32 16, 16
      %39 = vsyncadd [#allocation6], %s38
      %s41 = sshll.u32 [#allocation7], 4
      %s42 = int_to_ptr.vmem [resolvable:$true] %s41
      %44 = dma.hbm_to_vmem [thread:$0]  %s2, 16, %s42, [#allocation6]
    $region13: #{setr_forward.11} parent=1 // pred_fallthru
      _
    // Predicated region
    $region14: #{setr_forward.11} parent=1 // pred_check
      _
    $region15: #{setr_forward.11} parent=1 // pred_check_branch
      %46 = sbr.rel (0) target = $region17
    $region16: #{setr_forward.11} parent=1 // pred_region
      %47 = dma.done [#allocation3], 512
    $region17: #{setr_forward.11} parent=1 // pred_fallthru
      _
    // Predicated region
    $region18: #{setr_forward.11} parent=1 // pred_check
      _
    $region19: #{setr_forward.11} parent=1 // pred_check_branch
      %49 = sbr.rel (0) target = $region21
    $region20: #{setr_forward.11} parent=1 // pred_region
      %50 = dma.done [#allocation6], 384
    $region21: #{setr_forward.11} parent=1 // pred_fallthru
      _
    // Predicated region
    $region22: #{setr_forward.11} parent=1 // pred_check
      _
    $region23: #{setr_forward.11} parent=1 // pred_check_branch
      %52 = sbr.rel (0) target = $region25
    $region24: #{setr_forward.11} parent=1 // pred_region
      %53 = dma.done [#allocation6], 16
    $region25: #{setr_forward.11} parent=1 // pred_fallthru
      _
    %v55 = vld [vmem:[#allocation2] sm:$0xff]
    %v56 = vld [vmem:[#allocation2 + $0x8] sm:$0xff]
    %v57 = vld [vmem:[#allocation2 + $0x10] sm:$0xff]
    %v58 = vld [vmem:[#allocation2 + $0x18] sm:$0xff]
    %v59 = vpack.c.bf16 %v56, %v55
    %v60 = vpack.c.bf16 %v58, %v57
    %v61 = vld [vmem:[#allocation5] sm:$0xf]
    %v62 = vld [vmem:[#allocation5 + $0x4] sm:$0xf]
    %v63 = vld [vmem:[#allocation5 + $0x8] sm:$0xf]
    %v64 = vld [vmem:[#allocation5 + $0xc] sm:$0xf]
    %v65 = vld [vmem:[#allocation5 + $0x10] sm:$0xf]
    %v66 = vld [vmem:[#allocation5 + $0x14] sm:$0xf]
    %v67 = vld [vmem:[#allocation7] sm:$0x1]
    %v69 = vlaneseq
    %v70 = vshrl.u32 %v69, 7
    %v71 = vsub.s32 0, %v70
    %v72 = vrot.slane %v67, %v71
    %v80 = vunpack.c.l.b16 %v61
    %v81 = vunpack.c.l.b16 %v62
    %v82 = vunpack.c.l.b16 %v63
    %v83 = vunpack.c.l.b16 %v64
    %v84 = vunpack.c.l.b16 %v65
    %v85 = vunpack.c.l.b16 %v66
    %v86 = vpack.c.b16 %v81, %v80
    %v87 = vpack.c.b16 %v83, %v82
    %v88 = vpack.c.b16 %v85, %v84
    %vm92 = vcmask 392192
    %v94 = vsel %vm92, %v59, 0
    %v97 = vsel %vm92, %v60, 0
    %99 = vmatprep.subr.bf16.mxu0 0
    %100 = vmatpush1.bf16.msra.mxu0 %v86
    %101 = vmatprep.subr.bf16.mxu0 0
    %102 = vmatpush1.bf16.msra.mxu0 %v87
    %103 = vmatprep.subr.bf16.mxu0 0
    %104 = vmatpush1.bf16.msra.mxu0 %v88
    %105 = vmatprep.subr.bf16.mxu0 0
    %106 = vmatpush1.bf16.msra.mxu0 0
    %107 = vmatprep.subr.bf16.mxu0 0
    %108 = vmatpush1.bf16.msra.mxu0 0
    %109 = vmatprep.subr.bf16.mxu0 0
    %110 = vmatpush1.bf16.msra.mxu0 0
    %111 = vmatprep.subr.bf16.mxu0 0
    %112 = vmatpush1.bf16.msra.mxu0 0
    %113 = vmatprep.subr.bf16.mxu0 0
    %114 = vmatpush1.bf16.msra.mxu0 0
    %115 = vmatprep.subr.bf16.mxu0 0
    %116 = vmatpush1.bf16.msra.mxu0 0
    %117 = vmatprep.subr.bf16.mxu0 0
    %118 = vmatpush1.bf16.msra.mxu0 0
    %119 = vmatprep.subr.bf16.mxu0 0
    %120 = vmatpush1.bf16.msra.mxu0 0
    %121 = vmatprep.subr.bf16.mxu0 0
    %122 = vmatpush1.bf16.msra.mxu0 0
    %123 = vmatprep.subr.bf16.mxu0 0
    %124 = vmatpush1.bf16.msra.mxu0 0
    %125 = vmatprep.subr.bf16.mxu0 0
    %126 = vmatpush1.bf16.msra.mxu0 0
    %127 = vmatprep.subr.bf16.mxu0 0
    %128 = vmatpush1.bf16.msra.mxu0 0
    %129 = vmatprep.subr.bf16.mxu0 0
    %130 = vmatpush1.bf16.msra.mxu0 0
    %131 = vmatprep.mubr.bf16.mxu0 0
    %132 = vmatmul.mubr.bf16.gmra.mrb[0].mxu0 %v94
    %v133 = vpop.f32.mrb[0].mxu0
    %v134 = vadd.f32 %v72, %v133
    %v135 = vpop.f32.mrb[0].mxu0
    %v136 = vpop.f32.mrb[0].mxu0
    %v137 = vadd.f32 %v72, %v136
    %v138 = vpop.f32.mrb[0].mxu0
    %139 = vmatprep.mubr.bf16.mxu0 0
    %140 = vmatmul.mubr.bf16.gmra.mrb[0].mxu0 %v97
    %v141 = vpop.f32.mrb[0].mxu0
    %v142 = vadd.f32 %v72, %v141
    %v143 = vpop.f32.mrb[0].mxu0
    %v144 = vpop.f32.mrb[0].mxu0
    %v145 = vadd.f32 %v72, %v144
    %v146 = vpop.f32.mrb[0].mxu0
    %147 = vdwg.mxu0
    %vm148 = vcmask 261120
    %149 = vst.msk [vmem:[#allocation8] sm:$0xff] %vm148, %v134
    %150 = vst.msk [vmem:[#allocation8 + $0x8] sm:$0xff] %vm148, %v137
    %151 = vst.msk [vmem:[#allocation8 + $0x10] sm:$0xff] %vm148, %v142
    %152 = vst.msk [vmem:[#allocation8 + $0x18] sm:$0xff] %vm148, %v145
    // Predicated region
    $region26: #{setr_forward.11} parent=1 // pred_check
      _
    $region27: #{setr_forward.11} parent=1 // pred_check_branch
      %154 = sbr.rel (0) target = $region29
    $region28: #{setr_forward.11} parent=1 // pred_region
      %s156 = ssub.s32 512, 512
      %157 = vsyncadd [#allocation4], %s156
      %s158 = sshll.u32 [#allocation8], 4
      %s159 = int_to_ptr.vmem [resolvable:$true] %s158
      %164 = dma.vmem_to_hbm [thread:$0]  %s159, 512, %s3, [#allocation4], 128, 128, 8
    $region29: #{setr_forward.11} parent=1 // pred_fallthru
      _
    // Predicated region
    $region30: #{setr_forward.11} parent=1 // pred_check
      _
    $region31: #{setr_forward.11} parent=1 // pred_check_branch
      %166 = sbr.rel (0) target = $region33
    $region32: #{setr_forward.11} parent=1 // pred_region
      %167 = dma.done [#allocation4], 512
    $region33: #{setr_forward.11} parent=1 // pred_fallthru
      _
    %168 = vsyncpa [#allocation3], 1
    %169 = vsyncpa [#allocation6], 1
    %170 = vsyncpa [#allocation4], 1

// kernel: setr_forward.13
$region0: #{setr_forward.13}
  #allocation0 [shape = 'u32[]', space=smem, size = 0x4, offset = 0x4, fixed_abs, tag = 'smem constant byte address 0x4 - core index']
  #allocation1 [shape = 'u32[144,128]{1,0:T(1,128)}', space=vmem, size = 0x12000, scoped, tag = 'internal scratch']
  #allocation2 [shape = 'bf16[16,32]{1,0:T(16,128)(2,1)}', space=vmem, size = 0x1000, scoped, tag = 'scratch operand']
  %s0 = inlined_call_operand.hbm [shape: bf16[2,2,16,16], index: 0, kind: input, shape index: {}]
  %s1 = inlined_call_operand.hbm [shape: bf16[2,2,16,16], index: 1, kind: input, shape index: {}]
  %s2 = inlined_call_operand.hbm [shape: bf16[2,2,16,16], index: 2, kind: input, shape index: {}]
  %s3 = inlined_call_operand.hbm [shape: f32[2,16,32], index: 3, kind: input, shape index: {}]
  %s4 = inlined_call_operand.hbm [shape: bf16[32,32], index: 4, kind: input, shape index: {}]
  %s5 = inlined_call_operand.hbm [shape: f32[1,32], index: 5, kind: input, shape index: {}]
  %s6 = inlined_call_operand.hbm [shape: f32[2,16,32], index: 6, kind: output, shape index: {}]
  %s7 = sld [smem:[#allocation0]]
  $region81: #{setr_forward.13} parent=0
    _
  %s9 = ssub.s32 1, %s7
  %s10 = scalar_select 0, %s9, %s7
  $region1: #{setr_forward.13} parent=0
    #allocation3 [shape = 'u8[16384]{0}', space=vmem, size = 0x4000, scoped, tag = 'input window, operand 0']
    #allocation4 [shape = 's32[2]{0}', space=sflag, size = 0x8, scoped, tag = 'scoped memory for setr_forward.13']
    #allocation5 [shape = 's32[2]{0}', space=sflag, size = 0x8, scoped, tag = 'scoped memory for setr_forward.13']
    #allocation6 [shape = 'u8[16384]{0}', space=vmem, size = 0x4000, scoped, tag = 'input window, operand 1']
    #allocation7 [shape = 's32[2]{0}', space=sflag, size = 0x8, scoped, tag = 'scoped memory for setr_forward.13']
    #allocation8 [shape = 'u8[16384]{0}', space=vmem, size = 0x4000, scoped, tag = 'input window, operand 2']
    #allocation9 [shape = 'u8[16384]{0}', space=vmem, size = 0x4000, scoped, tag = 'input window, operand 3']
    #allocation10 [shape = 's32[2]{0}', space=sflag, size = 0x8, scoped, tag = 'scoped memory for setr_forward.13']
    #allocation11 [shape = 'u8[8192]{0}', space=vmem, size = 0x2000, scoped, tag = 'input window, operand 4, single buffered']
    #allocation12 [shape = 'u8[512]{0}', space=vmem, size = 0x400, scoped, tag = 'input window, operand 5, single buffered']
    #allocation13 [shape = 's32[1]{0}', space=sflag, size = 0x4, scoped, tag = 'scoped memory for setr_forward.13']
    #allocation14 [shape = 'u8[16384]{0}', space=vmem, size = 0x4000, scoped, tag = 'output window, operand 0']
    %11 = vsyncpa [#allocation4], 0
    %s12 = scalar_lea.sflag [#allocation4], 1
    %13 = vsyncpa %s12, 0
    %14 = vsyncpa [#allocation7], 0
    %s15 = scalar_lea.sflag [#allocation7], 1
    %16 = vsyncpa %s15, 0
    %17 = vsyncpa [#allocation10], 0
    %s18 = scalar_lea.sflag [#allocation10], 1
    %19 = vsyncpa %s18, 0
    %20 = vsyncpa [#allocation13], 0
    %21 = vsyncpa [#allocation5], 0
    %s22 = scalar_lea.sflag [#allocation5], 1
    %23 = vsyncpa %s22, 0
    loop: start=0, step=1, limit=4
    $region2: #{setr_forward.13} parent=1 // loop_pre_header
      _
    $region3: #{setr_forward.13} parent=1 // loop_header
      %s25 = sphi 0, %s29
      %p26 = scmp.ge.s32.totalorder %s25, 4
      %s32 = sphi 0, %s44
      %s33 = sphi 0, %s40
      %s34 = sphi 0, %s32
      %s35 = sphi 0, %s33
      %s36 = sphi 0, %s34
      %s37 = sphi 0, %s35
      %s49 = sphi 0, %s51
      %s52 = sphi 0, %s49
      %s53 = sphi 0, %s52
      %s69 = sphi 0, %s53
      %s75 = sphi 0, %s77
      %s78 = sphi 0, %s75
      %s79 = sphi 0, %s78
      %s95 = sphi 0, %s79
      %s101 = sphi 0, %s103
      %s104 = sphi 0, %s101
      %s105 = sphi 0, %s104
      %s121 = sphi 0, %s105
      %s129 = sphi 0, %s131
      %s132 = sphi 0, %s129
      %s133 = sphi 0, %s132
      %s149 = sphi 0, %s133
      %s153 = sphi 0, %s153
      %s155 = sphi 0, %s153
      %s156 = sphi 0, %s155
      %s170 = sphi 0, %s156
      %s174 = sphi 0, %s174
      %s176 = sphi 0, %s174
      %s177 = sphi 0, %s176
      %s191 = sphi 0, %s177
      %s199 = sphi 0, %s201
      %s202 = sphi 0, %s199
      %s203 = sphi 0, %s202
      %s219 = sphi 0, %s203
    $region4: #{setr_forward.13} parent=1 // loop_header_branch
      %28 = sbr.rel (%p26) target = $region8
    $region5: #{setr_forward.13} parent=1 // loop_body
      %s30 = ssub.s32 %s25, 1
      %s31 = ssub.s32 %s25, 2
      %s38 = sadd.s32 1, %s33
      %p39 = scmp.ge.s32.totalorder %s38, 1
      %s40 = scalar_select %p39, 0, %s38
      %s41 = sadd.s32 1, %s32
      %s42 = scalar_select %p39, %s41, %s32
      %p43 = scmp.ge.s32.totalorder %s42, 2
      %s44 = scalar_select %p43, 0, %s42
      %s45 = ssub.s32 %s32, %s44
      %s46 = ssub.s32 %s33, %s40
      %s47 = sor.u32 %s45, %s46
      %p48 = scmp.eq.s32.totalorder %s47, 0
      %s50 = sadd.s32 %s49, 1
      %s51 = scalar_select %p48, %s49, %s50
      %p54 = pneg %p48
      %p55 = scmp.eq.s32.totalorder %s25, 1
      %p56 = por %p54, %p55
      %p57 = scmp.ne.s32.totalorder %s49, %s52
      %p58 = scmp.eq.s32.totalorder %s25, 0
      %p59 = por %p57, %p58
      %p60 = scmp.ne.s32.totalorder %s49, %s52
      %p61 = scmp.eq.s32.totalorder %s30, 1
      %p62 = por %p60, %p61
      %p63 = scmp.ne.s32.totalorder %s52, %s53
      %p64 = scmp.eq.s32.totalorder %s30, 0
      %p65 = por %p63, %p64
      %p66 = scmp.ne.s32.totalorder %s52, %s53
      %p67 = scmp.eq.s32.totalorder %s31, 1
      %p68 = por %p66, %p67
      %p70 = scmp.ne.s32.totalorder %s53, %s69
      %p71 = scmp.eq.s32.totalorder %s31, 0
      %p72 = por %p70, %p71
      %s73 = ssub.s32 %s32, %s44
      %p74 = scmp.eq.s32.totalorder %s73, 0
      %s76 = sadd.s32 %s75, 1
      %s77 = scalar_select %p74, %s75, %s76
      %p80 = pneg %p74
      %p81 = scmp.eq.s32.totalorder %s25, 1
      %p82 = por %p80, %p81
      %p83 = scmp.ne.s32.totalorder %s75, %s78
      %p84 = scmp.eq.s32.totalorder %s25, 0
      %p85 = por %p83, %p84
      %p86 = scmp.ne.s32.totalorder %s75, %s78
      %p87 = scmp.eq.s32.totalorder %s30, 1
      %p88 = por %p86, %p87
      %p89 = scmp.ne.s32.totalorder %s78, %s79
      %p90 = scmp.eq.s32.totalorder %s30, 0
      %p91 = por %p89, %p90
      %p92 = scmp.ne.s32.totalorder %s78, %s79
      %p93 = scmp.eq.s32.totalorder %s31, 1
      %p94 = por %p92, %p93
      %p96 = scmp.ne.s32.totalorder %s79, %s95
      %p97 = scmp.eq.s32.totalorder %s31, 0
      %p98 = por %p96, %p97
      %s99 = ssub.s32 %s32, %s44
      %p100 = scmp.eq.s32.totalorder %s99, 0
      %s102 = sadd.s32 %s101, 1
      %s103 = scalar_select %p100, %s101, %s102
      %p106 = pneg %p100
      %p107 = scmp.eq.s32.totalorder %s25, 1
      %p108 = por %p106, %p107
      %p109 = scmp.ne.s32.totalorder %s101, %s104
      %p110 = scmp.eq.s32.totalorder %s25, 0
      %p111 = por %p109, %p110
      %p112 = scmp.ne.s32.totalorder %s101, %s104
      %p113 = scmp.eq.s32.totalorder %s30, 1
      %p114 = por %p112, %p113
      %p115 = scmp.ne.s32.totalorder %s104, %s105
      %p116 = scmp.eq.s32.totalorder %s30, 0
      %p117 = por %p115, %p116
      %p118 = scmp.ne.s32.totalorder %s104, %s105
      %p119 = scmp.eq.s32.totalorder %s31, 1
      %p120 = por %p118, %p119
      %p122 = scmp.ne.s32.totalorder %s105, %s121
      %p123 = scmp.eq.s32.totalorder %s31, 0
      %p124 = por %p122, %p123
      %s125 = ssub.s32 %s32, %s44
      %s126 = ssub.s32 %s33, %s40
      %s127 = sor.u32 %s125, %s126
      %p128 = scmp.eq.s32.totalorder %s127, 0
      %s130 = sadd.s32 %s129, 1
      %s131 = scalar_select %p128, %s129, %s130
      %p134 = pneg %p128
      %p135 = scmp.eq.s32.totalorder %s25, 1
      %p136 = por %p134, %p135
      %p137 = scmp.ne.s32.totalorder %s129, %s132
      %p138 = scmp.eq.s32.totalorder %s25, 0
      %p139 = por %p137, %p138
      %p140 = scmp.ne.s32.totalorder %s129, %s132
      %p141 = scmp.eq.s32.totalorder %s30, 1
      %p142 = por %p140, %p141
      %p143 = scmp.ne.s32.totalorder %s132, %s133
      %p144 = scmp.eq.s32.totalorder %s30, 0
      %p145 = por %p143, %p144
      %p146 = scmp.ne.s32.totalorder %s132, %s133
      %p147 = scmp.eq.s32.totalorder %s31, 1
      %p148 = por %p146, %p147
      %p150 = scmp.ne.s32.totalorder %s133, %s149
      %p151 = scmp.eq.s32.totalorder %s31, 0
      %p152 = por %p150, %p151
      %s154 = sadd.s32 %s153, 1
      %p157 = scmp.eq.s32.totalorder %s25, 1
      %p158 = scmp.ne.s32.totalorder %s153, %s155
      %p159 = scmp.eq.s32.totalorder %s25, 0
      %p160 = por %p158, %p159
      %p161 = scmp.ne.s32.totalorder %s153, %s155
      %p162 = scmp.eq.s32.totalorder %s30, 1
      %p163 = por %p161, %p162
      %p164 = scmp.ne.s32.totalorder %s155, %s156
      %p165 = scmp.eq.s32.totalorder %s30, 0
      %p166 = por %p164, %p165
      %p167 = scmp.ne.s32.totalorder %s155, %s156
      %p168 = scmp.eq.s32.totalorder %s31, 1
      %p169 = por %p167, %p168
      %p171 = scmp.ne.s32.totalorder %s156, %s170
      %p172 = scmp.eq.s32.totalorder %s31, 0
      %p173 = por %p171, %p172
      %s175 = sadd.s32 %s174, 1
      %p178 = scmp.eq.s32.totalorder %s25, 1
      %p179 = scmp.ne.s32.totalorder %s174, %s176
      %p180 = scmp.eq.s32.totalorder %s25, 0
      %p181 = por %p179, %p180
      %p182 = scmp.ne.s32.totalorder %s174, %s176
      %p183 = scmp.eq.s32.totalorder %s30, 1
      %p184 = por %p182, %p183
      %p185 = scmp.ne.s32.totalorder %s176, %s177
      %p186 = scmp.eq.s32.totalorder %s30, 0
      %p187 = por %p185, %p186
      %p188 = scmp.ne.s32.totalorder %s176, %s177
      %p189 = scmp.eq.s32.totalorder %s31, 1
      %p190 = por %p188, %p189
      %p192 = scmp.ne.s32.totalorder %s177, %s191
      %p193 = scmp.eq.s32.totalorder %s31, 0
      %p194 = por %p192, %p193
      %s195 = ssub.s32 %s32, %s44
      %s196 = ssub.s32 %s33, %s40
      %s197 = sor.u32 %s195, %s196
      %p198 = scmp.eq.s32.totalorder %s197, 0
      %s200 = sadd.s32 %s199, 1
      %s201 = scalar_select %p198, %s199, %s200
      %p204 = pneg %p198
      %p205 = scmp.eq.s32.totalorder %s25, 1
      %p206 = por %p204, %p205
      %p207 = scmp.ne.s32.totalorder %s199, %s202
      %p208 = scmp.eq.s32.totalorder %s25, 0
      %p209 = por %p207, %p208
      %p210 = scmp.ne.s32.totalorder %s199, %s202
      %p211 = scmp.eq.s32.totalorder %s30, 1
      %p212 = por %p210, %p211
      %p213 = scmp.ne.s32.totalorder %s202, %s203
      %p214 = scmp.eq.s32.totalorder %s30, 0
      %p215 = por %p213, %p214
      %p216 = scmp.ne.s32.totalorder %s202, %s203
      %p217 = scmp.eq.s32.totalorder %s31, 1
      %p218 = por %p216, %p217
      %p220 = scmp.ne.s32.totalorder %s203, %s219
      %p221 = scmp.eq.s32.totalorder %s31, 0
      %p222 = por %p220, %p221
      %p223 = scmp.le.s32.totalorder 1, %s25
      %p224 = scmp.lt.s32.totalorder %s25, 3
      %p225 = pnand %p223, %p224
      %p226 = pneg %p225
      // Predicated region
      $region9: #{setr_forward.13} parent=5 // pred_check
        _
      $region10: #{setr_forward.13} parent=5 // pred_check_branch
        %228 = sbr.rel (%p225) target = $region12
      $region11: #{setr_forward.13} parent=5 // pred_region
        %s229 = ssub.s32 %s25, 1
        // Predicated region
        $region13: #{setr_forward.13} parent=11 // pred_check
          %p230 = pneg %p166
        $region14: #{setr_forward.13} parent=11 // pred_check_branch
          %232 = sbr.rel (%p230) target = $region16
        $region15: #{setr_forward.13} parent=11 // pred_region
          %s234 = ssub.s32 256, 256
          %235 = vsyncadd [#allocation10], %s234
          %s236 = sshll.u32 [#allocation11], 4
          %s237 = int_to_ptr.vmem [resolvable:$true] %s236
          %242 = dma.hbm_to_vmem [thread:$0]  %s4, 256, %s237, [#allocation10], 64, 64, 4
        $region16: #{setr_forward.13} parent=11 // pred_fallthru
          _
        // Predicated region
        $region17: #{setr_forward.13} parent=11 // pred_check
          %p243 = pneg %p187
        $region18: #{setr_forward.13} parent=11 // pred_check_branch
          %245 = sbr.rel (%p243) target = $region20
        $region19: #{setr_forward.13} parent=11 // pred_region
          %s247 = ssub.s32 16, 16
          %248 = vsyncadd [#allocation13], %s247
          %s250 = sshll.u32 [#allocation12], 4
          %s251 = int_to_ptr.vmem [resolvable:$true] %s250
          %253 = dma.hbm_to_vmem [thread:$0]  %s5, 16, %s251, [#allocation13]
        $region20: #{setr_forward.13} parent=11 // pred_fallthru
          _
      $region12: #{setr_forward.13} parent=5 // pred_fallthru
        _
      %p254 = scmp.lt.s32.totalorder %s25, 2
      // Predicated region
      $region21: #{setr_forward.13} parent=5 // pred_check
        %p255 = pneg %p254
      $region22: #{setr_forward.13} parent=5 // pred_check_branch
        %257 = sbr.rel (%p255) target = $region24
      $region23: #{setr_forward.13} parent=5 // pred_region
        // Predicated region
        $region25: #{setr_forward.13} parent=23 // pred_check
          %p258 = pneg %p59
        $region26: #{setr_forward.13} parent=23 // pred_check_branch
          %260 = sbr.rel (%p258) target = $region28
        $region27: #{setr_forward.13} parent=23 // pred_region
          %s261 = sand.u32 %s49, 1
          %s262 = scalar_lea.sflag [#allocation4], %s261
          %s263 = sand.u32 %s49, 1
          %s264 = smul.addr %s263, 16
          %s265 = scalar_lea.vmem [#allocation3], %s264
          %s266 = smul.u32 2, %s33
          %s268 = ssub.s32 256, 256
          %269 = vsyncadd %s262, %s268
          %s270 = smul.addr %s32, 4
          %s271 = sadd.s32 %s266, %s270
          %s272 = smul.addr %s271, 64
          %s273 = scalar_lea.hbm %s0, %s272
          %s274 = sshll.u32 %s265, 4
          %s275 = int_to_ptr.vmem [resolvable:$true] %s274
          %280 = dma.hbm_to_vmem [thread:$0]  %s273, 256, %s275, %s262, 64, 64, 4
        $region28: #{setr_forward.13} parent=23 // pred_fallthru
          _
        // Predicated region
        $region29: #{setr_forward.13} parent=23 // pred_check
          %p281 = pneg %p85
        $region30: #{setr_forward.13} parent=23 // pred_check_branch
          %283 = sbr.rel (%p281) target = $region32
        $region31: #{setr_forward.13} parent=23 // pred_region
          %s284 = sand.u32 %s25, 1
          %s285 = scalar_lea.sflag [#allocation7], %s284
          %s286 = sand.u32 %s75, 1
          %s287 = smul.addr %s286, 16
          %s288 = scalar_lea.vmem [#allocation6], %s287
          %s290 = ssub.s32 256, 256
          %291 = vsyncadd %s285, %s290
          %s292 = smul.addr %s32, 4
          %s293 = smul.addr %s292, 64
          %s294 = scalar_lea.hbm %s1, %s293
          %s295 = sshll.u32 %s288, 4
          %s296 = int_to_ptr.vmem [resolvable:$true] %s295
          %301 = dma.hbm_to_vmem [thread:$0]  %s294, 256, %s296, %s285, 64, 64, 4
        $region32: #{setr_forward.13} parent=23 // pred_fallthru
          _
        // Predicated region
        $region33: #{setr_forward.13} parent=23 // pred_check
          %p302 = pneg %p111
        $region34: #{setr_forward.13} parent=23 // pred_check_branch
          %304 = sbr.rel (%p302) target = $region36
        $region35: #{setr_forward.13} parent=23 // pred_region
          %s305 = sand.u32 %s25, 1
          %s306 = scalar_lea.sflag [#allocation7], %s305
          %s307 = sand.u32 %s101, 1
          %s308 = smul.addr %s307, 16
          %s309 = scalar_lea.vmem [#allocation8], %s308
          %s311 = ssub.s32 256, 256
          %312 = vsyncadd %s306, %s311
          %s313 = smul.addr %s32, 4
          %s314 = smul.addr %s313, 64
          %s315 = scalar_lea.hbm %s2, %s314
          %s316 = sshll.u32 %s309, 4
          %s317 = int_to_ptr.vmem [resolvable:$true] %s316
          %322 = dma.hbm_to_vmem [thread:$0]  %s315, 256, %s317, %s306, 64, 64, 4
        $region36: #{setr_forward.13} parent=23 // pred_fallthru
          _
        // Predicated region
        $region37: #{setr_forward.13} parent=23 // pred_check
          %p323 = pneg %p139
        $region38: #{setr_forward.13} parent=23 // pred_check_branch
          %325 = sbr.rel (%p323) target = $region40
        $region39: #{setr_forward.13} parent=23 // pred_region
          %s326 = sand.u32 %s25, 1
          %s327 = scalar_lea.sflag [#allocation10], %s326
          %s328 = sand.u32 %s129, 1
          %s329 = smul.addr %s328, 16
          %s330 = scalar_lea.vmem [#allocation9], %s329
          %s331 = smul.u32 2, %s33
          %s333 = ssub.s32 256, 256
          %334 = vsyncadd %s327, %s333
          %s335 = smul.addr %s32, 2
          %s336 = sadd.s32 %s331, %s335
          %s337 = smul.addr %s336, 128
          %s338 = scalar_lea.hbm %s3, %s337
          %s339 = sshll.u32 %s330, 4
          %s340 = int_to_ptr.vmem [resolvable:$true] %s339
          %345 = dma.hbm_to_vmem [thread:$0]  %s338, 256, %s340, %s327, 128, 128, 8
        $region40: #{setr_forward.13} parent=23 // pred_fallthru
          _
      $region24: #{setr_forward.13} parent=5 // pred_fallthru
        _
      %p346 = scmp.le.s32.totalorder 1, %s25
      %p347 = scmp.lt.s32.totalorder %s25, 3
      %p348 = pnand %p346, %p347
      %p349 = pneg %p348
      // Predicated region
      $region41: #{setr_forward.13} parent=5 // pred_check
        _
      $region42: #{setr_forward.13} parent=5 // pred_check_branch
        %351 = sbr.rel (%p348) target = $region44
      $region43: #{setr_forward.13} parent=5 // pred_region
        %s352 = ssub.s32 %s25, 1
        %s353 = sand.u32 %s52, 1
        %s354 = scalar_lea.sflag [#allocation4], %s353
        %s355 = sand.u32 %s52, 1
        %s356 = smul.addr %s355, 16
        %s357 = scalar_lea.vmem [#allocation3], %s356
        // Predicated region
        $region45: #{setr_forward.13} parent=43 // pred_check
          %p358 = pneg %p65
        $region46: #{setr_forward.13} parent=43 // pred_check_branch
          %360 = sbr.rel (%p358) target = $region48
        $region47: #{setr_forward.13} parent=43 // pred_region
          %361 = dma.done %s354, 256
        $region48: #{setr_forward.13} parent=43 // pred_fallthru
          _
        %s362 = sand.u32 %s30, 1
        %s363 = scalar_lea.sflag [#allocation7], %s362
        %s364 = sand.u32 %s78, 1
        %s365 = smul.addr %s364, 16
        %s366 = scalar_lea.vmem [#allocation6], %s365
        // Predicated region
        $region49: #{setr_forward.13} parent=43 // pred_check
          %p367 = pneg %p91
        $region50: #{setr_forward.13} parent=43 // pred_check_branch
          %369 = sbr.rel (%p367) target = $region52
        $region51: #{setr_forward.13} parent=43 // pred_region
          %370 = dma.done %s363, 256
        $region52: #{setr_forward.13} parent=43 // pred_fallthru
          _
        %s371 = sand.u32 %s30, 1
        %s372 = scalar_lea.sflag [#allocation7], %s371
        %s373 = sand.u32 %s104, 1
        %s374 = smul.addr %s373, 16
        %s375 = scalar_lea.vmem [#allocation8], %s374
        // Predicated region
        $region53: #{setr_forward.13} parent=43 // pred_check
          %p376 = pneg %p117
        $region54: #{setr_forward.13} parent=43 // pred_check_branch
          %378 = sbr.rel (%p376) target = $region56
        $region55: #{setr_forward.13} parent=43 // pred_region
          %379 = dma.done %s372, 256
        $region56: #{setr_forward.13} parent=43 // pred_fallthru
          _
        %s380 = sand.u32 %s30, 1
        %s381 = scalar_lea.sflag [#allocation10], %s380
        %s382 = sand.u32 %s132, 1
        %s383 = smul.addr %s382, 16
        %s384 = scalar_lea.vmem [#allocation9], %s383
        // Predicated region
        $region57: #{setr_forward.13} parent=43 // pred_check
          %p385 = pneg %p145
        $region58: #{setr_forward.13} parent=43 // pred_check_branch
          %387 = sbr.rel (%p385) target = $region60
        $region59: #{setr_forward.13} parent=43 // pred_region
          %388 = dma.done %s381, 256
        $region60: #{setr_forward.13} parent=43 // pred_fallthru
          _
        // Predicated region
        $region61: #{setr_forward.13} parent=43 // pred_check
          %p389 = pneg %p166
        $region62: #{setr_forward.13} parent=43 // pred_check_branch
          %391 = sbr.rel (%p389) target = $region64
        $region63: #{setr_forward.13} parent=43 // pred_region
          %392 = dma.done [#allocation10], 256
        $region64: #{setr_forward.13} parent=43 // pred_fallthru
          _
        // Predicated region
        $region65: #{setr_forward.13} parent=43 // pred_check
          %p393 = pneg %p187
        $region66: #{setr_forward.13} parent=43 // pred_check_branch
          %395 = sbr.rel (%p393) target = $region68
        $region67: #{setr_forward.13} parent=43 // pred_region
          %396 = dma.done [#allocation13], 16
        $region68: #{setr_forward.13} parent=43 // pred_fallthru
          _
        %s397 = sand.u32 %s52, 1
        %s398 = scalar_lea.sflag [#allocation4], %s397
        %s399 = sand.u32 %s52, 1
        %s400 = smul.addr %s399, 16
        %s401 = scalar_lea.vmem [#allocation3], %s400
        %p402 = pneg %p65
        %p403 = pneg %p62
        %s404 = sand.u32 %s30, 1
        %s405 = scalar_lea.sflag [#allocation7], %s404
        %s406 = sand.u32 %s78, 1
        %s407 = smul.addr %s406, 16
        %s408 = scalar_lea.vmem [#allocation6], %s407
        %p409 = pneg %p91
        %p410 = pneg %p88
        %s411 = sand.u32 %s30, 1
        %s412 = scalar_lea.sflag [#allocation7], %s411
        %s413 = sand.u32 %s104, 1
        %s414 = smul.addr %s413, 16
        %s415 = scalar_lea.vmem [#allocation8], %s414
        %p416 = pneg %p117
        %p417 = pneg %p114
        %s418 = sand.u32 %s30, 1
        %s419 = scalar_lea.sflag [#allocation10], %s418
        %s420 = sand.u32 %s132, 1
        %s421 = smul.addr %s420, 16
        %s422 = scalar_lea.vmem [#allocation9], %s421
        %p423 = pneg %p145
        %p424 = pneg %p142
        %p425 = pneg %p166
        %p426 = pneg %p163
        %p427 = pneg %p187
        %p428 = pneg %p184
        %p429 = pneg %p215
        %p430 = pneg %p212
        %s431 = sand.u32 %s202, 1
        %s432 = scalar_lea.sflag [#allocation5], %s431
        %s433 = sand.u32 %s202, 1
        %s434 = smul.addr %s433, 16
        %s435 = scalar_lea.vmem [#allocation14], %s434
        %s436 = smul.u32 2, %s35
        %s437 = smul.u32 2, %s35
        %s438 = smul.u32 2, %s35
        %v440 = vld [vmem:[%s357] sm:$0xf]
        %v441 = vld [vmem:[%s357 + $0x4] sm:$0xf]
        %v442 = vld [vmem:[%s357 + $0x8] sm:$0xf]
        %v443 = vld [vmem:[%s357 + $0xc] sm:$0xf]
        %v444 = vld [vmem:[%s366] sm:$0xf]
        %v445 = vld [vmem:[%s366 + $0x4] sm:$0xf]
        %v446 = vld [vmem:[%s366 + $0x8] sm:$0xf]
        %v447 = vld [vmem:[%s366 + $0xc] sm:$0xf]
        %v448 = vld [vmem:[%s375] sm:$0xf]
        %v449 = vld [vmem:[%s375 + $0x4] sm:$0xf]
        %v450 = vld [vmem:[%s375 + $0x8] sm:$0xf]
        %v451 = vld [vmem:[%s375 + $0xc] sm:$0xf]
        %v454 = vunpack.c.l.b16 %v440
        %v455 = vunpack.c.l.b16 %v441
        %v456 = vpack.c.b16 %v455, %v454
        %v459 = vunpack.c.l.b16 %v444
        %v460 = vunpack.c.l.b16 %v445
        %v461 = vpack.c.b16 %v460, %v459
        %vm462 = vcmask 130048
        %v464 = vsel %vm462, %v456, 0
        %v467 = vsel %vm462, %v461, 0
        %469 = vmatprep.subr.bf16.mxu0 0
        %470 = vmatpush1.bf16.xpose.msra.mxu0 %v467
        %471 = vmatprep.subr.bf16.mxu0 0
        %472 = vmatpush1.bf16.xpose.msra.mxu0 0
        %473 = vmatprep.subr.bf16.mxu0 0
        %474 = vmatpush1.bf16.xpose.msra.mxu0 0
        %475 = vmatprep.subr.bf16.mxu0 0
        %476 = vmatpush1.bf16.xpose.msra.mxu0 0
        %477 = vmatprep.subr.bf16.mxu0 0
        %478 = vmatpush1.bf16.xpose.msra.mxu0 0
        %479 = vmatprep.subr.bf16.mxu0 0
        %480 = vmatpush1.bf16.xpose.msra.mxu0 0
        %481 = vmatprep.subr.bf16.mxu0 0
        %482 = vmatpush1.bf16.xpose.msra.mxu0 0
        %483 = vmatprep.subr.bf16.mxu0 0
        %484 = vmatpush1.bf16.xpose.msra.mxu0 0
        %485 = vmatprep.subr.bf16.mxu0 0
        %486 = vmatpush1.bf16.xpose.msra.mxu0 0
        %487 = vmatprep.subr.bf16.mxu0 0
        %488 = vmatpush1.bf16.xpose.msra.mxu0 0
        %489 = vmatprep.subr.bf16.mxu0 0
        %490 = vmatpush1.bf16.xpose.msra.mxu0 0
        %491 = vmatprep.subr.bf16.mxu0 0
        %492 = vmatpush1.bf16.xpose.msra.mxu0 0
        %493 = vmatprep.subr.bf16.mxu0 0
        %494 = vmatpush1.bf16.xpose.msra.mxu0 0
        %495 = vmatprep.subr.bf16.mxu0 0
        %496 = vmatpush1.bf16.xpose.msra.mxu0 0
        %497 = vmatprep.subr.bf16.mxu0 0
        %498 = vmatpush1.bf16.xpose.msra.mxu0 0
        %499 = vmatprep.subr.bf16.mxu0 0
        %500 = vmatpush1.bf16.xpose.msra.mxu0 0
        %501 = vmatprep.mubr.bf16.mxu0 0
        %502 = vmatmul.mubr.bf16.gmra.mrb[0].mxu0 %v464
        %v503 = vpop.f32.mrb[0].mxu0
        %v504 = vadd.f32 0.0, %v503
        %v505 = vpop.f32.mrb[0].mxu0
        %v506 = vpop.f32.mrb[0].mxu0
        %v507 = vadd.f32 0.0, %v506
        %v508 = vpop.f32.mrb[0].mxu0
        %509 = vdwg.mxu0
        %v512 = vunpack.c.l.b16 %v442
        %v513 = vunpack.c.l.b16 %v443
        %v514 = vpack.c.b16 %v513, %v512
        %v517 = vunpack.c.l.b16 %v446
        %v518 = vunpack.c.l.b16 %v447
        %v519 = vpack.c.b16 %v518, %v517
        %v521 = vsel %vm462, %v514, 0
        %v524 = vsel %vm462, %v519, 0
        %526 = vmatprep.subr.bf16.mxu0 0
        %527 = vmatpush1.bf16.xpose.msra.mxu0 %v524
        %528 = vmatprep.subr.bf16.mxu0 0
        %529 = vmatpush1.bf16.xpose.msra.mxu0 0
        %530 = vmatprep.subr.bf16.mxu0 0
        %531 = vmatpush1.bf16.xpose.msra.mxu0 0
        %532 = vmatprep.subr.bf16.mxu0 0
        %533 = vmatpush1.bf16.xpose.msra.mxu0 0
        %534 = vmatprep.subr.bf16.mxu0 0
        %535 = vmatpush1.bf16.xpose.msra.mxu0 0
        %536 = vmatprep.subr.bf16.mxu0 0
        %537 = vmatpush1.bf16.xpose.msra.mxu0 0
        %538 = vmatprep.subr.bf16.mxu0 0
        %539 = vmatpush1.bf16.xpose.msra.mxu0 0
        %540 = vmatprep.subr.bf16.mxu0 0
        %541 = vmatpush1.bf16.xpose.msra.mxu0 0
        %542 = vmatprep.subr.bf16.mxu0 0
        %543 = vmatpush1.bf16.xpose.msra.mxu0 0
        %544 = vmatprep.subr.bf16.mxu0 0
        %545 = vmatpush1.bf16.xpose.msra.mxu0 0
        %546 = vmatprep.subr.bf16.mxu0 0
        %547 = vmatpush1.bf16.xpose.msra.mxu0 0
        %548 = vmatprep.subr.bf16.mxu0 0
        %549 = vmatpush1.bf16.xpose.msra.mxu0 0
        %550 = vmatprep.subr.bf16.mxu0 0
        %551 = vmatpush1.bf16.xpose.msra.mxu0 0
        %552 = vmatprep.subr.bf16.mxu0 0
        %553 = vmatpush1.bf16.xpose.msra.mxu0 0
        %554 = vmatprep.subr.bf16.mxu0 0
        %555 = vmatpush1.bf16.xpose.msra.mxu0 0
        %556 = vmatprep.subr.bf16.mxu0 0
        %557 = vmatpush1.bf16.xpose.msra.mxu0 0
        %558 = vmatprep.mubr.bf16.mxu0 0
        %559 = vmatmul.mubr.bf16.gmra.mrb[0].mxu0 %v521
        %v560 = vpop.f32.mrb[0].mxu0
        %v561 = vadd.f32 0.0, %v560
        %v562 = vpop.f32.mrb[0].mxu0
        %v563 = vpop.f32.mrb[0].mxu0
        %v564 = vadd.f32 0.0, %v563
        %v565 = vpop.f32.mrb[0].mxu0
        %566 = vdwg.mxu0
        %v567 = vsel %vm462, %v504, -inf
        %568 = vmax.xlane.f32.xlu0 %v567
        %v569 = vpop.xlane.xlu0 %568
        %v570 = vsel %vm462, %v507, -inf
        %571 = vmax.xlane.f32.xlu0 %v570
        %v572 = vpop.xlane.xlu0 %571
        %v573 = vsel %vm462, %v561, -inf
        %574 = vmax.xlane.f32.xlu0 %v573
        %v575 = vpop.xlane.xlu0 %574
        %v576 = vsel %vm462, %v564, -inf
        %577 = vmax.xlane.f32.xlu0 %v576
        %v578 = vpop.xlane.xlu0 %577
        %v579 = vsub.f32 %v504, %v569
        %v580 = vsub.f32 %v507, %v572
        %v581 = vsub.f32 %v561, %v575
        %v582 = vsub.f32 %v564, %v578
        %v583 = vmul.f32 %v579, 1.442695
        %v584 = vpow.pop %v583
        %v585 = vmul.f32 %v580, 1.442695
        %v586 = vpow.pop %v585
        %v587 = vmul.f32 %v581, 1.442695
        %v588 = vpow.pop %v587
        %v589 = vmul.f32 %v582, 1.442695
        %v590 = vpow.pop %v589
        %v591 = vsel %vm462, %v584, 0.0
        %592 = vadd.xlane.f32.xlu0 %v591
        %v593 = vpop.xlane.xlu0 %592
        %v594 = vsel %vm462, %v586, 0.0
        %595 = vadd.xlane.f32.xlu0 %v594
        %v596 = vpop.xlane.xlu0 %595
        %v597 = vsel %vm462, %v588, 0.0
        %598 = vadd.xlane.f32.xlu0 %v597
        %v599 = vpop.xlane.xlu0 %598
        %v600 = vsel %vm462, %v590, 0.0
        %601 = vadd.xlane.f32.xlu0 %v600
        %v602 = vpop.xlane.xlu0 %601
        %v603 = vrcp.pop %v593
        %v604 = vrcp.pop %v596
        %v605 = vrcp.pop %v599
        %v606 = vrcp.pop %v602
        %v607 = vmul.f32 %v584, %v603
        %v608 = vmul.f32 %v586, %v604
        %v609 = vmul.f32 %v588, %v605
        %v610 = vmul.f32 %v590, %v606
        %v611 = vpack.c.bf16 %v608, %v607
        %v612 = vpack.c.bf16 %v610, %v609
        %v615 = vunpack.c.l.b16 %v448
        %v616 = vunpack.c.l.b16 %v449
        %v617 = vpack.c.b16 %v616, %v615
        %v620 = vsel %vm462, %v611, 0
        %622 = vmatprep.subr.bf16.mxu0 0
        %623 = vmatpush1.bf16.msra.mxu0 %v617
        %624 = vmatprep.subr.bf16.mxu0 0
        %625 = vmatpush1.bf16.msra.mxu0 0
        %626 = vmatprep.subr.bf16.mxu0 0
        %627 = vmatpush1.bf16.msra.mxu0 0
        %628 = vmatprep.subr.bf16.mxu0 0
        %629 = vmatpush1.bf16.msra.mxu0 0
        %630 = vmatprep.subr.bf16.mxu0 0
        %631 = vmatpush1.bf16.msra.mxu0 0
        %632 = vmatprep.subr.bf16.mxu0 0
        %633 = vmatpush1.bf16.msra.mxu0 0
        %634 = vmatprep.subr.bf16.mxu0 0
        %635 = vmatpush1.bf16.msra.mxu0 0
        %636 = vmatprep.subr.bf16.mxu0 0
        %637 = vmatpush1.bf16.msra.mxu0 0
        %638 = vmatprep.subr.bf16.mxu0 0
        %639 = vmatpush1.bf16.msra.mxu0 0
        %640 = vmatprep.subr.bf16.mxu0 0
        %641 = vmatpush1.bf16.msra.mxu0 0
        %642 = vmatprep.subr.bf16.mxu0 0
        %643 = vmatpush1.bf16.msra.mxu0 0
        %644 = vmatprep.subr.bf16.mxu0 0
        %645 = vmatpush1.bf16.msra.mxu0 0
        %646 = vmatprep.subr.bf16.mxu0 0
        %647 = vmatpush1.bf16.msra.mxu0 0
        %648 = vmatprep.subr.bf16.mxu0 0
        %649 = vmatpush1.bf16.msra.mxu0 0
        %650 = vmatprep.subr.bf16.mxu0 0
        %651 = vmatpush1.bf16.msra.mxu0 0
        %652 = vmatprep.subr.bf16.mxu0 0
        %653 = vmatpush1.bf16.msra.mxu0 0
        %654 = vmatprep.mubr.bf16.mxu0 0
        %655 = vmatmul.mubr.bf16.gmra.mrb[0].mxu0 %v620
        %v656 = vpop.f32.mrb[0].mxu0
        %v657 = vadd.f32 0.0, %v656
        %v658 = vpop.f32.mrb[0].mxu0
        %v659 = vpop.f32.mrb[0].mxu0
        %v660 = vadd.f32 0.0, %v659
        %v661 = vpop.f32.mrb[0].mxu0
        %662 = vdwg.mxu0
        %v665 = vunpack.c.l.b16 %v450
        %v666 = vunpack.c.l.b16 %v451
        %v667 = vpack.c.b16 %v666, %v665
        %v670 = vsel %vm462, %v612, 0
        %672 = vmatprep.subr.bf16.mxu0 0
        %673 = vmatpush1.bf16.msra.mxu0 %v667
        %674 = vmatprep.subr.bf16.mxu0 0
        %675 = vmatpush1.bf16.msra.mxu0 0
        %676 = vmatprep.subr.bf16.mxu0 0
        %677 = vmatpush1.bf16.msra.mxu0 0
        %678 = vmatprep.subr.bf16.mxu0 0
        %679 = vmatpush1.bf16.msra.mxu0 0
        %680 = vmatprep.subr.bf16.mxu0 0
        %681 = vmatpush1.bf16.msra.mxu0 0
        %682 = vmatprep.subr.bf16.mxu0 0
        %683 = vmatpush1.bf16.msra.mxu0 0
        %684 = vmatprep.subr.bf16.mxu0 0
        %685 = vmatpush1.bf16.msra.mxu0 0
        %686 = vmatprep.subr.bf16.mxu0 0
        %687 = vmatpush1.bf16.msra.mxu0 0
        %688 = vmatprep.subr.bf16.mxu0 0
        %689 = vmatpush1.bf16.msra.mxu0 0
        %690 = vmatprep.subr.bf16.mxu0 0
        %691 = vmatpush1.bf16.msra.mxu0 0
        %692 = vmatprep.subr.bf16.mxu0 0
        %693 = vmatpush1.bf16.msra.mxu0 0
        %694 = vmatprep.subr.bf16.mxu0 0
        %695 = vmatpush1.bf16.msra.mxu0 0
        %696 = vmatprep.subr.bf16.mxu0 0
        %697 = vmatpush1.bf16.msra.mxu0 0
        %698 = vmatprep.subr.bf16.mxu0 0
        %699 = vmatpush1.bf16.msra.mxu0 0
        %700 = vmatprep.subr.bf16.mxu0 0
        %701 = vmatpush1.bf16.msra.mxu0 0
        %702 = vmatprep.subr.bf16.mxu0 0
        %703 = vmatpush1.bf16.msra.mxu0 0
        %704 = vmatprep.mubr.bf16.mxu0 0
        %705 = vmatmul.mubr.bf16.gmra.mrb[0].mxu0 %v670
        %v706 = vpop.f32.mrb[0].mxu0
        %v707 = vadd.f32 0.0, %v706
        %v708 = vpop.f32.mrb[0].mxu0
        %v709 = vpop.f32.mrb[0].mxu0
        %v710 = vadd.f32 0.0, %v709
        %v711 = vpop.f32.mrb[0].mxu0
        %712 = vdwg.mxu0
        %v713 = vpack.c.bf16 %v660, %v657
        %714 = vst.msk [vmem:[#allocation2] sm:$0xff] %vm462, %v713
        %v715 = vpack.c.bf16 %v710, %v707
        %717 = vrot.lane.b32.xlu0 %v715, 16
        %v718 = vpop.permute.xlu0 %717
        %vm720 = vcmask 261248
        %721 = vst.msk [vmem:[#allocation2] sm:$0xff] %vm720, %v718
        %v722 = vld [vmem:[#allocation2] sm:$0xff]
        %v723 = vld [vmem:[#allocation11] sm:$0xf]
        %v724 = vld [vmem:[#allocation11 + $0x4] sm:$0xf]
        %v725 = vld [vmem:[#allocation11 + $0x8] sm:$0xf]
        %v726 = vld [vmem:[#allocation11 + $0xc] sm:$0xf]
        %v727 = vld [vmem:[#allocation12] sm:$0x1]
        %v729 = vlaneseq
        %v730 = vshrl.u32 %v729, 7
        %v731 = vsub.s32 0, %v730
        %v732 = vrot.slane %v727, %v731
        %v738 = vunpack.c.l.b16 %v723
        %v739 = vunpack.c.l.b16 %v724
        %v740 = vunpack.c.l.b16 %v725
        %v741 = vunpack.c.l.b16 %v726
        %v742 = vpack.c.b16 %v739, %v738
        %v743 = vpack.c.b16 %v741, %v740
        %vm746 = vcmask 261120
        %v748 = vsel %vm746, %v722, 0
        %750 = vmatprep.subr.bf16.mxu0 0
        %751 = vmatpush1.bf16.msra.mxu0 %v742
        %752 = vmatprep.subr.bf16.mxu0 0
        %753 = vmatpush1.bf16.msra.mxu0 %v743
        %754 = vmatprep.subr.bf16.mxu0 0
        %755 = vmatpush1.bf16.msra.mxu0 0
        %756 = vmatprep.subr.bf16.mxu0 0
        %757 = vmatpush1.bf16.msra.mxu0 0
        %758 = vmatprep.subr.bf16.mxu0 0
        %759 = vmatpush1.bf16.msra.mxu0 0
        %760 = vmatprep.subr.bf16.mxu0 0
        %761 = vmatpush1.bf16.msra.mxu0 0
        %762 = vmatprep.subr.bf16.mxu0 0
        %763 = vmatpush1.bf16.msra.mxu0 0
        %764 = vmatprep.subr.bf16.mxu0 0
        %765 = vmatpush1.bf16.msra.mxu0 0
        %766 = vmatprep.subr.bf16.mxu0 0
        %767 = vmatpush1.bf16.msra.mxu0 0
        %768 = vmatprep.subr.bf16.mxu0 0
        %769 = vmatpush1.bf16.msra.mxu0 0
        %770 = vmatprep.subr.bf16.mxu0 0
        %771 = vmatpush1.bf16.msra.mxu0 0
        %772 = vmatprep.subr.bf16.mxu0 0
        %773 = vmatpush1.bf16.msra.mxu0 0
        %774 = vmatprep.subr.bf16.mxu0 0
        %775 = vmatpush1.bf16.msra.mxu0 0
        %776 = vmatprep.subr.bf16.mxu0 0
        %777 = vmatpush1.bf16.msra.mxu0 0
        %778 = vmatprep.subr.bf16.mxu0 0
        %779 = vmatpush1.bf16.msra.mxu0 0
        %780 = vmatprep.subr.bf16.mxu0 0
        %781 = vmatpush1.bf16.msra.mxu0 0
        %782 = vmatprep.mubr.bf16.mxu0 0
        %783 = vmatmul.mubr.bf16.gmra.mrb[0].mxu0 %v748
        %v784 = vpop.f32.mrb[0].mxu0
        %v785 = vadd.f32 %v732, %v784
        %v786 = vpop.f32.mrb[0].mxu0
        %v787 = vpop.f32.mrb[0].mxu0
        %v788 = vadd.f32 %v732, %v787
        %v789 = vpop.f32.mrb[0].mxu0
        %790 = vdwg.mxu0
        %v791 = vld [vmem:[%s384] sm:$0xff]
        %v792 = vld [vmem:[%s384 + $0x8] sm:$0xff]
        %v793 = vadd.f32 %v785, %v791
        %v794 = vadd.f32 %v788, %v792
        %795 = vst.msk [vmem:[%s435] sm:$0xff] %vm746, %v793
        %796 = vst.msk [vmem:[%s435 + $0x8] sm:$0xff] %vm746, %v794
        %s797 = sand.u32 %s202, 1
        %s798 = scalar_lea.sflag [#allocation5], %s797
        %s799 = sand.u32 %s202, 1
        %s800 = smul.addr %s799, 16
        %s801 = scalar_lea.vmem [#allocation14], %s800
        // Predicated region
        $region69: #{setr_forward.13} parent=43 // pred_check
          %p802 = pneg %p212
        $region70: #{setr_forward.13} parent=43 // pred_check_branch
          %804 = sbr.rel (%p802) target = $region72
        $region71: #{setr_forward.13} parent=43 // pred_region
          %s805 = smul.u32 2, %s35
          %s807 = ssub.s32 256, 256
          %808 = vsyncadd %s798, %s807
          %s809 = smul.addr %s34, 2
          %s810 = sadd.s32 %s805, %s809
          %s811 = smul.addr %s810, 128
          %s812 = scalar_lea.hbm %s6, %s811
          %s813 = sshll.u32 %s801, 4
          %s814 = int_to_ptr.vmem [resolvable:$true] %s813
          %819 = dma.vmem_to_hbm [thread:$0]  %s814, 256, %s812, %s798, 128, 128, 8
        $region72: #{setr_forward.13} parent=43 // pred_fallthru
          _
      $region44: #{setr_forward.13} parent=5 // pred_fallthru
        _
      %p820 = scmp.le.s32.totalorder 2, %s25
      // Predicated region
      $region73: #{setr_forward.13} parent=5 // pred_check
        %p821 = pneg %p820
      $region74: #{setr_forward.13} parent=5 // pred_check_branch
        %823 = sbr.rel (%p821) target = $region76
      $region75: #{setr_forward.13} parent=5 // pred_region
        %s824 = ssub.s32 %s25, 2
        // Predicated region
        $region77: #{setr_forward.13} parent=75 // pred_check
          %p825 = pneg %p218
        $region78: #{setr_forward.13} parent=75 // pred_check_branch
          %827 = sbr.rel (%p825) target = $region80
        $region79: #{setr_forward.13} parent=75 // pred_region
          %s828 = sand.u32 %s203, 1
          %s829 = scalar_lea.sflag [#allocation5], %s828
          %s830 = sand.u32 %s203, 1
          %s831 = smul.addr %s830, 16
          %s832 = scalar_lea.vmem [#allocation14], %s831
          %833 = dma.done %s829, 256
        $region80: #{setr_forward.13} parent=75 // pred_fallthru
          _
      $region76: #{setr_forward.13} parent=5 // pred_fallthru
        _
    $region6: #{setr_forward.13} parent=1 // loop_footer
      %s29 = sadd.s32 1, %s25
    $region7: #{setr_forward.13} parent=1 // loop_footer_branch
      %24 = sbr.rel target = $region3
    $region8: #{setr_forward.13} parent=1 // loop_exit
      _
    %834 = vsyncpa [#allocation4], 1
    %s835 = scalar_lea.sflag [#allocation4], 1
    %836 = vsyncpa %s835, 1
    %837 = vsyncpa [#allocation7], 1
    %s838 = scalar_lea.sflag [#allocation7], 1
    %839 = vsyncpa %s838, 1
    %840 = vsyncpa [#allocation10], 1
    %s841 = scalar_lea.sflag [#allocation10], 1
    %842 = vsyncpa %s841, 1
    %843 = vsyncpa [#allocation13], 1
    %844 = vsyncpa [#allocation5], 1
    %s845 = scalar_lea.sflag [#allocation5], 1
    %846 = vsyncpa %s845, 1

// kernel: setr_forward.18
$region0: #{setr_forward.18}
  #allocation0 [shape = 'u32[]', space=smem, size = 0x4, offset = 0x4, fixed_abs, tag = 'smem constant byte address 0x4 - core index']
  #allocation1 [shape = 'u32[144,128]{1,0:T(1,128)}', space=vmem, size = 0x12000, scoped, tag = 'internal scratch']
  %s0 = inlined_call_operand.hbm [shape: f32[32,32], index: 0, kind: input, shape index: {}]
  %s1 = inlined_call_operand.hbm [shape: bf16[32,256], index: 1, kind: input, shape index: {}]
  %s2 = inlined_call_operand.hbm [shape: f32[1,256], index: 2, kind: input, shape index: {}]
  %s3 = inlined_call_operand.hbm [shape: bf16[32,256], index: 3, kind: output, shape index: {0}]
  %s4 = inlined_call_operand.hbm [shape: f32[1,1,256], index: 4, kind: output, shape index: {1}]
  %s5 = inlined_call_operand.hbm [shape: f32[1,1,256], index: 5, kind: output, shape index: {2}]
  %6 = xla_tuple %s3, %s4, %s5
  %s7 = sld [smem:[#allocation0]]
  $region50: #{setr_forward.18} parent=0
    _
  %s9 = ssub.s32 1, %s7
  %s10 = scalar_select 0, %s9, %s7
  $region1: #{setr_forward.18} parent=0
    #allocation2 [shape = 'u8[16384]{0}', space=vmem, size = 0x4000, scoped, tag = 'input window, operand 0, single buffered']
    #allocation3 [shape = 's32[1]{0}', space=sflag, size = 0x4, scoped, tag = 'scoped memory for setr_forward.18']
    #allocation4 [shape = 's32[1]{0}', space=sflag, size = 0x4, scoped, tag = 'scoped memory for setr_forward.18']
    #allocation5 [shape = 'u8[16384]{0}', space=vmem, size = 0x4000, scoped, tag = 'input window, operand 1, single buffered']
    #allocation6 [shape = 's32[1]{0}', space=sflag, size = 0x4, scoped, tag = 'scoped memory for setr_forward.18']
    #allocation7 [shape = 'u8[1024]{0}', space=vmem, size = 0x400, scoped, tag = 'input window, operand 2, single buffered']
    #allocation8 [shape = 'u8[16384]{0}', space=vmem, size = 0x4000, scoped, tag = 'output window, operand 0, single buffered']
    #allocation9 [shape = 'u8[1024]{0}', space=vmem, size = 0x400, scoped, tag = 'output window, operand 1, single buffered']
    #allocation10 [shape = 's32[1]{0}', space=sflag, size = 0x4, scoped, tag = 'scoped memory for setr_forward.18']
    #allocation11 [shape = 'u8[1024]{0}', space=vmem, size = 0x400, scoped, tag = 'output window, operand 2, single buffered']
    %11 = vsyncpa [#allocation3], 0
    %12 = vsyncpa [#allocation6], 0
    %13 = vsyncpa [#allocation4], 0
    %14 = vsyncpa [#allocation10], 0
    // Predicated region
    $region2: #{setr_forward.18} parent=1 // pred_check
      _
    $region3: #{setr_forward.18} parent=1 // pred_check_branch
      %16 = sbr.rel (0) target = $region5
    $region4: #{setr_forward.18} parent=1 // pred_region
      %s18 = ssub.s32 512, 512
      %19 = vsyncadd [#allocation3], %s18
      %s20 = sshll.u32 [#allocation2], 4
      %s21 = int_to_ptr.vmem [resolvable:$true] %s20
      %26 = dma.hbm_to_vmem [thread:$0]  %s0, 512, %s21, [#allocation3], 128, 128, 8
    $region5: #{setr_forward.18} parent=1 // pred_fallthru
      _
    // Predicated region
    $region6: #{setr_forward.18} parent=1 // pred_check
      _
    $region7: #{setr_forward.18} parent=1 // pred_check_branch
      %28 = sbr.rel (0) target = $region9
    $region8: #{setr_forward.18} parent=1 // pred_region
      %s30 = ssub.s32 512, 512
      %31 = vsyncadd [#allocation6], %s30
      %s32 = sshll.u32 [#allocation5], 4
      %s33 = int_to_ptr.vmem [resolvable:$true] %s32
      %38 = dma.hbm_to_vmem [thread:$0]  %s1, 512, %s33, [#allocation6], 128, 128, 8
    $region9: #{setr_forward.18} parent=1 // pred_fallthru
      _
    // Predicated region
    $region10: #{setr_forward.18} parent=1 // pred_check
      _
    $region11: #{setr_forward.18} parent=1 // pred_check_branch
      %40 = sbr.rel (0) target = $region13
    $region12: #{setr_forward.18} parent=1 // pred_region
      %s42 = ssub.s32 32, 32
      %43 = vsyncadd [#allocation6], %s42
      %s45 = sshll.u32 [#allocation7], 4
      %s46 = int_to_ptr.vmem [resolvable:$true] %s45
      %48 = dma.hbm_to_vmem [thread:$0]  %s2, 32, %s46, [#allocation6]
    $region13: #{setr_forward.18} parent=1 // pred_fallthru
      _
    // Predicated region
    $region14: #{setr_forward.18} parent=1 // pred_check
      _
    $region15: #{setr_forward.18} parent=1 // pred_check_branch
      %50 = sbr.rel (0) target = $region17
    $region16: #{setr_forward.18} parent=1 // pred_region
      %51 = dma.done [#allocation3], 512
    $region17: #{setr_forward.18} parent=1 // pred_fallthru
      _
    // Predicated region
    $region18: #{setr_forward.18} parent=1 // pred_check
      _
    $region19: #{setr_forward.18} parent=1 // pred_check_branch
      %53 = sbr.rel (0) target = $region21
    $region20: #{setr_forward.18} parent=1 // pred_region
      %54 = dma.done [#allocation6], 512
    $region21: #{setr_forward.18} parent=1 // pred_fallthru
      _
    // Predicated region
    $region22: #{setr_forward.18} parent=1 // pred_check
      _
    $region23: #{setr_forward.18} parent=1 // pred_check_branch
      %56 = sbr.rel (0) target = $region25
    $region24: #{setr_forward.18} parent=1 // pred_region
      %57 = dma.done [#allocation6], 32
    $region25: #{setr_forward.18} parent=1 // pred_fallthru
      _
    %v59 = vld [vmem:[#allocation2] sm:$0xff]
    %v60 = vld [vmem:[#allocation2 + $0x8] sm:$0xff]
    %v61 = vld [vmem:[#allocation2 + $0x10] sm:$0xff]
    %v62 = vld [vmem:[#allocation2 + $0x18] sm:$0xff]
    %v63 = vpack.c.bf16 %v60, %v59
    %v64 = vpack.c.bf16 %v62, %v61
    %v65 = vld [vmem:[#allocation5] sm:$0xff]
    %v66 = vld [vmem:[#allocation5 + $0x8] sm:$0xff]
    %v67 = vld [vmem:[#allocation5 + $0x10] sm:$0xff]
    %v68 = vld [vmem:[#allocation5 + $0x18] sm:$0xff]
    %v69 = vld [vmem:[#allocation7] sm:$0x3]
    %v71 = vlaneseq
    %v72 = vshrl.u32 %v71, 7
    %v73 = vsub.s32 0, %v72
    %v74 = vrot.slane %v69, %v73
    %v75 = vlaneseq
    %v76 = vshrl.u32 %v75, 7
    %v77 = vsub.s32 1, %v76
    %v78 = vrot.slane %v69, %v77
    %v85 = vunpack.c.l.b16 %v65
    %v86 = vunpack.c.h.b16 %v65
    %v87 = vunpack.c.l.b16 %v66
    %v88 = vunpack.c.h.b16 %v66
    %v89 = vunpack.c.l.b16 %v67
    %v90 = vunpack.c.h.b16 %v67
    %v91 = vunpack.c.l.b16 %v68
    %v92 = vunpack.c.h.b16 %v68
    %v93 = vpack.c.b16 %v87, %v85
    %v94 = vpack.c.b16 %v88, %v86
    %v95 = vpack.c.b16 %v91, %v89
    %v96 = vpack.c.b16 %v92, %v90
    %vm101 = vcmask 261120
    %v103 = vsel %vm101, %v63, 0
    %v106 = vsel %vm101, %v64, 0
    %108 = vmatprep.subr.bf16.mxu0 %v94
    %109 = vmatpush1.bf16.msra.mxu0 %v93
    %110 = vmatprep.subr.bf16.mxu0 %v96
    %111 = vmatpush1.bf16.msra.mxu0 %v95
    %112 = vmatprep.subr.bf16.mxu0 0
    %113 = vmatpush1.bf16.msra.mxu0 0
    %114 = vmatprep.subr.bf16.mxu0 0
    %115 = vmatpush1.bf16.msra.mxu0 0
    %116 = vmatprep.subr.bf16.mxu0 0
    %117 = vmatpush1.bf16.msra.mxu0 0
    %118 = vmatprep.subr.bf16.mxu0 0
    %119 = vmatpush1.bf16.msra.mxu0 0
    %120 = vmatprep.subr.bf16.mxu0 0
    %121 = vmatpush1.bf16.msra.mxu0 0
    %122 = vmatprep.subr.bf16.mxu0 0
    %123 = vmatpush1.bf16.msra.mxu0 0
    %124 = vmatprep.subr.bf16.mxu0 0
    %125 = vmatpush1.bf16.msra.mxu0 0
    %126 = vmatprep.subr.bf16.mxu0 0
    %127 = vmatpush1.bf16.msra.mxu0 0
    %128 = vmatprep.subr.bf16.mxu0 0
    %129 = vmatpush1.bf16.msra.mxu0 0
    %130 = vmatprep.subr.bf16.mxu0 0
    %131 = vmatpush1.bf16.msra.mxu0 0
    %132 = vmatprep.subr.bf16.mxu0 0
    %133 = vmatpush1.bf16.msra.mxu0 0
    %134 = vmatprep.subr.bf16.mxu0 0
    %135 = vmatpush1.bf16.msra.mxu0 0
    %136 = vmatprep.subr.bf16.mxu0 0
    %137 = vmatpush1.bf16.msra.mxu0 0
    %138 = vmatprep.subr.bf16.mxu0 0
    %139 = vmatpush1.bf16.msra.mxu0 0
    %140 = vmatprep.mubr.bf16.mxu0 0
    %141 = vmatmul.mubr.bf16.gmra.mrb[0].mxu0 %v103
    %v142 = vpop.f32.mrb[0].mxu0
    %v143 = vadd.f32 %v74, %v142
    %v144 = vpop.f32.mrb[0].mxu0
    %v145 = vadd.f32 %v78, %v144
    %v146 = vpop.f32.mrb[0].mxu0
    %v147 = vadd.f32 %v74, %v146
    %v148 = vpop.f32.mrb[0].mxu0
    %v149 = vadd.f32 %v78, %v148
    %150 = vmatprep.mubr.bf16.mxu0 0
    %151 = vmatmul.mubr.bf16.gmra.mrb[0].mxu0 %v106
    %v152 = vpop.f32.mrb[0].mxu0
    %v153 = vadd.f32 %v74, %v152
    %v154 = vpop.f32.mrb[0].mxu0
    %v155 = vadd.f32 %v78, %v154
    %v156 = vpop.f32.mrb[0].mxu0
    %v157 = vadd.f32 %v74, %v156
    %v158 = vpop.f32.mrb[0].mxu0
    %v159 = vadd.f32 %v78, %v158
    %160 = vdwg.mxu0
    %v161 = vpack.c.bf16 %v147, %v143
    %v162 = vpack.c.bf16 %v149, %v145
    %v163 = vpack.c.bf16 %v157, %v153
    %v164 = vpack.c.bf16 %v159, %v155
    %v169 = vunpack.c.l.b16 %v161
    %v170 = vunpack.c.l.b16 %v162
    %v171 = vunpack.c.h.b16 %v161
    %v172 = vunpack.c.h.b16 %v162
    %v173 = vunpack.c.l.b16 %v163
    %v174 = vunpack.c.l.b16 %v164
    %v175 = vunpack.c.h.b16 %v163
    %v176 = vunpack.c.h.b16 %v164
    %v177 = vpack.c.b16 %v170, %v169
    %v178 = vpack.c.b16 %v172, %v171
    %v179 = vpack.c.b16 %v174, %v173
    %v180 = vpack.c.b16 %v176, %v175
    %185 = vst [vmem:[#allocation8] sm:$0xff] %v177
    %186 = vst [vmem:[#allocation8 + $0x8] sm:$0xff] %v178
    %187 = vst [vmem:[#allocation8 + $0x10] sm:$0xff] %v179
    %188 = vst [vmem:[#allocation8 + $0x18] sm:$0xff] %v180
    %v189 = vadd.f32 %v143, %v147
    %v190 = vadd.f32 %v189, %v153
    %v191 = vadd.f32 %v190, %v157
    %v192 = vrot.slane %v191, 4
    %v193 = vadd.f32 %v191, %v192
    %v194 = vrot.slane %v193, 2
    %v195 = vadd.f32 %v193, %v194
    %v196 = vrot.slane %v195, 1
    %v197 = vadd.f32 %v195, %v196
    %v198 = vadd.f32 %v145, %v149
    %v199 = vadd.f32 %v198, %v155
    %v200 = vadd.f32 %v199, %v159
    %v201 = vrot.slane %v200, 4
    %v202 = vadd.f32 %v200, %v201
    %v203 = vrot.slane %v202, 2
    %v204 = vadd.f32 %v202, %v203
    %v205 = vrot.slane %v204, 1
    %v206 = vadd.f32 %v204, %v205
    %v209 = vcombine.low %v197, %v206
    %v211 = vunpack.c.l.s4 1966171168
    %v212 = vunpack.c.0.s8 %v211
    %v213 = vlaneseq
    %v214 = vshrl.u32 %v213, 7
    %v215 = vsub.s32 %v212, %v214
    %v216 = vrot.slane %v209, %v215
    %v218 = vunpack.c.l.s4 1966171168
    %v219 = vunpack.c.0.s8 %v218
    %v220 = vlaneseq
    %v221 = vshrl.u32 %v220, 7
    %v222 = vsub.s32 %v219, %v221
    %v223 = vrot.slane %v216, %v222
    %v225 = vlaneseq
    %vm226 = vcmp.ge.s32.totalorder %v225, 0
    %vm227 = vcmp.lt.s32.totalorder %v225, 256
    %vm228 = vmand %vm226, %vm227
    %229 = vst.msk [vmem:[#allocation9] sm:$0x3] %vm228, %v223
    %v230 = vmul.f32 %v143, %v143
    %v231 = vmul.f32 %v145, %v145
    %v232 = vmul.f32 %v147, %v147
    %v233 = vmul.f32 %v149, %v149
    %v234 = vmul.f32 %v153, %v153
    %v235 = vmul.f32 %v155, %v155
    %v236 = vmul.f32 %v157, %v157
    %v237 = vmul.f32 %v159, %v159
    %v238 = vadd.f32 %v230, %v232
    %v239 = vadd.f32 %v238, %v234
    %v240 = vadd.f32 %v239, %v236
    %v241 = vrot.slane %v240, 4
    %v242 = vadd.f32 %v240, %v241
    %v243 = vrot.slane %v242, 2
    %v244 = vadd.f32 %v242, %v243
    %v245 = vrot.slane %v244, 1
    %v246 = vadd.f32 %v244, %v245
    %v247 = vadd.f32 %v231, %v233
    %v248 = vadd.f32 %v247, %v235
    %v249 = vadd.f32 %v248, %v237
    %v250 = vrot.slane %v249, 4
    %v251 = vadd.f32 %v249, %v250
    %v252 = vrot.slane %v251, 2
    %v253 = vadd.f32 %v251, %v252
    %v254 = vrot.slane %v253, 1
    %v255 = vadd.f32 %v253, %v254
    %v258 = vcombine.low %v246, %v255
    %v260 = vunpack.c.l.s4 1966171168
    %v261 = vunpack.c.0.s8 %v260
    %v262 = vlaneseq
    %v263 = vshrl.u32 %v262, 7
    %v264 = vsub.s32 %v261, %v263
    %v265 = vrot.slane %v258, %v264
    %v267 = vunpack.c.l.s4 1966171168
    %v268 = vunpack.c.0.s8 %v267
    %v269 = vlaneseq
    %v270 = vshrl.u32 %v269, 7
    %v271 = vsub.s32 %v268, %v270
    %v272 = vrot.slane %v265, %v271
    %274 = vst.msk [vmem:[#allocation11] sm:$0x3] %vm228, %v272
    // Predicated region
    $region26: #{setr_forward.18} parent=1 // pred_check
      _
    $region27: #{setr_forward.18} parent=1 // pred_check_branch
      %276 = sbr.rel (0) target = $region29
    $region28: #{setr_forward.18} parent=1 // pred_region
      %s278 = ssub.s32 512, 512
      %279 = vsyncadd [#allocation4], %s278
      %s280 = sshll.u32 [#allocation8], 4
      %s281 = int_to_ptr.vmem [resolvable:$true] %s280
      %286 = dma.vmem_to_hbm [thread:$0]  %s281, 512, %s3, [#allocation4], 128, 128, 8
    $region29: #{setr_forward.18} parent=1 // pred_fallthru
      _
    // Predicated region
    $region30: #{setr_forward.18} parent=1 // pred_check
      _
    $region31: #{setr_forward.18} parent=1 // pred_check_branch
      %288 = sbr.rel (0) target = $region33
    $region32: #{setr_forward.18} parent=1 // pred_region
      %s290 = ssub.s32 32, 32
      %291 = vsyncadd [#allocation10], %s290
      %s293 = sshll.u32 [#allocation9], 4
      %s294 = int_to_ptr.vmem [resolvable:$true] %s293
      %296 = dma.vmem_to_hbm [thread:$0]  %s294, 32, %s4, [#allocation10]
    $region33: #{setr_forward.18} parent=1 // pred_fallthru
      _
    // Predicated region
    $region34: #{setr_forward.18} parent=1 // pred_check
      _
    $region35: #{setr_forward.18} parent=1 // pred_check_branch
      %298 = sbr.rel (0) target = $region37
    $region36: #{setr_forward.18} parent=1 // pred_region
      %s300 = ssub.s32 32, 32
      %301 = vsyncadd [#allocation10], %s300
      %s303 = sshll.u32 [#allocation11], 4
      %s304 = int_to_ptr.vmem [resolvable:$true] %s303
      %306 = dma.vmem_to_hbm [thread:$0]  %s304, 32, %s5, [#allocation10]
    $region37: #{setr_forward.18} parent=1 // pred_fallthru
      _
    // Predicated region
    $region38: #{setr_forward.18} parent=1 // pred_check
      _
    $region39: #{setr_forward.18} parent=1 // pred_check_branch
      %308 = sbr.rel (0) target = $region41
    $region40: #{setr_forward.18} parent=1 // pred_region
      %309 = dma.done [#allocation4], 512
    $region41: #{setr_forward.18} parent=1 // pred_fallthru
      _
    // Predicated region
    $region42: #{setr_forward.18} parent=1 // pred_check
      _
    $region43: #{setr_forward.18} parent=1 // pred_check_branch
      %311 = sbr.rel (0) target = $region45
    $region44: #{setr_forward.18} parent=1 // pred_region
      %312 = dma.done [#allocation10], 32
    $region45: #{setr_forward.18} parent=1 // pred_fallthru
      _
    // Predicated region
    $region46: #{setr_forward.18} parent=1 // pred_check
      _
    $region47: #{setr_forward.18} parent=1 // pred_check_branch
      %314 = sbr.rel (0) target = $region49
    $region48: #{setr_forward.18} parent=1 // pred_region
      %315 = dma.done [#allocation10], 32
    $region49: #{setr_forward.18} parent=1 // pred_fallthru
      _
    %316 = vsyncpa [#allocation3], 1
    %317 = vsyncpa [#allocation6], 1
    %318 = vsyncpa [#allocation4], 1
    %319 = vsyncpa [#allocation10], 1

// kernel: setr_forward.20
$region0: #{setr_forward.20}
  #allocation0 [shape = 'u32[]', space=smem, size = 0x4, offset = 0x4, fixed_abs, tag = 'smem constant byte address 0x4 - core index']
  #allocation1 [shape = 'u32[144,128]{1,0:T(1,128)}', space=vmem, size = 0x12000, scoped, tag = 'internal scratch']
  %s0 = inlined_call_operand.hbm [shape: f32[2,4,4,128], index: 0, kind: input, shape index: {}]
  %s1 = inlined_call_operand.hbm [shape: bf16[16,4], index: 1, kind: input, shape index: {}]
  %s2 = inlined_call_operand.hbm [shape: bf16[2,4,16,128], index: 2, kind: output, shape index: {}]
  %s3 = sld [smem:[#allocation0]]
  $region49: #{setr_forward.20} parent=0
    _
  %s5 = ssub.s32 1, %s3
  %s6 = scalar_select 0, %s5, %s3
  $region1: #{setr_forward.20} parent=0
    #allocation2 [shape = 'u8[16384]{0}', space=vmem, size = 0x4000, scoped, tag = 'input window, operand 0']
    #allocation3 [shape = 's32[2]{0}', space=sflag, size = 0x8, scoped, tag = 'scoped memory for setr_forward.20']
    #allocation4 [shape = 's32[2]{0}', space=sflag, size = 0x8, scoped, tag = 'scoped memory for setr_forward.20']
    #allocation5 [shape = 'u8[4096]{0}', space=vmem, size = 0x1000, scoped, tag = 'input window, operand 1, single buffered']
    #allocation6 [shape = 's32[1]{0}', space=sflag, size = 0x4, scoped, tag = 'scoped memory for setr_forward.20']
    #allocation7 [shape = 'u8[32768]{0}', space=vmem, size = 0x8000, scoped, tag = 'output window, operand 0']
    %7 = vsyncpa [#allocation3], 0
    %s8 = scalar_lea.sflag [#allocation3], 1
    %9 = vsyncpa %s8, 0
    %10 = vsyncpa [#allocation6], 0
    %11 = vsyncpa [#allocation4], 0
    %s12 = scalar_lea.sflag [#allocation4], 1
    %13 = vsyncpa %s12, 0
    loop: start=0, step=1, limit=4
    $region2: #{setr_forward.20} parent=1 // loop_pre_header
      _
    $region3: #{setr_forward.20} parent=1 // loop_header
      %s15 = sphi 0, %s19
      %p16 = scmp.ge.s32.totalorder %s15, 4
      %s25 = sphi 0, %s27
      %s28 = sphi 0, %s25
      %s29 = sphi 0, %s28
      %s45 = sphi 0, %s29
      %s49 = sphi 0, %s49
      %s51 = sphi 0, %s49
      %s52 = sphi 0, %s51
      %s66 = sphi 0, %s52
      %s72 = sphi 0, %s74
      %s75 = sphi 0, %s72
      %s76 = sphi 0, %s75
      %s92 = sphi 0, %s76
    $region4: #{setr_forward.20} parent=1 // loop_header_branch
      %18 = sbr.rel (%p16) target = $region8
    $region5: #{setr_forward.20} parent=1 // loop_body
      %s20 = ssub.s32 %s15, 1
      %s21 = ssub.s32 %s15, 2
      %s22 = sadd.s32 %s15, 1
      %s23 = ssub.s32 %s15, %s22
      %p24 = scmp.eq.s32.totalorder %s23, 0
      %s26 = sadd.s32 %s25, 1
      %s27 = scalar_select %p24, %s25, %s26
      %p30 = pneg %p24
      %p31 = scmp.eq.s32.totalorder %s15, 1
      %p32 = por %p30, %p31
      %p33 = scmp.ne.s32.totalorder %s25, %s28
      %p34 = scmp.eq.s32.totalorder %s15, 0
      %p35 = por %p33, %p34
      %p36 = scmp.ne.s32.totalorder %s25, %s28
      %p37 = scmp.eq.s32.totalorder %s20, 1
      %p38 = por %p36, %p37
      %p39 = scmp.ne.s32.totalorder %s28, %s29
      %p40 = scmp.eq.s32.totalorder %s20, 0
      %p41 = por %p39, %p40
      %p42 = scmp.ne.s32.totalorder %s28, %s29
      %p43 = scmp.eq.s32.totalorder %s21, 1
      %p44 = por %p42, %p43
      %p46 = scmp.ne.s32.totalorder %s29, %s45
      %p47 = scmp.eq.s32.totalorder %s21, 0
      %p48 = por %p46, %p47
      %s50 = sadd.s32 %s49, 1
      %p53 = scmp.eq.s32.totalorder %s15, 1
      %p54 = scmp.ne.s32.totalorder %s49, %s51
      %p55 = scmp.eq.s32.totalorder %s15, 0
      %p56 = por %p54, %p55
      %p57 = scmp.ne.s32.totalorder %s49, %s51
      %p58 = scmp.eq.s32.totalorder %s20, 1
      %p59 = por %p57, %p58
      %p60 = scmp.ne.s32.totalorder %s51, %s52
      %p61 = scmp.eq.s32.totalorder %s20, 0
      %p62 = por %p60, %p61
      %p63 = scmp.ne.s32.totalorder %s51, %s52
      %p64 = scmp.eq.s32.totalorder %s21, 1
      %p65 = por %p63, %p64
      %p67 = scmp.ne.s32.totalorder %s52, %s66
      %p68 = scmp.eq.s32.totalorder %s21, 0
      %p69 = por %p67, %p68
      %s70 = ssub.s32 %s15, %s22
      %p71 = scmp.eq.s32.totalorder %s70, 0
      %s73 = sadd.s32 %s72, 1
      %s74 = scalar_select %p71, %s72, %s73
      %p77 = pneg %p71
      %p78 = scmp.eq.s32.totalorder %s15, 1
      %p79 = por %p77, %p78
      %p80 = scmp.ne.s32.totalorder %s72, %s75
      %p81 = scmp.eq.s32.totalorder %s15, 0
      %p82 = por %p80, %p81
      %p83 = scmp.ne.s32.totalorder %s72, %s75
      %p84 = scmp.eq.s32.totalorder %s20, 1
      %p85 = por %p83, %p84
      %p86 = scmp.ne.s32.totalorder %s75, %s76
      %p87 = scmp.eq.s32.totalorder %s20, 0
      %p88 = por %p86, %p87
      %p89 = scmp.ne.s32.totalorder %s75, %s76
      %p90 = scmp.eq.s32.totalorder %s21, 1
      %p91 = por %p89, %p90
      %p93 = scmp.ne.s32.totalorder %s76, %s92
      %p94 = scmp.eq.s32.totalorder %s21, 0
      %p95 = por %p93, %p94
      %p96 = scmp.le.s32.totalorder 1, %s15
      %p97 = scmp.lt.s32.totalorder %s15, 3
      %p98 = pnand %p96, %p97
      %p99 = pneg %p98
      // Predicated region
      $region9: #{setr_forward.20} parent=5 // pred_check
        _
      $region10: #{setr_forward.20} parent=5 // pred_check_branch
        %101 = sbr.rel (%p98) target = $region12
      $region11: #{setr_forward.20} parent=5 // pred_region
        %s102 = ssub.s32 %s15, 1
        // Predicated region
        $region13: #{setr_forward.20} parent=11 // pred_check
          %p103 = pneg %p62
        $region14: #{setr_forward.20} parent=11 // pred_check_branch
          %105 = sbr.rel (%p103) target = $region16
        $region15: #{setr_forward.20} parent=11 // pred_region
          %s107 = ssub.s32 128, 128
          %108 = vsyncadd [#allocation6], %s107
          %s109 = sshll.u32 [#allocation5], 4
          %s110 = int_to_ptr.vmem [resolvable:$true] %s109
          %115 = dma.hbm_to_vmem [thread:$0]  %s1, 128, %s110, [#allocation6], 64, 64, 4
        $region16: #{setr_forward.20} parent=11 // pred_fallthru
          _
      $region12: #{setr_forward.20} parent=5 // pred_fallthru
        _
      %p116 = scmp.lt.s32.totalorder %s15, 2
      // Predicated region
      $region17: #{setr_forward.20} parent=5 // pred_check
        %p117 = pneg %p116
      $region18: #{setr_forward.20} parent=5 // pred_check_branch
        %119 = sbr.rel (%p117) target = $region20
      $region19: #{setr_forward.20} parent=5 // pred_region
        // Predicated region
        $region21: #{setr_forward.20} parent=19 // pred_check
          %p120 = pneg %p35
        $region22: #{setr_forward.20} parent=19 // pred_check_branch
          %122 = sbr.rel (%p120) target = $region24
        $region23: #{setr_forward.20} parent=19 // pred_region
          %s123 = sand.u32 %s25, 1
          %s124 = scalar_lea.sflag [#allocation3], %s123
          %s125 = sand.u32 %s25, 1
          %s126 = smul.addr %s125, 16
          %s127 = scalar_lea.vmem [#allocation2], %s126
          %s129 = ssub.s32 256, 256
          %130 = vsyncadd %s124, %s129
          %s131 = smul.addr %s15, 4
          %s132 = smul.addr %s131, 64
          %s133 = scalar_lea.hbm %s0, %s132
          %s134 = sshll.u32 %s127, 4
          %s135 = int_to_ptr.vmem [resolvable:$true] %s134
          %140 = dma.hbm_to_vmem [thread:$0]  %s133, 256, %s135, %s124, 64, 64, 4
        $region24: #{setr_forward.20} parent=19 // pred_fallthru
          _
      $region20: #{setr_forward.20} parent=5 // pred_fallthru
        _
      %p141 = scmp.le.s32.totalorder 1, %s15
      %p142 = scmp.lt.s32.totalorder %s15, 3
      %p143 = pnand %p141, %p142
      %p144 = pneg %p143
      // Predicated region
      $region25: #{setr_forward.20} parent=5 // pred_check
        _
      $region26: #{setr_forward.20} parent=5 // pred_check_branch
        %146 = sbr.rel (%p143) target = $region28
      $region27: #{setr_forward.20} parent=5 // pred_region
        %s147 = ssub.s32 %s15, 1
        %s148 = sand.u32 %s28, 1
        %s149 = scalar_lea.sflag [#allocation3], %s148
        %s150 = sand.u32 %s28, 1
        %s151 = smul.addr %s150, 16
        %s152 = scalar_lea.vmem [#allocation2], %s151
        // Predicated region
        $region29: #{setr_forward.20} parent=27 // pred_check
          %p153 = pneg %p41
        $region30: #{setr_forward.20} parent=27 // pred_check_branch
          %155 = sbr.rel (%p153) target = $region32
        $region31: #{setr_forward.20} parent=27 // pred_region
          %156 = dma.done %s149, 256
        $region32: #{setr_forward.20} parent=27 // pred_fallthru
          _
        // Predicated region
        $region33: #{setr_forward.20} parent=27 // pred_check
          %p157 = pneg %p62
        $region34: #{setr_forward.20} parent=27 // pred_check_branch
          %159 = sbr.rel (%p157) target = $region36
        $region35: #{setr_forward.20} parent=27 // pred_region
          %160 = dma.done [#allocation6], 128
        $region36: #{setr_forward.20} parent=27 // pred_fallthru
          _
        %s161 = sand.u32 %s28, 1
        %s162 = scalar_lea.sflag [#allocation3], %s161
        %s163 = sand.u32 %s28, 1
        %s164 = smul.addr %s163, 16
        %s165 = scalar_lea.vmem [#allocation2], %s164
        %p166 = pneg %p41
        %p167 = pneg %p38
        %p168 = pneg %p62
        %p169 = pneg %p59
        %p170 = pneg %p88
        %p171 = pneg %p85
        %s172 = sand.u32 %s75, 1
        %s173 = scalar_lea.sflag [#allocation4], %s172
        %s174 = sand.u32 %s75, 1
        %s175 = smul.addr %s174, 32
        %s176 = scalar_lea.vmem [#allocation7], %s175
        %v178 = vld [vmem:[%s152] sm:$0xf]
        %v179 = vld [vmem:[%s152 + $0x4] sm:$0xf]
        %v180 = vld [vmem:[%s152 + $0x8] sm:$0xf]
        %v181 = vld [vmem:[%s152 + $0xc] sm:$0xf]
        %v182 = vpack.c.bf16 %v178, %v178
        %v183 = vpack.c.bf16 %v179, %v179
        %v184 = vpack.c.bf16 %v180, %v180
        %v185 = vpack.c.bf16 %v181, %v181
        %v186 = vld [vmem:[#allocation5] sm:$0xf]
        %v187 = vld [vmem:[#allocation5 + $0x4] sm:$0xf]
        %v190 = vunpack.c.l.b16 %v186
        %v191 = vunpack.c.l.b16 %v187
        %v192 = vpack.c.b16 %v191, %v190
        %vm193 = vcmask 31744
        %v195 = vsel %vm193, %v192, 0
        %vm197 = vcmask 1041408
        %v199 = vsel %vm197, %v182, 0
        %201 = vmatprep.subr.bf16.mxu0 0
        %202 = vmatpush1.bf16.msra.mxu0 %v199
        %203 = vmatprep.subr.bf16.mxu0 0
        %204 = vmatpush1.bf16.msra.mxu0 0
        %205 = vmatprep.subr.bf16.mxu0 0
        %206 = vmatpush1.bf16.msra.mxu0 0
        %207 = vmatprep.subr.bf16.mxu0 0
        %208 = vmatpush1.bf16.msra.mxu0 0
        %209 = vmatprep.subr.bf16.mxu0 0
        %210 = vmatpush1.bf16.msra.mxu0 0
        %211 = vmatprep.subr.bf16.mxu0 0
        %212 = vmatpush1.bf16.msra.mxu0 0
        %213 = vmatprep.subr.bf16.mxu0 0
        %214 = vmatpush1.bf16.msra.mxu0 0
        %215 = vmatprep.subr.bf16.mxu0 0
        %216 = vmatpush1.bf16.msra.mxu0 0
        %217 = vmatprep.subr.bf16.mxu0 0
        %218 = vmatpush1.bf16.msra.mxu0 0
        %219 = vmatprep.subr.bf16.mxu0 0
        %220 = vmatpush1.bf16.msra.mxu0 0
        %221 = vmatprep.subr.bf16.mxu0 0
        %222 = vmatpush1.bf16.msra.mxu0 0
        %223 = vmatprep.subr.bf16.mxu0 0
        %224 = vmatpush1.bf16.msra.mxu0 0
        %225 = vmatprep.subr.bf16.mxu0 0
        %226 = vmatpush1.bf16.msra.mxu0 0
        %227 = vmatprep.subr.bf16.mxu0 0
        %228 = vmatpush1.bf16.msra.mxu0 0
        %229 = vmatprep.subr.bf16.mxu0 0
        %230 = vmatpush1.bf16.msra.mxu0 0
        %231 = vmatprep.subr.bf16.mxu0 0
        %232 = vmatpush1.bf16.msra.mxu0 0
        %233 = vmatprep.mubr.bf16.mxu0 0
        %234 = vmatmul.mubr.bf16.gmra.mrb[0].mxu0 %v195
        %v235 = vpop.f32.mrb[0].mxu0
        %v236 = vadd.f32 0.0, %v235
        %v237 = vpop.f32.mrb[0].mxu0
        %v238 = vpop.f32.mrb[0].mxu0
        %v239 = vadd.f32 0.0, %v238
        %v240 = vpop.f32.mrb[0].mxu0
        %241 = vdwg.mxu0
        %v243 = vsel %vm197, %v183, 0
        %245 = vmatprep.subr.bf16.mxu0 0
        %246 = vmatpush1.bf16.msra.mxu0 %v243
        %247 = vmatprep.subr.bf16.mxu0 0
        %248 = vmatpush1.bf16.msra.mxu0 0
        %249 = vmatprep.subr.bf16.mxu0 0
        %250 = vmatpush1.bf16.msra.mxu0 0
        %251 = vmatprep.subr.bf16.mxu0 0
        %252 = vmatpush1.bf16.msra.mxu0 0
        %253 = vmatprep.subr.bf16.mxu0 0
        %254 = vmatpush1.bf16.msra.mxu0 0
        %255 = vmatprep.subr.bf16.mxu0 0
        %256 = vmatpush1.bf16.msra.mxu0 0
        %257 = vmatprep.subr.bf16.mxu0 0
        %258 = vmatpush1.bf16.msra.mxu0 0
        %259 = vmatprep.subr.bf16.mxu0 0
        %260 = vmatpush1.bf16.msra.mxu0 0
        %261 = vmatprep.subr.bf16.mxu0 0
        %262 = vmatpush1.bf16.msra.mxu0 0
        %263 = vmatprep.subr.bf16.mxu0 0
        %264 = vmatpush1.bf16.msra.mxu0 0
        %265 = vmatprep.subr.bf16.mxu0 0
        %266 = vmatpush1.bf16.msra.mxu0 0
        %267 = vmatprep.subr.bf16.mxu0 0
        %268 = vmatpush1.bf16.msra.mxu0 0
        %269 = vmatprep.subr.bf16.mxu0 0
        %270 = vmatpush1.bf16.msra.mxu0 0
        %271 = vmatprep.subr.bf16.mxu0 0
        %272 = vmatpush1.bf16.msra.mxu0 0
        %273 = vmatprep.subr.bf16.mxu0 0
        %274 = vmatpush1.bf16.msra.mxu0 0
        %275 = vmatprep.subr.bf16.mxu0 0
        %276 = vmatpush1.bf16.msra.mxu0 0
        %277 = vmatprep.mubr.bf16.mxu0 0
        %278 = vmatmul.mubr.bf16.gmra.mrb[0].mxu0 %v195
        %v279 = vpop.f32.mrb[0].mxu0
        %v280 = vadd.f32 0.0, %v279
        %v281 = vpop.f32.mrb[0].mxu0
        %v282 = vpop.f32.mrb[0].mxu0
        %v283 = vadd.f32 0.0, %v282
        %v284 = vpop.f32.mrb[0].mxu0
        %285 = vdwg.mxu0
        %v287 = vsel %vm197, %v184, 0
        %289 = vmatprep.subr.bf16.mxu0 0
        %290 = vmatpush1.bf16.msra.mxu0 %v287
        %291 = vmatprep.subr.bf16.mxu0 0
        %292 = vmatpush1.bf16.msra.mxu0 0
        %293 = vmatprep.subr.bf16.mxu0 0
        %294 = vmatpush1.bf16.msra.mxu0 0
        %295 = vmatprep.subr.bf16.mxu0 0
        %296 = vmatpush1.bf16.msra.mxu0 0
        %297 = vmatprep.subr.bf16.mxu0 0
        %298 = vmatpush1.bf16.msra.mxu0 0
        %299 = vmatprep.subr.bf16.mxu0 0
        %300 = vmatpush1.bf16.msra.mxu0 0
        %301 = vmatprep.subr.bf16.mxu0 0
        %302 = vmatpush1.bf16.msra.mxu0 0
        %303 = vmatprep.subr.bf16.mxu0 0
        %304 = vmatpush1.bf16.msra.mxu0 0
        %305 = vmatprep.subr.bf16.mxu0 0
        %306 = vmatpush1.bf16.msra.mxu0 0
        %307 = vmatprep.subr.bf16.mxu0 0
        %308 = vmatpush1.bf16.msra.mxu0 0
        %309 = vmatprep.subr.bf16.mxu0 0
        %310 = vmatpush1.bf16.msra.mxu0 0
        %311 = vmatprep.subr.bf16.mxu0 0
        %312 = vmatpush1.bf16.msra.mxu0 0
        %313 = vmatprep.subr.bf16.mxu0 0
        %314 = vmatpush1.bf16.msra.mxu0 0
        %315 = vmatprep.subr.bf16.mxu0 0
        %316 = vmatpush1.bf16.msra.mxu0 0
        %317 = vmatprep.subr.bf16.mxu0 0
        %318 = vmatpush1.bf16.msra.mxu0 0
        %319 = vmatprep.subr.bf16.mxu0 0
        %320 = vmatpush1.bf16.msra.mxu0 0
        %321 = vmatprep.mubr.bf16.mxu0 0
        %322 = vmatmul.mubr.bf16.gmra.mrb[0].mxu0 %v195
        %v323 = vpop.f32.mrb[0].mxu0
        %v324 = vadd.f32 0.0, %v323
        %v325 = vpop.f32.mrb[0].mxu0
        %v326 = vpop.f32.mrb[0].mxu0
        %v327 = vadd.f32 0.0, %v326
        %v328 = vpop.f32.mrb[0].mxu0
        %329 = vdwg.mxu0
        %v331 = vsel %vm197, %v185, 0
        %333 = vmatprep.subr.bf16.mxu0 0
        %334 = vmatpush1.bf16.msra.mxu0 %v331
        %335 = vmatprep.subr.bf16.mxu0 0
        %336 = vmatpush1.bf16.msra.mxu0 0
        %337 = vmatprep.subr.bf16.mxu0 0
        %338 = vmatpush1.bf16.msra.mxu0 0
        %339 = vmatprep.subr.bf16.mxu0 0
        %340 = vmatpush1.bf16.msra.mxu0 0
        %341 = vmatprep.subr.bf16.mxu0 0
        %342 = vmatpush1.bf16.msra.mxu0 0
        %343 = vmatprep.subr.bf16.mxu0 0
        %344 = vmatpush1.bf16.msra.mxu0 0
        %345 = vmatprep.subr.bf16.mxu0 0
        %346 = vmatpush1.bf16.msra.mxu0 0
        %347 = vmatprep.subr.bf16.mxu0 0
        %348 = vmatpush1.bf16.msra.mxu0 0
        %349 = vmatprep.subr.bf16.mxu0 0
        %350 = vmatpush1.bf16.msra.mxu0 0
        %351 = vmatprep.subr.bf16.mxu0 0
        %352 = vmatpush1.bf16.msra.mxu0 0
        %353 = vmatprep.subr.bf16.mxu0 0
        %354 = vmatpush1.bf16.msra.mxu0 0
        %355 = vmatprep.subr.bf16.mxu0 0
        %356 = vmatpush1.bf16.msra.mxu0 0
        %357 = vmatprep.subr.bf16.mxu0 0
        %358 = vmatpush1.bf16.msra.mxu0 0
        %359 = vmatprep.subr.bf16.mxu0 0
        %360 = vmatpush1.bf16.msra.mxu0 0
        %361 = vmatprep.subr.bf16.mxu0 0
        %362 = vmatpush1.bf16.msra.mxu0 0
        %363 = vmatprep.subr.bf16.mxu0 0
        %364 = vmatpush1.bf16.msra.mxu0 0
        %365 = vmatprep.mubr.bf16.mxu0 0
        %366 = vmatmul.mubr.bf16.gmra.mrb[0].mxu0 %v195
        %v367 = vpop.f32.mrb[0].mxu0
        %v368 = vadd.f32 0.0, %v367
        %v369 = vpop.f32.mrb[0].mxu0
        %v370 = vpop.f32.mrb[0].mxu0
        %v371 = vadd.f32 0.0, %v370
        %v372 = vpop.f32.mrb[0].mxu0
        %373 = vdwg.mxu0
        %v374 = vpack.c.bf16 %v239, %v236
        %v375 = vpack.c.bf16 %v283, %v280
        %v376 = vpack.c.bf16 %v327, %v324
        %v377 = vpack.c.bf16 %v371, %v368
        %v382 = vunpack.c.l.b16 %v374
        %v383 = vunpack.c.h.b16 %v374
        %v384 = vunpack.c.l.b16 %v375
        %v385 = vunpack.c.h.b16 %v375
        %v386 = vunpack.c.l.b16 %v376
        %v387 = vunpack.c.h.b16 %v376
        %v388 = vunpack.c.l.b16 %v377
        %v389 = vunpack.c.h.b16 %v377
        %v390 = vpack.c.b16 %v382, %v382
        %v391 = vpack.c.b16 %v383, %v383
        %v392 = vpack.c.b16 %v384, %v384
        %v393 = vpack.c.b16 %v385, %v385
        %v394 = vpack.c.b16 %v386, %v386
        %v395 = vpack.c.b16 %v387, %v387
        %v396 = vpack.c.b16 %v388, %v388
        %v397 = vpack.c.b16 %v389, %v389
        %406 = vst [vmem:[%s176] sm:$0xf] %v390
        %407 = vst [vmem:[%s176 + $0x4] sm:$0xf] %v391
        %408 = vst [vmem:[%s176 + $0x8] sm:$0xf] %v392
        %409 = vst [vmem:[%s176 + $0xc] sm:$0xf] %v393
        %410 = vst [vmem:[%s176 + $0x10] sm:$0xf] %v394
        %411 = vst [vmem:[%s176 + $0x14] sm:$0xf] %v395
        %412 = vst [vmem:[%s176 + $0x18] sm:$0xf] %v396
        %413 = vst [vmem:[%s176 + $0x1c] sm:$0xf] %v397
        %s414 = sand.u32 %s75, 1
        %s415 = scalar_lea.sflag [#allocation4], %s414
        %s416 = sand.u32 %s75, 1
        %s417 = smul.addr %s416, 32
        %s418 = scalar_lea.vmem [#allocation7], %s417
        // Predicated region
        $region37: #{setr_forward.20} parent=27 // pred_check
          %p419 = pneg %p85
        $region38: #{setr_forward.20} parent=27 // pred_check_branch
          %421 = sbr.rel (%p419) target = $region40
        $region39: #{setr_forward.20} parent=27 // pred_region
          %s423 = ssub.s32 512, 512
          %424 = vsyncadd %s415, %s423
          %s425 = smul.addr %s20, 8
          %s426 = smul.addr %s425, 64
          %s427 = scalar_lea.hbm %s2, %s426
          %s428 = sshll.u32 %s418, 4
          %s429 = int_to_ptr.vmem [resolvable:$true] %s428
          %434 = dma.vmem_to_hbm [thread:$0]  %s429, 512, %s427, %s415, 64, 64, 4
        $region40: #{setr_forward.20} parent=27 // pred_fallthru
          _
      $region28: #{setr_forward.20} parent=5 // pred_fallthru
        _
      %p435 = scmp.le.s32.totalorder 2, %s15
      // Predicated region
      $region41: #{setr_forward.20} parent=5 // pred_check
        %p436 = pneg %p435
      $region42: #{setr_forward.20} parent=5 // pred_check_branch
        %438 = sbr.rel (%p436) target = $region44
      $region43: #{setr_forward.20} parent=5 // pred_region
        %s439 = ssub.s32 %s15, 2
        // Predicated region
        $region45: #{setr_forward.20} parent=43 // pred_check
          %p440 = pneg %p91
        $region46: #{setr_forward.20} parent=43 // pred_check_branch
          %442 = sbr.rel (%p440) target = $region48
        $region47: #{setr_forward.20} parent=43 // pred_region
          %s443 = sand.u32 %s76, 1
          %s444 = scalar_lea.sflag [#allocation4], %s443
          %s445 = sand.u32 %s76, 1
          %s446 = smul.addr %s445, 32
          %s447 = scalar_lea.vmem [#allocation7], %s446
          %448 = dma.done %s444, 512
        $region48: #{setr_forward.20} parent=43 // pred_fallthru
          _
      $region44: #{setr_forward.20} parent=5 // pred_fallthru
        _
    $region6: #{setr_forward.20} parent=1 // loop_footer
      %s19 = sadd.s32 1, %s15
    $region7: #{setr_forward.20} parent=1 // loop_footer_branch
      %14 = sbr.rel target = $region3
    $region8: #{setr_forward.20} parent=1 // loop_exit
      _
    %449 = vsyncpa [#allocation3], 1
    %s450 = scalar_lea.sflag [#allocation3], 1
    %451 = vsyncpa %s450, 1
    %452 = vsyncpa [#allocation6], 1
    %453 = vsyncpa [#allocation4], 1
    %s454 = scalar_lea.sflag [#allocation4], 1
    %455 = vsyncpa %s454, 1

// kernel: setr_forward.19
$region0: #{setr_forward.19}
  #allocation0 [shape = 'u32[]', space=smem, size = 0x4, offset = 0x4, fixed_abs, tag = 'smem constant byte address 0x4 - core index']
  #allocation1 [shape = 'u32[144,128]{1,0:T(1,128)}', space=vmem, size = 0x12000, scoped, tag = 'internal scratch']
  %s0 = inlined_call_operand.hbm [shape: bf16[32,256], index: 0, kind: input, shape index: {}]
  %s1 = inlined_call_operand.hbm [shape: f32[1,1,256], index: 1, kind: input, shape index: {}]
  %s2 = inlined_call_operand.hbm [shape: f32[1,1,256], index: 2, kind: input, shape index: {}]
  %s3 = inlined_call_operand.hbm [shape: f32[1,256], index: 3, kind: input, shape index: {}]
  %s4 = inlined_call_operand.hbm [shape: f32[1,256], index: 4, kind: input, shape index: {}]
  %s5 = inlined_call_operand.hbm [shape: bf16[256,128], index: 5, kind: input, shape index: {}]
  %s6 = inlined_call_operand.hbm [shape: f32[1,128], index: 6, kind: input, shape index: {}]
  %s7 = inlined_call_operand.hbm [shape: f32[32,128], index: 7, kind: output, shape index: {}]
  %s8 = sld [smem:[#allocation0]]
  $region66: #{setr_forward.19} parent=0
    _
  %s10 = ssub.s32 1, %s8
  %s11 = scalar_select 0, %s10, %s8
  $region1: #{setr_forward.19} parent=0
    #allocation2 [shape = 'u8[16384]{0}', space=vmem, size = 0x4000, scoped, tag = 'input window, operand 0, single buffered']
    #allocation3 [shape = 's32[1]{0}', space=sflag, size = 0x4, scoped, tag = 'scoped memory for setr_forward.19']
    #allocation4 [shape = 's32[1]{0}', space=sflag, size = 0x4, scoped, tag = 'scoped memory for setr_forward.19']
    #allocation5 [shape = 'u8[1024]{0}', space=vmem, size = 0x400, scoped, tag = 'input window, operand 1, single buffered']
    #allocation6 [shape = 's32[1]{0}', space=sflag, size = 0x4, scoped, tag = 'scoped memory for setr_forward.19']
    #allocation7 [shape = 'u8[1024]{0}', space=vmem, size = 0x400, scoped, tag = 'input window, operand 2, single buffered']
    #allocation8 [shape = 'u8[1024]{0}', space=vmem, size = 0x400, scoped, tag = 'input window, operand 3, single buffered']
    #allocation9 [shape = 's32[1]{0}', space=sflag, size = 0x4, scoped, tag = 'scoped memory for setr_forward.19']
    #allocation10 [shape = 'u8[1024]{0}', space=vmem, size = 0x400, scoped, tag = 'input window, operand 4, single buffered']
    #allocation11 [shape = 'u8[65536]{0}', space=vmem, size = 0x10000, scoped, tag = 'input window, operand 5, single buffered']
    #allocation12 [shape = 's32[1]{0}', space=sflag, size = 0x4, scoped, tag = 'scoped memory for setr_forward.19']
    #allocation13 [shape = 'u8[512]{0}', space=vmem, size = 0x400, scoped, tag = 'input window, operand 6, single buffered']
    #allocation14 [shape = 'u8[16384]{0}', space=vmem, size = 0x4000, scoped, tag = 'output window, operand 0, single buffered']
    %12 = vsyncpa [#allocation3], 0
    %13 = vsyncpa [#allocation6], 0
    %14 = vsyncpa [#allocation9], 0
    %15 = vsyncpa [#allocation12], 0
    %16 = vsyncpa [#allocation4], 0
    // Predicated region
    $region2: #{setr_forward.19} parent=1 // pred_check
      _
    $region3: #{setr_forward.19} parent=1 // pred_check_branch
      %18 = sbr.rel (0) target = $region5
    $region4: #{setr_forward.19} parent=1 // pred_region
      %s20 = ssub.s32 512, 512
      %21 = vsyncadd [#allocation3], %s20
      %s22 = sshll.u32 [#allocation2], 4
      %s23 = int_to_ptr.vmem [resolvable:$true] %s22
      %28 = dma.hbm_to_vmem [thread:$0]  %s0, 512, %s23, [#allocation3], 128, 128, 8
    $region5: #{setr_forward.19} parent=1 // pred_fallthru
      _
    // Predicated region
    $region6: #{setr_forward.19} parent=1 // pred_check
      _
    $region7: #{setr_forward.19} parent=1 // pred_check_branch
      %30 = sbr.rel (0) target = $region9
    $region8: #{setr_forward.19} parent=1 // pred_region
      %s32 = ssub.s32 32, 32
      %33 = vsyncadd [#allocation6], %s32
      %s35 = sshll.u32 [#allocation5], 4
      %s36 = int_to_ptr.vmem [resolvable:$true] %s35
      %38 = dma.hbm_to_vmem [thread:$0]  %s1, 32, %s36, [#allocation6]
    $region9: #{setr_forward.19} parent=1 // pred_fallthru
      _
    // Predicated region
    $region10: #{setr_forward.19} parent=1 // pred_check
      _
    $region11: #{setr_forward.19} parent=1 // pred_check_branch
      %40 = sbr.rel (0) target = $region13
    $region12: #{setr_forward.19} parent=1 // pred_region
      %s42 = ssub.s32 32, 32
      %43 = vsyncadd [#allocation6], %s42
      %s45 = sshll.u32 [#allocation7], 4
      %s46 = int_to_ptr.vmem [resolvable:$true] %s45
      %48 = dma.hbm_to_vmem [thread:$0]  %s2, 32, %s46, [#allocation6]
    $region13: #{setr_forward.19} parent=1 // pred_fallthru
      _
    // Predicated region
    $region14: #{setr_forward.19} parent=1 // pred_check
      _
    $region15: #{setr_forward.19} parent=1 // pred_check_branch
      %50 = sbr.rel (0) target = $region17
    $region16: #{setr_forward.19} parent=1 // pred_region
      %s52 = ssub.s32 32, 32
      %53 = vsyncadd [#allocation9], %s52
      %s55 = sshll.u32 [#allocation8], 4
      %s56 = int_to_ptr.vmem [resolvable:$true] %s55
      %58 = dma.hbm_to_vmem [thread:$0]  %s3, 32, %s56, [#allocation9]
    $region17: #{setr_forward.19} parent=1 // pred_fallthru
      _
    // Predicated region
    $region18: #{setr_forward.19} parent=1 // pred_check
      _
    $region19: #{setr_forward.19} parent=1 // pred_check_branch
      %60 = sbr.rel (0) target = $region21
    $region20: #{setr_forward.19} parent=1 // pred_region
      %s62 = ssub.s32 32, 32
      %63 = vsyncadd [#allocation9], %s62
      %s65 = sshll.u32 [#allocation10], 4
      %s66 = int_to_ptr.vmem [resolvable:$true] %s65
      %68 = dma.hbm_to_vmem [thread:$0]  %s4, 32, %s66, [#allocation9]
    $region21: #{setr_forward.19} parent=1 // pred_fallthru
      _
    // Predicated region
    $region22: #{setr_forward.19} parent=1 // pred_check
      _
    $region23: #{setr_forward.19} parent=1 // pred_check_branch
      %70 = sbr.rel (0) target = $region25
    $region24: #{setr_forward.19} parent=1 // pred_region
      %s72 = ssub.s32 2048, 2048
      %73 = vsyncadd [#allocation12], %s72
      %s74 = sshll.u32 [#allocation11], 4
      %s75 = int_to_ptr.vmem [resolvable:$true] %s74
      %80 = dma.hbm_to_vmem [thread:$0]  %s5, 2048, %s75, [#allocation12], 64, 64, 4
    $region25: #{setr_forward.19} parent=1 // pred_fallthru
      _
    // Predicated region
    $region26: #{setr_forward.19} parent=1 // pred_check
      _
    $region27: #{setr_forward.19} parent=1 // pred_check_branch
      %82 = sbr.rel (0) target = $region29
    $region28: #{setr_forward.19} parent=1 // pred_region
      %s84 = ssub.s32 16, 16
      %85 = vsyncadd [#allocation12], %s84
      %s87 = sshll.u32 [#allocation13], 4
      %s88 = int_to_ptr.vmem [resolvable:$true] %s87
      %90 = dma.hbm_to_vmem [thread:$0]  %s6, 16, %s88, [#allocation12]
    $region29: #{setr_forward.19} parent=1 // pred_fallthru
      _
    // Predicated region
    $region30: #{setr_forward.19} parent=1 // pred_check
      _
    $region31: #{setr_forward.19} parent=1 // pred_check_branch
      %92 = sbr.rel (0) target = $region33
    $region32: #{setr_forward.19} parent=1 // pred_region
      %93 = dma.done [#allocation3], 512
    $region33: #{setr_forward.19} parent=1 // pred_fallthru
      _
    // Predicated region
    $region34: #{setr_forward.19} parent=1 // pred_check
      _
    $region35: #{setr_forward.19} parent=1 // pred_check_branch
      %95 = sbr.rel (0) target = $region37
    $region36: #{setr_forward.19} parent=1 // pred_region
      %96 = dma.done [#allocation6], 32
    $region37: #{setr_forward.19} parent=1 // pred_fallthru
      _
    // Predicated region
    $region38: #{setr_forward.19} parent=1 // pred_check
      _
    $region39: #{setr_forward.19} parent=1 // pred_check_branch
      %98 = sbr.rel (0) target = $region41
    $region40: #{setr_forward.19} parent=1 // pred_region
      %99 = dma.done [#allocation6], 32
    $region41: #{setr_forward.19} parent=1 // pred_fallthru
      _
    // Predicated region
    $region42: #{setr_forward.19} parent=1 // pred_check
      _
    $region43: #{setr_forward.19} parent=1 // pred_check_branch
      %101 = sbr.rel (0) target = $region45
    $region44: #{setr_forward.19} parent=1 // pred_region
      %102 = dma.done [#allocation9], 32
    $region45: #{setr_forward.19} parent=1 // pred_fallthru
      _
    // Predicated region
    $region46: #{setr_forward.19} parent=1 // pred_check
      _
    $region47: #{setr_forward.19} parent=1 // pred_check_branch
      %104 = sbr.rel (0) target = $region49
    $region48: #{setr_forward.19} parent=1 // pred_region
      %105 = dma.done [#allocation9], 32
    $region49: #{setr_forward.19} parent=1 // pred_fallthru
      _
    // Predicated region
    $region50: #{setr_forward.19} parent=1 // pred_check
      _
    $region51: #{setr_forward.19} parent=1 // pred_check_branch
      %107 = sbr.rel (0) target = $region53
    $region52: #{setr_forward.19} parent=1 // pred_region
      %108 = dma.done [#allocation12], 2048
    $region53: #{setr_forward.19} parent=1 // pred_fallthru
      _
    // Predicated region
    $region54: #{setr_forward.19} parent=1 // pred_check
      _
    $region55: #{setr_forward.19} parent=1 // pred_check_branch
      %110 = sbr.rel (0) target = $region57
    $region56: #{setr_forward.19} parent=1 // pred_region
      %111 = dma.done [#allocation12], 16
    $region57: #{setr_forward.19} parent=1 // pred_fallthru
      _
    %v113 = vld [vmem:[#allocation5] sm:$0x3]
    %v114 = vadd.f32 %v113, 0.0
    %v115 = vld [vmem:[#allocation7] sm:$0x3]
    %v116 = vadd.f32 %v115, 0.0
    %v117 = vmul.f32 %v114, 0.03125
    %v118 = vmul.f32 %v116, 0.03125
    %v119 = vmul.f32 %v117, %v117
    %v120 = vsub.f32 %v118, %v119
    %v121 = vmax.f32 %v120, 0.0
    %v122 = vld [vmem:[#allocation2] sm:$0xff]
    %v123 = vld [vmem:[#allocation2 + $0x8] sm:$0xff]
    %v124 = vld [vmem:[#allocation2 + $0x10] sm:$0xff]
    %v125 = vld [vmem:[#allocation2 + $0x18] sm:$0xff]
    %v126 = vunpack.c.l.bf16 %v122
    %v127 = vunpack.c.h.bf16 %v122
    %v128 = vunpack.c.l.bf16 %v123
    %v129 = vunpack.c.h.bf16 %v123
    %v130 = vunpack.c.l.bf16 %v124
    %v131 = vunpack.c.h.bf16 %v124
    %v132 = vunpack.c.l.bf16 %v125
    %v133 = vunpack.c.h.bf16 %v125
    %v135 = vlaneseq
    %v136 = vshrl.u32 %v135, 7
    %v137 = vsub.s32 0, %v136
    %v138 = vrot.slane %v117, %v137
    %v139 = vlaneseq
    %v140 = vshrl.u32 %v139, 7
    %v141 = vsub.s32 1, %v140
    %v142 = vrot.slane %v117, %v141
    %v145 = vsub.f32 %v126, %v138
    %v146 = vsub.f32 %v127, %v142
    %v147 = vsub.f32 %v128, %v138
    %v148 = vsub.f32 %v129, %v142
    %v149 = vsub.f32 %v130, %v138
    %v150 = vsub.f32 %v131, %v142
    %v151 = vsub.f32 %v132, %v138
    %v152 = vsub.f32 %v133, %v142
    %v153 = vadd.f32 %v121, 1e-05
    %v154 = vrsqrt.pop %v153
    %v156 = vlaneseq
    %v157 = vshrl.u32 %v156, 7
    %v158 = vsub.s32 0, %v157
    %v159 = vrot.slane %v154, %v158
    %v160 = vlaneseq
    %v161 = vshrl.u32 %v160, 7
    %v162 = vsub.s32 1, %v161
    %v163 = vrot.slane %v154, %v162
    %v166 = vmul.f32 %v145, %v159
    %v167 = vmul.f32 %v146, %v163
    %v168 = vmul.f32 %v147, %v159
    %v169 = vmul.f32 %v148, %v163
    %v170 = vmul.f32 %v149, %v159
    %v171 = vmul.f32 %v150, %v163
    %v172 = vmul.f32 %v151, %v159
    %v173 = vmul.f32 %v152, %v163
    %v174 = vld [vmem:[#allocation8] sm:$0x3]
    %v176 = vlaneseq
    %v177 = vshrl.u32 %v176, 7
    %v178 = vsub.s32 0, %v177
    %v179 = vrot.slane %v174, %v178
    %v180 = vlaneseq
    %v181 = vshrl.u32 %v180, 7
    %v182 = vsub.s32 1, %v181
    %v183 = vrot.slane %v174, %v182
    %v186 = vmul.f32 %v166, %v179
    %v187 = vmul.f32 %v167, %v183
    %v188 = vmul.f32 %v168, %v179
    %v189 = vmul.f32 %v169, %v183
    %v190 = vmul.f32 %v170, %v179
    %v191 = vmul.f32 %v171, %v183
    %v192 = vmul.f32 %v172, %v179
    %v193 = vmul.f32 %v173, %v183
    %v194 = vld [vmem:[#allocation10] sm:$0x3]
    %v196 = vlaneseq
    %v197 = vshrl.u32 %v196, 7
    %v198 = vsub.s32 0, %v197
    %v199 = vrot.slane %v194, %v198
    %v200 = vlaneseq
    %v201 = vshrl.u32 %v200, 7
    %v202 = vsub.s32 1, %v201
    %v203 = vrot.slane %v194, %v202
    %v206 = vadd.f32 %v186, %v199
    %v207 = vadd.f32 %v187, %v203
    %v208 = vadd.f32 %v188, %v199
    %v209 = vadd.f32 %v189, %v203
    %v210 = vadd.f32 %v190, %v199
    %v211 = vadd.f32 %v191, %v203
    %v212 = vadd.f32 %v192, %v199
    %v213 = vadd.f32 %v193, %v203
    %v214 = vmax.f32 %v206, 0.0
    %v215 = vmax.f32 %v207, 0.0
    %v216 = vmax.f32 %v208, 0.0
    %v217 = vmax.f32 %v209, 0.0
    %v218 = vmax.f32 %v210, 0.0
    %v219 = vmax.f32 %v211, 0.0
    %v220 = vmax.f32 %v212, 0.0
    %v221 = vmax.f32 %v213, 0.0
    %v222 = vpack.c.bf16 %v216, %v214
    %v223 = vpack.c.bf16 %v217, %v215
    %v224 = vpack.c.bf16 %v220, %v218
    %v225 = vpack.c.bf16 %v221, %v219
    %v226 = vld [vmem:[#allocation11] sm:$0xf]
    %v227 = vld [vmem:[#allocation11 + $0x4] sm:$0xf]
    %v228 = vld [vmem:[#allocation11 + $0x8] sm:$0xf]
    %v229 = vld [vmem:[#allocation11 + $0xc] sm:$0xf]
    %v230 = vld [vmem:[#allocation11 + $0x10] sm:$0xf]
    %v231 = vld [vmem:[#allocation11 + $0x14] sm:$0xf]
    %v232 = vld [vmem:[#allocation11 + $0x18] sm:$0xf]
    %v233 = vld [vmem:[#allocation11 + $0x1c] sm:$0xf]
    %v234 = vld [vmem:[#allocation11 + $0x20] sm:$0xf]
    %v235 = vld [vmem:[#allocation11 + $0x24] sm:$0xf]
    %v236 = vld [vmem:[#allocation11 + $0x28] sm:$0xf]
    %v237 = vld [vmem:[#allocation11 + $0x2c] sm:$0xf]
    %v238 = vld [vmem:[#allocation11 + $0x30] sm:$0xf]
    %v239 = vld [vmem:[#allocation11 + $0x34] sm:$0xf]
    %v240 = vld [vmem:[#allocation11 + $0x38] sm:$0xf]
    %v241 = vld [vmem:[#allocation11 + $0x3c] sm:$0xf]
    %v242 = vld [vmem:[#allocation11 + $0x40] sm:$0xf]
    %v243 = vld [vmem:[#allocation11 + $0x44] sm:$0xf]
    %v244 = vld [vmem:[#allocation11 + $0x48] sm:$0xf]
    %v245 = vld [vmem:[#allocation11 + $0x4c] sm:$0xf]
    %v246 = vld [vmem:[#allocation11 + $0x50] sm:$0xf]
    %v247 = vld [vmem:[#allocation11 + $0x54] sm:$0xf]
    %v248 = vld [vmem:[#allocation11 + $0x58] sm:$0xf]
    %v249 = vld [vmem:[#allocation11 + $0x5c] sm:$0xf]
    %v250 = vld [vmem:[#allocation11 + $0x60] sm:$0xf]
    %v251 = vld [vmem:[#allocation11 + $0x64] sm:$0xf]
    %v252 = vld [vmem:[#allocation11 + $0x68] sm:$0xf]
    %v253 = vld [vmem:[#allocation11 + $0x6c] sm:$0xf]
    %v254 = vld [vmem:[#allocation11 + $0x70] sm:$0xf]
    %v255 = vld [vmem:[#allocation11 + $0x74] sm:$0xf]
    %v256 = vld [vmem:[#allocation11 + $0x78] sm:$0xf]
    %v257 = vld [vmem:[#allocation11 + $0x7c] sm:$0xf]
    %v258 = vld [vmem:[#allocation13] sm:$0x1]
    %v260 = vlaneseq
    %v261 = vshrl.u32 %v260, 7
    %v262 = vsub.s32 0, %v261
    %v263 = vrot.slane %v258, %v262
    %v297 = vunpack.c.l.b16 %v226
    %v298 = vunpack.c.l.b16 %v227
    %v299 = vunpack.c.l.b16 %v228
    %v300 = vunpack.c.l.b16 %v229
    %v301 = vunpack.c.l.b16 %v230
    %v302 = vunpack.c.l.b16 %v231
    %v303 = vunpack.c.l.b16 %v232
    %v304 = vunpack.c.l.b16 %v233
    %v305 = vunpack.c.l.b16 %v234
    %v306 = vunpack.c.l.b16 %v235
    %v307 = vunpack.c.l.b16 %v236
    %v308 = vunpack.c.l.b16 %v237
    %v309 = vunpack.c.l.b16 %v238
    %v310 = vunpack.c.l.b16 %v239
    %v311 = vunpack.c.l.b16 %v240
    %v312 = vunpack.c.l.b16 %v241
    %v313 = vunpack.c.l.b16 %v242
    %v314 = vunpack.c.l.b16 %v243
    %v315 = vunpack.c.l.b16 %v244
    %v316 = vunpack.c.l.b16 %v245
    %v317 = vunpack.c.l.b16 %v246
    %v318 = vunpack.c.l.b16 %v247
    %v319 = vunpack.c.l.b16 %v248
    %v320 = vunpack.c.l.b16 %v249
    %v321 = vunpack.c.l.b16 %v250
    %v322 = vunpack.c.l.b16 %v251
    %v323 = vunpack.c.l.b16 %v252
    %v324 = vunpack.c.l.b16 %v253
    %v325 = vunpack.c.l.b16 %v254
    %v326 = vunpack.c.l.b16 %v255
    %v327 = vunpack.c.l.b16 %v256
    %v328 = vunpack.c.l.b16 %v257
    %v329 = vpack.c.b16 %v298, %v297
    %v330 = vpack.c.b16 %v300, %v299
    %v331 = vpack.c.b16 %v302, %v301
    %v332 = vpack.c.b16 %v304, %v303
    %v333 = vpack.c.b16 %v306, %v305
    %v334 = vpack.c.b16 %v308, %v307
    %v335 = vpack.c.b16 %v310, %v309
    %v336 = vpack.c.b16 %v312, %v311
    %v337 = vpack.c.b16 %v314, %v313
    %v338 = vpack.c.b16 %v316, %v315
    %v339 = vpack.c.b16 %v318, %v317
    %v340 = vpack.c.b16 %v320, %v319
    %v341 = vpack.c.b16 %v322, %v321
    %v342 = vpack.c.b16 %v324, %v323
    %v343 = vpack.c.b16 %v326, %v325
    %v344 = vpack.c.b16 %v328, %v327
    %361 = vmatprep.subr.bf16.mxu0 0
    %362 = vmatpush1.bf16.msra.mxu0 %v329
    %363 = vmatprep.subr.bf16.mxu0 0
    %364 = vmatpush1.bf16.msra.mxu0 %v330
    %365 = vmatprep.subr.bf16.mxu0 0
    %366 = vmatpush1.bf16.msra.mxu0 %v331
    %367 = vmatprep.subr.bf16.mxu0 0
    %368 = vmatpush1.bf16.msra.mxu0 %v332
    %369 = vmatprep.subr.bf16.mxu0 0
    %370 = vmatpush1.bf16.msra.mxu0 %v333
    %371 = vmatprep.subr.bf16.mxu0 0
    %372 = vmatpush1.bf16.msra.mxu0 %v334
    %373 = vmatprep.subr.bf16.mxu0 0
    %374 = vmatpush1.bf16.msra.mxu0 %v335
    %375 = vmatprep.subr.bf16.mxu0 0
    %376 = vmatpush1.bf16.msra.mxu0 %v336
    %377 = vmatprep.subr.bf16.mxu0 0
    %378 = vmatpush1.bf16.msra.mxu0 %v337
    %379 = vmatprep.subr.bf16.mxu0 0
    %380 = vmatpush1.bf16.msra.mxu0 %v338
    %381 = vmatprep.subr.bf16.mxu0 0
    %382 = vmatpush1.bf16.msra.mxu0 %v339
    %383 = vmatprep.subr.bf16.mxu0 0
    %384 = vmatpush1.bf16.msra.mxu0 %v340
    %385 = vmatprep.subr.bf16.mxu0 0
    %386 = vmatpush1.bf16.msra.mxu0 %v341
    %387 = vmatprep.subr.bf16.mxu0 0
    %388 = vmatpush1.bf16.msra.mxu0 %v342
    %389 = vmatprep.subr.bf16.mxu0 0
    %390 = vmatpush1.bf16.msra.mxu0 %v343
    %391 = vmatprep.subr.bf16.mxu0 0
    %392 = vmatpush1.bf16.msra.mxu0 %v344
    %393 = vmatprep.mubr.bf16.mxu0 %v223
    %394 = vmatmul.mubr.bf16.gmra.mrb[0].mxu0 %v222
    %v395 = vpop.f32.mrb[0].mxu0
    %v396 = vadd.f32 %v263, %v395
    %v397 = vpop.f32.mrb[0].mxu0
    %v398 = vpop.f32.mrb[0].mxu0
    %v399 = vadd.f32 %v263, %v398
    %v400 = vpop.f32.mrb[0].mxu0
    %401 = vmatprep.mubr.bf16.mxu0 %v225
    %402 = vmatmul.mubr.bf16.gmra.mrb[0].mxu0 %v224
    %v403 = vpop.f32.mrb[0].mxu0
    %v404 = vadd.f32 %v263, %v403
    %v405 = vpop.f32.mrb[0].mxu0
    %v406 = vpop.f32.mrb[0].mxu0
    %v407 = vadd.f32 %v263, %v406
    %v408 = vpop.f32.mrb[0].mxu0
    %409 = vdwg.mxu0
    %410 = vst [vmem:[#allocation14] sm:$0xff] %v396
    %411 = vst [vmem:[#allocation14 + $0x8] sm:$0xff] %v399
    %412 = vst [vmem:[#allocation14 + $0x10] sm:$0xff] %v404
    %413 = vst [vmem:[#allocation14 + $0x18] sm:$0xff] %v407
    // Predicated region
    $region58: #{setr_forward.19} parent=1 // pred_check
      _
    $region59: #{setr_forward.19} parent=1 // pred_check_branch
      %415 = sbr.rel (0) target = $region61
    $region60: #{setr_forward.19} parent=1 // pred_region
      %s417 = ssub.s32 512, 512
      %418 = vsyncadd [#allocation4], %s417
      %s419 = sshll.u32 [#allocation14], 4
      %s420 = int_to_ptr.vmem [resolvable:$true] %s419
      %425 = dma.vmem_to_hbm [thread:$0]  %s420, 512, %s7, [#allocation4], 128, 128, 8
    $region61: #{setr_forward.19} parent=1 // pred_fallthru
      _
    // Predicated region
    $region62: #{setr_forward.19} parent=1 // pred_check
      _
    $region63: #{setr_forward.19} parent=1 // pred_check_branch
      %427 = sbr.rel (0) target = $region65
    $region64: #{setr_forward.19} parent=1 // pred_region
      %428 = dma.done [#allocation4], 512
    $region65: #{setr_forward.19} parent=1 // pred_fallthru
      _
    %429 = vsyncpa [#allocation3], 1
    %430 = vsyncpa [#allocation6], 1
    %431 = vsyncpa [#allocation9], 1
    %432 = vsyncpa [#allocation12], 1
    %433 = vsyncpa [#allocation4], 1

// kernel: setr_forward.21
$region0: #{setr_forward.21}
  #allocation0 [shape = 'u32[]', space=smem, size = 0x4, offset = 0x4, fixed_abs, tag = 'smem constant byte address 0x4 - core index']
  #allocation1 [shape = 'u32[144,128]{1,0:T(1,128)}', space=vmem, size = 0x12000, scoped, tag = 'internal scratch']
  %s0 = inlined_call_operand.hbm [shape: bf16[2,4,2048], index: 0, kind: input, shape index: {}]
  %s1 = inlined_call_operand.hbm [shape: bf16[16,4], index: 1, kind: input, shape index: {}]
  %s2 = inlined_call_operand.hbm [shape: f32[2,16,2048], index: 2, kind: output, shape index: {}]
  %s3 = sld [smem:[#allocation0]]
  $region49: #{setr_forward.21} parent=0
    _
  %s5 = ssub.s32 1, %s3
  %s6 = scalar_select 0, %s5, %s3
  $region1: #{setr_forward.21} parent=0
    #allocation2 [shape = 'u8[32768]{0}', space=vmem, size = 0x8000, scoped, tag = 'input window, operand 0']
    #allocation3 [shape = 's32[2]{0}', space=sflag, size = 0x8, scoped, tag = 'scoped memory for setr_forward.21']
    #allocation4 [shape = 's32[2]{0}', space=sflag, size = 0x8, scoped, tag = 'scoped memory for setr_forward.21']
    #allocation5 [shape = 'u8[4096]{0}', space=vmem, size = 0x1000, scoped, tag = 'input window, operand 1, single buffered']
    #allocation6 [shape = 's32[1]{0}', space=sflag, size = 0x4, scoped, tag = 'scoped memory for setr_forward.21']
    #allocation7 [shape = 'u8[262144]{0}', space=vmem, size = 0x40000, scoped, tag = 'output window, operand 0']
    %7 = vsyncpa [#allocation3], 0
    %s8 = scalar_lea.sflag [#allocation3], 1
    %9 = vsyncpa %s8, 0
    %10 = vsyncpa [#allocation6], 0
    %11 = vsyncpa [#allocation4], 0
    %s12 = scalar_lea.sflag [#allocation4], 1
    %13 = vsyncpa %s12, 0
    loop: start=0, step=1, limit=4
    $region2: #{setr_forward.21} parent=1 // loop_pre_header
      _
    $region3: #{setr_forward.21} parent=1 // loop_header
      %s15 = sphi 0, %s19
      %p16 = scmp.ge.s32.totalorder %s15, 4
      %s22 = sphi 0, %s34
      %s23 = sphi 0, %s30
      %s24 = sphi 0, %s22
      %s25 = sphi 0, %s23
      %s26 = sphi 0, %s24
      %s27 = sphi 0, %s25
      %s37 = sphi 0, %s39
      %s40 = sphi 0, %s37
      %s41 = sphi 0, %s40
      %s57 = sphi 0, %s41
      %s63 = sphi 0, %s65
      %s66 = sphi 0, %s63
      %s67 = sphi 0, %s66
      %s83 = sphi 0, %s67
      %s91 = sphi 0, %s93
      %s94 = sphi 0, %s91
      %s95 = sphi 0, %s94
      %s111 = sphi 0, %s95
    $region4: #{setr_forward.21} parent=1 // loop_header_branch
      %18 = sbr.rel (%p16) target = $region8
    $region5: #{setr_forward.21} parent=1 // loop_body
      %s20 = ssub.s32 %s15, 1
      %s21 = ssub.s32 %s15, 2
      %s28 = sadd.s32 1, %s23
      %p29 = scmp.ge.s32.totalorder %s28, 1
      %s30 = scalar_select %p29, 0, %s28
      %s31 = sadd.s32 1, %s22
      %s32 = scalar_select %p29, %s31, %s22
      %p33 = scmp.ge.s32.totalorder %s32, 2
      %s34 = scalar_select %p33, 0, %s32
      %s35 = ssub.s32 %s22, %s34
      %p36 = scmp.eq.s32.totalorder %s35, 0
      %s38 = sadd.s32 %s37, 1
      %s39 = scalar_select %p36, %s37, %s38
      %p42 = pneg %p36
      %p43 = scmp.eq.s32.totalorder %s15, 1
      %p44 = por %p42, %p43
      %p45 = scmp.ne.s32.totalorder %s37, %s40
      %p46 = scmp.eq.s32.totalorder %s15, 0
      %p47 = por %p45, %p46
      %p48 = scmp.ne.s32.totalorder %s37, %s40
      %p49 = scmp.eq.s32.totalorder %s20, 1
      %p50 = por %p48, %p49
      %p51 = scmp.ne.s32.totalorder %s40, %s41
      %p52 = scmp.eq.s32.totalorder %s20, 0
      %p53 = por %p51, %p52
      %p54 = scmp.ne.s32.totalorder %s40, %s41
      %p55 = scmp.eq.s32.totalorder %s21, 1
      %p56 = por %p54, %p55
      %p58 = scmp.ne.s32.totalorder %s41, %s57
      %p59 = scmp.eq.s32.totalorder %s21, 0
      %p60 = por %p58, %p59
      %s61 = ssub.s32 %s23, %s30
      %p62 = scmp.eq.s32.totalorder %s61, 0
      %s64 = sadd.s32 %s63, 1
      %s65 = scalar_select %p62, %s63, %s64
      %p68 = pneg %p62
      %p69 = scmp.eq.s32.totalorder %s15, 1
      %p70 = por %p68, %p69
      %p71 = scmp.ne.s32.totalorder %s63, %s66
      %p72 = scmp.eq.s32.totalorder %s15, 0
      %p73 = por %p71, %p72
      %p74 = scmp.ne.s32.totalorder %s63, %s66
      %p75 = scmp.eq.s32.totalorder %s20, 1
      %p76 = por %p74, %p75
      %p77 = scmp.ne.s32.totalorder %s66, %s67
      %p78 = scmp.eq.s32.totalorder %s20, 0
      %p79 = por %p77, %p78
      %p80 = scmp.ne.s32.totalorder %s66, %s67
      %p81 = scmp.eq.s32.totalorder %s21, 1
      %p82 = por %p80, %p81
      %p84 = scmp.ne.s32.totalorder %s67, %s83
      %p85 = scmp.eq.s32.totalorder %s21, 0
      %p86 = por %p84, %p85
      %s87 = ssub.s32 %s22, %s34
      %s88 = ssub.s32 %s23, %s30
      %s89 = sor.u32 %s87, %s88
      %p90 = scmp.eq.s32.totalorder %s89, 0
      %s92 = sadd.s32 %s91, 1
      %s93 = scalar_select %p90, %s91, %s92
      %p96 = pneg %p90
      %p97 = scmp.eq.s32.totalorder %s15, 1
      %p98 = por %p96, %p97
      %p99 = scmp.ne.s32.totalorder %s91, %s94
      %p100 = scmp.eq.s32.totalorder %s15, 0
      %p101 = por %p99, %p100
      %p102 = scmp.ne.s32.totalorder %s91, %s94
      %p103 = scmp.eq.s32.totalorder %s20, 1
      %p104 = por %p102, %p103
      %p105 = scmp.ne.s32.totalorder %s94, %s95
      %p106 = scmp.eq.s32.totalorder %s20, 0
      %p107 = por %p105, %p106
      %p108 = scmp.ne.s32.totalorder %s94, %s95
      %p109 = scmp.eq.s32.totalorder %s21, 1
      %p110 = por %p108, %p109
      %p112 = scmp.ne.s32.totalorder %s95, %s111
      %p113 = scmp.eq.s32.totalorder %s21, 0
      %p114 = por %p112, %p113
      %p115 = scmp.le.s32.totalorder 1, %s15
      %p116 = scmp.lt.s32.totalorder %s15, 3
      %p117 = pnand %p115, %p116
      %p118 = pneg %p117
      // Predicated region
      $region9: #{setr_forward.21} parent=5 // pred_check
        _
      $region10: #{setr_forward.21} parent=5 // pred_check_branch
        %120 = sbr.rel (%p117) target = $region12
      $region11: #{setr_forward.21} parent=5 // pred_region
        %s121 = ssub.s32 %s15, 1
        // Predicated region
        $region13: #{setr_forward.21} parent=11 // pred_check
          %p122 = pneg %p79
        $region14: #{setr_forward.21} parent=11 // pred_check_branch
          %124 = sbr.rel (%p122) target = $region16
        $region15: #{setr_forward.21} parent=11 // pred_region
          %s125 = smul.u32 2, %s25
          %s127 = ssub.s32 128, 128
          %128 = vsyncadd [#allocation6], %s127
          %s129 = smul.addr %s125, 64
          %s130 = scalar_lea.hbm %s1, %s129
          %s131 = sshll.u32 [#allocation5], 4
          %s132 = int_to_ptr.vmem [resolvable:$true] %s131
          %137 = dma.hbm_to_vmem [thread:$0]  %s130, 128, %s132, [#allocation6], 64, 64, 4
        $region16: #{setr_forward.21} parent=11 // pred_fallthru
          _
      $region12: #{setr_forward.21} parent=5 // pred_fallthru
        _
      %p138 = scmp.lt.s32.totalorder %s15, 2
      // Predicated region
      $region17: #{setr_forward.21} parent=5 // pred_check
        %p139 = pneg %p138
      $region18: #{setr_forward.21} parent=5 // pred_check_branch
        %141 = sbr.rel (%p139) target = $region20
      $region19: #{setr_forward.21} parent=5 // pred_region
        // Predicated region
        $region21: #{setr_forward.21} parent=19 // pred_check
          %p142 = pneg %p47
        $region22: #{setr_forward.21} parent=19 // pred_check_branch
          %144 = sbr.rel (%p142) target = $region24
        $region23: #{setr_forward.21} parent=19 // pred_region
          %s145 = sand.u32 %s37, 1
          %s146 = scalar_lea.sflag [#allocation3], %s145
          %s147 = sand.u32 %s37, 1
          %s148 = smul.addr %s147, 32
          %s149 = scalar_lea.vmem [#allocation2], %s148
          %s151 = ssub.s32 512, 512
          %152 = vsyncadd %s146, %s151
          %s153 = smul.addr %s22, 16
          %s154 = smul.addr %s153, 32
          %s155 = scalar_lea.hbm %s0, %s154
          %s157 = sshll.u32 %s149, 4
          %s158 = int_to_ptr.vmem [resolvable:$true] %s157
          %160 = dma.hbm_to_vmem [thread:$0]  %s155, 512, %s158, %s146
        $region24: #{setr_forward.21} parent=19 // pred_fallthru
          _
      $region20: #{setr_forward.21} parent=5 // pred_fallthru
        _
      %p161 = scmp.le.s32.totalorder 1, %s15
      %p162 = scmp.lt.s32.totalorder %s15, 3
      %p163 = pnand %p161, %p162
      %p164 = pneg %p163
      // Predicated region
      $region25: #{setr_forward.21} parent=5 // pred_check
        _
      $region26: #{setr_forward.21} parent=5 // pred_check_branch
        %166 = sbr.rel (%p163) target = $region28
      $region27: #{setr_forward.21} parent=5 // pred_region
        %s167 = ssub.s32 %s15, 1
        %s168 = sand.u32 %s40, 1
        %s169 = scalar_lea.sflag [#allocation3], %s168
        %s170 = sand.u32 %s40, 1
        %s171 = smul.addr %s170, 32
        %s172 = scalar_lea.vmem [#allocation2], %s171
        // Predicated region
        $region29: #{setr_forward.21} parent=27 // pred_check
          %p173 = pneg %p53
        $region30: #{setr_forward.21} parent=27 // pred_check_branch
          %175 = sbr.rel (%p173) target = $region32
        $region31: #{setr_forward.21} parent=27 // pred_region
          %176 = dma.done %s169, 512
        $region32: #{setr_forward.21} parent=27 // pred_fallthru
          _
        // Predicated region
        $region33: #{setr_forward.21} parent=27 // pred_check
          %p177 = pneg %p79
        $region34: #{setr_forward.21} parent=27 // pred_check_branch
          %179 = sbr.rel (%p177) target = $region36
        $region35: #{setr_forward.21} parent=27 // pred_region
          %180 = dma.done [#allocation6], 128
        $region36: #{setr_forward.21} parent=27 // pred_fallthru
          _
        %s181 = sand.u32 %s40, 1
        %s182 = scalar_lea.sflag [#allocation3], %s181
        %s183 = sand.u32 %s40, 1
        %s184 = smul.addr %s183, 32
        %s185 = scalar_lea.vmem [#allocation2], %s184
        %p186 = pneg %p53
        %p187 = pneg %p50
        %p188 = pneg %p79
        %p189 = pneg %p76
        %p190 = pneg %p107
        %p191 = pneg %p104
        %s192 = sand.u32 %s94, 1
        %s193 = scalar_lea.sflag [#allocation4], %s192
        %s194 = sand.u32 %s94, 1
        %s195 = smul.addr %s194, 256
        %s196 = scalar_lea.vmem [#allocation7], %s195
        %s197 = smul.u32 2, %s25
        %s198 = smul.u32 2, %s25
        %v200 = vld [vmem:[#allocation5] sm:$0xf]
        %v201 = vld [vmem:[#allocation5 + $0x4] sm:$0xf]
        %v202 = vld [vmem:[%s172] sm:$0xff]
        %v203 = vld [vmem:[%s172 + $0x8] sm:$0xff]
        %v204 = vld [vmem:[%s172 + $0x10] sm:$0xff]
        %v205 = vld [vmem:[%s172 + $0x18] sm:$0xff]
        %v208 = vunpack.c.l.b16 %v200
        %v209 = vunpack.c.l.b16 %v201
        %v210 = vpack.c.b16 %v209, %v208
        %v215 = vcombine.high %v202, %v202
        %v217 = vunpack.c.l.s4 1983009808
        %v218 = vunpack.c.0.s8 %v217
        %v219 = vlaneseq
        %v220 = vshrl.u32 %v219, 7
        %v221 = vsub.s32 %v218, %v220
        %v222 = vrot.slane %v202, %v221
        %v224 = vunpack.c.l.s4 1983009808
        %v225 = vunpack.c.0.s8 %v224
        %v226 = vlaneseq
        %v227 = vshrl.u32 %v226, 7
        %v228 = vsub.s32 %v225, %v227
        %v229 = vrot.slane %v215, %v228
        %v230 = vcombine.high %v222, %v222
        %v231 = vcombine.high %v229, %v229
        %v232 = vcombine.high %v203, %v203
        %v234 = vunpack.c.l.s4 1983009808
        %v235 = vunpack.c.0.s8 %v234
        %v236 = vlaneseq
        %v237 = vshrl.u32 %v236, 7
        %v238 = vsub.s32 %v235, %v237
        %v239 = vrot.slane %v203, %v238
        %v241 = vunpack.c.l.s4 1983009808
        %v242 = vunpack.c.0.s8 %v241
        %v243 = vlaneseq
        %v244 = vshrl.u32 %v243, 7
        %v245 = vsub.s32 %v242, %v244
        %v246 = vrot.slane %v232, %v245
        %v247 = vcombine.high %v239, %v239
        %v248 = vcombine.high %v246, %v246
        %v249 = vcombine.high %v204, %v204
        %v251 = vunpack.c.l.s4 1983009808
        %v252 = vunpack.c.0.s8 %v251
        %v253 = vlaneseq
        %v254 = vshrl.u32 %v253, 7
        %v255 = vsub.s32 %v252, %v254
        %v256 = vrot.slane %v204, %v255
        %v258 = vunpack.c.l.s4 1983009808
        %v259 = vunpack.c.0.s8 %v258
        %v260 = vlaneseq
        %v261 = vshrl.u32 %v260, 7
        %v262 = vsub.s32 %v259, %v261
        %v263 = vrot.slane %v249, %v262
        %v264 = vcombine.high %v256, %v256
        %v265 = vcombine.high %v263, %v263
        %v266 = vcombine.high %v205, %v205
        %v268 = vunpack.c.l.s4 1983009808
        %v269 = vunpack.c.0.s8 %v268
        %v270 = vlaneseq
        %v271 = vshrl.u32 %v270, 7
        %v272 = vsub.s32 %v269, %v271
        %v273 = vrot.slane %v205, %v272
        %v275 = vunpack.c.l.s4 1983009808
        %v276 = vunpack.c.0.s8 %v275
        %v277 = vlaneseq
        %v278 = vshrl.u32 %v277, 7
        %v279 = vsub.s32 %v276, %v278
        %v280 = vrot.slane %v266, %v279
        %v281 = vcombine.high %v273, %v273
        %v282 = vcombine.high %v280, %v280
        %vm283 = vcmask 31744
        %v285 = vsel %vm283, %v210, 0
        %vm287 = vcmask 1041408
        %v289 = vsel %vm287, %v222, 0
        %v292 = vsel %vm287, %v230, 0
        %v295 = vsel %vm287, %v229, 0
        %v298 = vsel %vm287, %v231, 0
        %v301 = vsel %vm287, %v239, 0
        %v304 = vsel %vm287, %v247, 0
        %v307 = vsel %vm287, %v246, 0
        %v310 = vsel %vm287, %v248, 0
        %v313 = vsel %vm287, %v256, 0
        %v316 = vsel %vm287, %v264, 0
        %v319 = vsel %vm287, %v263, 0
        %v322 = vsel %vm287, %v265, 0
        %v325 = vsel %vm287, %v273, 0
        %v328 = vsel %vm287, %v281, 0
        %v331 = vsel %vm287, %v280, 0
        %v334 = vsel %vm287, %v282, 0
        %336 = vmatprep.subr.bf16.mxu0 %v292
        %337 = vmatpush1.bf16.msra.mxu0 %v289
        %338 = vmatprep.subr.bf16.mxu0 0
        %339 = vmatpush1.bf16.msra.mxu0 0
        %340 = vmatprep.subr.bf16.mxu0 0
        %341 = vmatpush1.bf16.msra.mxu0 0
        %342 = vmatprep.subr.bf16.mxu0 0
        %343 = vmatpush1.bf16.msra.mxu0 0
        %344 = vmatprep.subr.bf16.mxu0 0
        %345 = vmatpush1.bf16.msra.mxu0 0
        %346 = vmatprep.subr.bf16.mxu0 0
        %347 = vmatpush1.bf16.msra.mxu0 0
        %348 = vmatprep.subr.bf16.mxu0 0
        %349 = vmatpush1.bf16.msra.mxu0 0
        %350 = vmatprep.subr.bf16.mxu0 0
        %351 = vmatpush1.bf16.msra.mxu0 0
        %352 = vmatprep.subr.bf16.mxu0 0
        %353 = vmatpush1.bf16.msra.mxu0 0
        %354 = vmatprep.subr.bf16.mxu0 0
        %355 = vmatpush1.bf16.msra.mxu0 0
        %356 = vmatprep.subr.bf16.mxu0 0
        %357 = vmatpush1.bf16.msra.mxu0 0
        %358 = vmatprep.subr.bf16.mxu0 0
        %359 = vmatpush1.bf16.msra.mxu0 0
        %360 = vmatprep.subr.bf16.mxu0 0
        %361 = vmatpush1.bf16.msra.mxu0 0
        %362 = vmatprep.subr.bf16.mxu0 0
        %363 = vmatpush1.bf16.msra.mxu0 0
        %364 = vmatprep.subr.bf16.mxu0 0
        %365 = vmatpush1.bf16.msra.mxu0 0
        %366 = vmatprep.subr.bf16.mxu0 0
        %367 = vmatpush1.bf16.msra.mxu0 0
        %368 = vmatprep.mubr.bf16.mxu0 0
        %369 = vmatmul.mubr.bf16.gmra.mrb[0].mxu0 %v285
        %v370 = vpop.f32.mrb[0].mxu0
        %v371 = vadd.f32 0.0, %v370
        %v372 = vpop.f32.mrb[0].mxu0
        %v373 = vadd.f32 0.0, %v372
        %v374 = vpop.f32.mrb[0].mxu0
        %v375 = vadd.f32 0.0, %v374
        %v376 = vpop.f32.mrb[0].mxu0
        %v377 = vadd.f32 0.0, %v376
        %378 = vdwg.mxu0
        %379 = vmatprep.subr.bf16.mxu0 %v298
        %380 = vmatpush1.bf16.msra.mxu0 %v295
        %381 = vmatprep.subr.bf16.mxu0 0
        %382 = vmatpush1.bf16.msra.mxu0 0
        %383 = vmatprep.subr.bf16.mxu0 0
        %384 = vmatpush1.bf16.msra.mxu0 0
        %385 = vmatprep.subr.bf16.mxu0 0
        %386 = vmatpush1.bf16.msra.mxu0 0
        %387 = vmatprep.subr.bf16.mxu0 0
        %388 = vmatpush1.bf16.msra.mxu0 0
        %389 = vmatprep.subr.bf16.mxu0 0
        %390 = vmatpush1.bf16.msra.mxu0 0
        %391 = vmatprep.subr.bf16.mxu0 0
        %392 = vmatpush1.bf16.msra.mxu0 0
        %393 = vmatprep.subr.bf16.mxu0 0
        %394 = vmatpush1.bf16.msra.mxu0 0
        %395 = vmatprep.subr.bf16.mxu0 0
        %396 = vmatpush1.bf16.msra.mxu0 0
        %397 = vmatprep.subr.bf16.mxu0 0
        %398 = vmatpush1.bf16.msra.mxu0 0
        %399 = vmatprep.subr.bf16.mxu0 0
        %400 = vmatpush1.bf16.msra.mxu0 0
        %401 = vmatprep.subr.bf16.mxu0 0
        %402 = vmatpush1.bf16.msra.mxu0 0
        %403 = vmatprep.subr.bf16.mxu0 0
        %404 = vmatpush1.bf16.msra.mxu0 0
        %405 = vmatprep.subr.bf16.mxu0 0
        %406 = vmatpush1.bf16.msra.mxu0 0
        %407 = vmatprep.subr.bf16.mxu0 0
        %408 = vmatpush1.bf16.msra.mxu0 0
        %409 = vmatprep.subr.bf16.mxu0 0
        %410 = vmatpush1.bf16.msra.mxu0 0
        %411 = vmatprep.mubr.bf16.mxu0 0
        %412 = vmatmul.mubr.bf16.gmra.mrb[0].mxu0 %v285
        %v413 = vpop.f32.mrb[0].mxu0
        %v414 = vadd.f32 0.0, %v413
        %v415 = vpop.f32.mrb[0].mxu0
        %v416 = vadd.f32 0.0, %v415
        %v417 = vpop.f32.mrb[0].mxu0
        %v418 = vadd.f32 0.0, %v417
        %v419 = vpop.f32.mrb[0].mxu0
        %v420 = vadd.f32 0.0, %v419
        %421 = vdwg.mxu0
        %422 = vmatprep.subr.bf16.mxu0 %v304
        %423 = vmatpush1.bf16.msra.mxu0 %v301
        %424 = vmatprep.subr.bf16.mxu0 0
        %425 = vmatpush1.bf16.msra.mxu0 0
        %426 = vmatprep.subr.bf16.mxu0 0
        %427 = vmatpush1.bf16.msra.mxu0 0
        %428 = vmatprep.subr.bf16.mxu0 0
        %429 = vmatpush1.bf16.msra.mxu0 0
        %430 = vmatprep.subr.bf16.mxu0 0
        %431 = vmatpush1.bf16.msra.mxu0 0
        %432 = vmatprep.subr.bf16.mxu0 0
        %433 = vmatpush1.bf16.msra.mxu0 0
        %434 = vmatprep.subr.bf16.mxu0 0
        %435 = vmatpush1.bf16.msra.mxu0 0
        %436 = vmatprep.subr.bf16.mxu0 0
        %437 = vmatpush1.bf16.msra.mxu0 0
        %438 = vmatprep.subr.bf16.mxu0 0
        %439 = vmatpush1.bf16.msra.mxu0 0
        %440 = vmatprep.subr.bf16.mxu0 0
        %441 = vmatpush1.bf16.msra.mxu0 0
        %442 = vmatprep.subr.bf16.mxu0 0
        %443 = vmatpush1.bf16.msra.mxu0 0
        %444 = vmatprep.subr.bf16.mxu0 0
        %445 = vmatpush1.bf16.msra.mxu0 0
        %446 = vmatprep.subr.bf16.mxu0 0
        %447 = vmatpush1.bf16.msra.mxu0 0
        %448 = vmatprep.subr.bf16.mxu0 0
        %449 = vmatpush1.bf16.msra.mxu0 0
        %450 = vmatprep.subr.bf16.mxu0 0
        %451 = vmatpush1.bf16.msra.mxu0 0
        %452 = vmatprep.subr.bf16.mxu0 0
        %453 = vmatpush1.bf16.msra.mxu0 0
        %454 = vmatprep.mubr.bf16.mxu0 0
        %455 = vmatmul.mubr.bf16.gmra.mrb[0].mxu0 %v285
        %v456 = vpop.f32.mrb[0].mxu0
        %v457 = vadd.f32 0.0, %v456
        %v458 = vpop.f32.mrb[0].mxu0
        %v459 = vadd.f32 0.0, %v458
        %v460 = vpop.f32.mrb[0].mxu0
        %v461 = vadd.f32 0.0, %v460
        %v462 = vpop.f32.mrb[0].mxu0
        %v463 = vadd.f32 0.0, %v462
        %464 = vdwg.mxu0
        %465 = vmatprep.subr.bf16.mxu0 %v310
        %466 = vmatpush1.bf16.msra.mxu0 %v307
        %467 = vmatprep.subr.bf16.mxu0 0
        %468 = vmatpush1.bf16.msra.mxu0 0
        %469 = vmatprep.subr.bf16.mxu0 0
        %470 = vmatpush1.bf16.msra.mxu0 0
        %471 = vmatprep.subr.bf16.mxu0 0
        %472 = vmatpush1.bf16.msra.mxu0 0
        %473 = vmatprep.subr.bf16.mxu0 0
        %474 = vmatpush1.bf16.msra.mxu0 0
        %475 = vmatprep.subr.bf16.mxu0 0
        %476 = vmatpush1.bf16.msra.mxu0 0
        %477 = vmatprep.subr.bf16.mxu0 0
        %478 = vmatpush1.bf16.msra.mxu0 0
        %479 = vmatprep.subr.bf16.mxu0 0
        %480 = vmatpush1.bf16.msra.mxu0 0
        %481 = vmatprep.subr.bf16.mxu0 0
        %482 = vmatpush1.bf16.msra.mxu0 0
        %483 = vmatprep.subr.bf16.mxu0 0
        %484 = vmatpush1.bf16.msra.mxu0 0
        %485 = vmatprep.subr.bf16.mxu0 0
        %486 = vmatpush1.bf16.msra.mxu0 0
        %487 = vmatprep.subr.bf16.mxu0 0
        %488 = vmatpush1.bf16.msra.mxu0 0
        %489 = vmatprep.subr.bf16.mxu0 0
        %490 = vmatpush1.bf16.msra.mxu0 0
        %491 = vmatprep.subr.bf16.mxu0 0
        %492 = vmatpush1.bf16.msra.mxu0 0
        %493 = vmatprep.subr.bf16.mxu0 0
        %494 = vmatpush1.bf16.msra.mxu0 0
        %495 = vmatprep.subr.bf16.mxu0 0
        %496 = vmatpush1.bf16.msra.mxu0 0
        %497 = vmatprep.mubr.bf16.mxu0 0
        %498 = vmatmul.mubr.bf16.gmra.mrb[0].mxu0 %v285
        %v499 = vpop.f32.mrb[0].mxu0
        %v500 = vadd.f32 0.0, %v499
        %v501 = vpop.f32.mrb[0].mxu0
        %v502 = vadd.f32 0.0, %v501
        %v503 = vpop.f32.mrb[0].mxu0
        %v504 = vadd.f32 0.0, %v503
        %v505 = vpop.f32.mrb[0].mxu0
        %v506 = vadd.f32 0.0, %v505
        %507 = vdwg.mxu0
        %508 = vmatprep.subr.bf16.mxu0 %v316
        %509 = vmatpush1.bf16.msra.mxu0 %v313
        %510 = vmatprep.subr.bf16.mxu0 0
        %511 = vmatpush1.bf16.msra.mxu0 0
        %512 = vmatprep.subr.bf16.mxu0 0
        %513 = vmatpush1.bf16.msra.mxu0 0
        %514 = vmatprep.subr.bf16.mxu0 0
        %515 = vmatpush1.bf16.msra.mxu0 0
        %516 = vmatprep.subr.bf16.mxu0 0
        %517 = vmatpush1.bf16.msra.mxu0 0
        %518 = vmatprep.subr.bf16.mxu0 0
        %519 = vmatpush1.bf16.msra.mxu0 0
        %520 = vmatprep.subr.bf16.mxu0 0
        %521 = vmatpush1.bf16.msra.mxu0 0
        %522 = vmatprep.subr.bf16.mxu0 0
        %523 = vmatpush1.bf16.msra.mxu0 0
        %524 = vmatprep.subr.bf16.mxu0 0
        %525 = vmatpush1.bf16.msra.mxu0 0
        %526 = vmatprep.subr.bf16.mxu0 0
        %527 = vmatpush1.bf16.msra.mxu0 0
        %528 = vmatprep.subr.bf16.mxu0 0
        %529 = vmatpush1.bf16.msra.mxu0 0
        %530 = vmatprep.subr.bf16.mxu0 0
        %531 = vmatpush1.bf16.msra.mxu0 0
        %532 = vmatprep.subr.bf16.mxu0 0
        %533 = vmatpush1.bf16.msra.mxu0 0
        %534 = vmatprep.subr.bf16.mxu0 0
        %535 = vmatpush1.bf16.msra.mxu0 0
        %536 = vmatprep.subr.bf16.mxu0 0
        %537 = vmatpush1.bf16.msra.mxu0 0
        %538 = vmatprep.subr.bf16.mxu0 0
        %539 = vmatpush1.bf16.msra.mxu0 0
        %540 = vmatprep.mubr.bf16.mxu0 0
        %541 = vmatmul.mubr.bf16.gmra.mrb[0].mxu0 %v285
        %v542 = vpop.f32.mrb[0].mxu0
        %v543 = vadd.f32 0.0, %v542
        %v544 = vpop.f32.mrb[0].mxu0
        %v545 = vadd.f32 0.0, %v544
        %v546 = vpop.f32.mrb[0].mxu0
        %v547 = vadd.f32 0.0, %v546
        %v548 = vpop.f32.mrb[0].mxu0
        %v549 = vadd.f32 0.0, %v548
        %550 = vdwg.mxu0
        %551 = vmatprep.subr.bf16.mxu0 %v322
        %552 = vmatpush1.bf16.msra.mxu0 %v319
        %553 = vmatprep.subr.bf16.mxu0 0
        %554 = vmatpush1.bf16.msra.mxu0 0
        %555 = vmatprep.subr.bf16.mxu0 0
        %556 = vmatpush1.bf16.msra.mxu0 0
        %557 = vmatprep.subr.bf16.mxu0 0
        %558 = vmatpush1.bf16.msra.mxu0 0
        %559 = vmatprep.subr.bf16.mxu0 0
        %560 = vmatpush1.bf16.msra.mxu0 0
        %561 = vmatprep.subr.bf16.mxu0 0
        %562 = vmatpush1.bf16.msra.mxu0 0
        %563 = vmatprep.subr.bf16.mxu0 0
        %564 = vmatpush1.bf16.msra.mxu0 0
        %565 = vmatprep.subr.bf16.mxu0 0
        %566 = vmatpush1.bf16.msra.mxu0 0
        %567 = vmatprep.subr.bf16.mxu0 0
        %568 = vmatpush1.bf16.msra.mxu0 0
        %569 = vmatprep.subr.bf16.mxu0 0
        %570 = vmatpush1.bf16.msra.mxu0 0
        %571 = vmatprep.subr.bf16.mxu0 0
        %572 = vmatpush1.bf16.msra.mxu0 0
        %573 = vmatprep.subr.bf16.mxu0 0
        %574 = vmatpush1.bf16.msra.mxu0 0
        %575 = vmatprep.subr.bf16.mxu0 0
        %576 = vmatpush1.bf16.msra.mxu0 0
        %577 = vmatprep.subr.bf16.mxu0 0
        %578 = vmatpush1.bf16.msra.mxu0 0
        %579 = vmatprep.subr.bf16.mxu0 0
        %580 = vmatpush1.bf16.msra.mxu0 0
        %581 = vmatprep.subr.bf16.mxu0 0
        %582 = vmatpush1.bf16.msra.mxu0 0
        %583 = vmatprep.mubr.bf16.mxu0 0
        %584 = vmatmul.mubr.bf16.gmra.mrb[0].mxu0 %v285
        %v585 = vpop.f32.mrb[0].mxu0
        %v586 = vadd.f32 0.0, %v585
        %v587 = vpop.f32.mrb[0].mxu0
        %v588 = vadd.f32 0.0, %v587
        %v589 = vpop.f32.mrb[0].mxu0
        %v590 = vadd.f32 0.0, %v589
        %v591 = vpop.f32.mrb[0].mxu0
        %v592 = vadd.f32 0.0, %v591
        %593 = vdwg.mxu0
        %594 = vmatprep.subr.bf16.mxu0 %v328
        %595 = vmatpush1.bf16.msra.mxu0 %v325
        %596 = vmatprep.subr.bf16.mxu0 0
        %597 = vmatpush1.bf16.msra.mxu0 0
        %598 = vmatprep.subr.bf16.mxu0 0
        %599 = vmatpush1.bf16.msra.mxu0 0
        %600 = vmatprep.subr.bf16.mxu0 0
        %601 = vmatpush1.bf16.msra.mxu0 0
        %602 = vmatprep.subr.bf16.mxu0 0
        %603 = vmatpush1.bf16.msra.mxu0 0
        %604 = vmatprep.subr.bf16.mxu0 0
        %605 = vmatpush1.bf16.msra.mxu0 0
        %606 = vmatprep.subr.bf16.mxu0 0
        %607 = vmatpush1.bf16.msra.mxu0 0
        %608 = vmatprep.subr.bf16.mxu0 0
        %609 = vmatpush1.bf16.msra.mxu0 0
        %610 = vmatprep.subr.bf16.mxu0 0
        %611 = vmatpush1.bf16.msra.mxu0 0
        %612 = vmatprep.subr.bf16.mxu0 0
        %613 = vmatpush1.bf16.msra.mxu0 0
        %614 = vmatprep.subr.bf16.mxu0 0
        %615 = vmatpush1.bf16.msra.mxu0 0
        %616 = vmatprep.subr.bf16.mxu0 0
        %617 = vmatpush1.bf16.msra.mxu0 0
        %618 = vmatprep.subr.bf16.mxu0 0
        %619 = vmatpush1.bf16.msra.mxu0 0
        %620 = vmatprep.subr.bf16.mxu0 0
        %621 = vmatpush1.bf16.msra.mxu0 0
        %622 = vmatprep.subr.bf16.mxu0 0
        %623 = vmatpush1.bf16.msra.mxu0 0
        %624 = vmatprep.subr.bf16.mxu0 0
        %625 = vmatpush1.bf16.msra.mxu0 0
        %626 = vmatprep.mubr.bf16.mxu0 0
        %627 = vmatmul.mubr.bf16.gmra.mrb[0].mxu0 %v285
        %v628 = vpop.f32.mrb[0].mxu0
        %v629 = vadd.f32 0.0, %v628
        %v630 = vpop.f32.mrb[0].mxu0
        %v631 = vadd.f32 0.0, %v630
        %v632 = vpop.f32.mrb[0].mxu0
        %v633 = vadd.f32 0.0, %v632
        %v634 = vpop.f32.mrb[0].mxu0
        %v635 = vadd.f32 0.0, %v634
        %636 = vdwg.mxu0
        %637 = vmatprep.subr.bf16.mxu0 %v334
        %638 = vmatpush1.bf16.msra.mxu0 %v331
        %639 = vmatprep.subr.bf16.mxu0 0
        %640 = vmatpush1.bf16.msra.mxu0 0
        %641 = vmatprep.subr.bf16.mxu0 0
        %642 = vmatpush1.bf16.msra.mxu0 0
        %643 = vmatprep.subr.bf16.mxu0 0
        %644 = vmatpush1.bf16.msra.mxu0 0
        %645 = vmatprep.subr.bf16.mxu0 0
        %646 = vmatpush1.bf16.msra.mxu0 0
        %647 = vmatprep.subr.bf16.mxu0 0
        %648 = vmatpush1.bf16.msra.mxu0 0
        %649 = vmatprep.subr.bf16.mxu0 0
        %650 = vmatpush1.bf16.msra.mxu0 0
        %651 = vmatprep.subr.bf16.mxu0 0
        %652 = vmatpush1.bf16.msra.mxu0 0
        %653 = vmatprep.subr.bf16.mxu0 0
        %654 = vmatpush1.bf16.msra.mxu0 0
        %655 = vmatprep.subr.bf16.mxu0 0
        %656 = vmatpush1.bf16.msra.mxu0 0
        %657 = vmatprep.subr.bf16.mxu0 0
        %658 = vmatpush1.bf16.msra.mxu0 0
        %659 = vmatprep.subr.bf16.mxu0 0
        %660 = vmatpush1.bf16.msra.mxu0 0
        %661 = vmatprep.subr.bf16.mxu0 0
        %662 = vmatpush1.bf16.msra.mxu0 0
        %663 = vmatprep.subr.bf16.mxu0 0
        %664 = vmatpush1.bf16.msra.mxu0 0
        %665 = vmatprep.subr.bf16.mxu0 0
        %666 = vmatpush1.bf16.msra.mxu0 0
        %667 = vmatprep.subr.bf16.mxu0 0
        %668 = vmatpush1.bf16.msra.mxu0 0
        %669 = vmatprep.mubr.bf16.mxu0 0
        %670 = vmatmul.mubr.bf16.gmra.mrb[0].mxu0 %v285
        %v671 = vpop.f32.mrb[0].mxu0
        %v672 = vadd.f32 0.0, %v671
        %v673 = vpop.f32.mrb[0].mxu0
        %v674 = vadd.f32 0.0, %v673
        %v675 = vpop.f32.mrb[0].mxu0
        %v676 = vadd.f32 0.0, %v675
        %v677 = vpop.f32.mrb[0].mxu0
        %v678 = vadd.f32 0.0, %v677
        %679 = vdwg.mxu0
        %680 = vst [vmem:[%s196] sm:$0xff] %v371
        %681 = vst [vmem:[%s196 + $0x8] sm:$0xff] %v373
        %682 = vst [vmem:[%s196 + $0x10] sm:$0xff] %v414
        %683 = vst [vmem:[%s196 + $0x18] sm:$0xff] %v416
        %684 = vst [vmem:[%s196 + $0x20] sm:$0xff] %v457
        %685 = vst [vmem:[%s196 + $0x28] sm:$0xff] %v459
        %686 = vst [vmem:[%s196 + $0x30] sm:$0xff] %v500
        %687 = vst [vmem:[%s196 + $0x38] sm:$0xff] %v502
        %688 = vst [vmem:[%s196 + $0x40] sm:$0xff] %v543
        %689 = vst [vmem:[%s196 + $0x48] sm:$0xff] %v545
        %690 = vst [vmem:[%s196 + $0x50] sm:$0xff] %v586
        %691 = vst [vmem:[%s196 + $0x58] sm:$0xff] %v588
        %692 = vst [vmem:[%s196 + $0x60] sm:$0xff] %v629
        %693 = vst [vmem:[%s196 + $0x68] sm:$0xff] %v631
        %694 = vst [vmem:[%s196 + $0x70] sm:$0xff] %v672
        %695 = vst [vmem:[%s196 + $0x78] sm:$0xff] %v674
        %696 = vst [vmem:[%s196 + $0x80] sm:$0xff] %v375
        %697 = vst [vmem:[%s196 + $0x88] sm:$0xff] %v377
        %698 = vst [vmem:[%s196 + $0x90] sm:$0xff] %v418
        %699 = vst [vmem:[%s196 + $0x98] sm:$0xff] %v420
        %700 = vst [vmem:[%s196 + $0xa0] sm:$0xff] %v461
        %701 = vst [vmem:[%s196 + $0xa8] sm:$0xff] %v463
        %702 = vst [vmem:[%s196 + $0xb0] sm:$0xff] %v504
        %703 = vst [vmem:[%s196 + $0xb8] sm:$0xff] %v506
        %704 = vst [vmem:[%s196 + $0xc0] sm:$0xff] %v547
        %705 = vst [vmem:[%s196 + $0xc8] sm:$0xff] %v549
        %706 = vst [vmem:[%s196 + $0xd0] sm:$0xff] %v590
        %707 = vst [vmem:[%s196 + $0xd8] sm:$0xff] %v592
        %708 = vst [vmem:[%s196 + $0xe0] sm:$0xff] %v633
        %709 = vst [vmem:[%s196 + $0xe8] sm:$0xff] %v635
        %710 = vst [vmem:[%s196 + $0xf0] sm:$0xff] %v676
        %711 = vst [vmem:[%s196 + $0xf8] sm:$0xff] %v678
        %s712 = sand.u32 %s94, 1
        %s713 = scalar_lea.sflag [#allocation4], %s712
        %s714 = sand.u32 %s94, 1
        %s715 = smul.addr %s714, 256
        %s716 = scalar_lea.vmem [#allocation7], %s715
        // Predicated region
        $region37: #{setr_forward.21} parent=27 // pred_check
          %p717 = pneg %p104
        $region38: #{setr_forward.21} parent=27 // pred_check_branch
          %719 = sbr.rel (%p717) target = $region40
        $region39: #{setr_forward.21} parent=27 // pred_region
          %s720 = smul.u32 2, %s25
          %s722 = ssub.s32 4096, 4096
          %723 = vsyncadd %s713, %s722
          %s724 = smul.addr %s720, 16
          %s725 = smul.addr %s24, 32
          %s726 = sadd.s32 %s724, %s725
          %s727 = smul.addr %s726, 128
          %s728 = scalar_lea.hbm %s2, %s727
          %s729 = sshll.u32 %s716, 4
          %s730 = int_to_ptr.vmem [resolvable:$true] %s729
          %735 = dma.vmem_to_hbm [thread:$0]  %s730, 4096, %s728, %s713, 2048, 2048, 128
        $region40: #{setr_forward.21} parent=27 // pred_fallthru
          _
      $region28: #{setr_forward.21} parent=5 // pred_fallthru
        _
      %p736 = scmp.le.s32.totalorder 2, %s15
      // Predicated region
      $region41: #{setr_forward.21} parent=5 // pred_check
        %p737 = pneg %p736
      $region42: #{setr_forward.21} parent=5 // pred_check_branch
        %739 = sbr.rel (%p737) target = $region44
      $region43: #{setr_forward.21} parent=5 // pred_region
        %s740 = ssub.s32 %s15, 2
        // Predicated region
        $region45: #{setr_forward.21} parent=43 // pred_check
          %p741 = pneg %p110
        $region46: #{setr_forward.21} parent=43 // pred_check_branch
          %743 = sbr.rel (%p741) target = $region48
        $region47: #{setr_forward.21} parent=43 // pred_region
          %s744 = sand.u32 %s95, 1
          %s745 = scalar_lea.sflag [#allocation4], %s744
          %s746 = sand.u32 %s95, 1
          %s747 = smul.addr %s746, 256
          %s748 = scalar_lea.vmem [#allocation7], %s747
          %749 = dma.done %s745, 4096
        $region48: #{setr_forward.21} parent=43 // pred_fallthru
          _
      $region44: #{setr_forward.21} parent=5 // pred_fallthru
        _
    $region6: #{setr_forward.21} parent=1 // loop_footer
      %s19 = sadd.s32 1, %s15
    $region7: #{setr_forward.21} parent=1 // loop_footer_branch
      %14 = sbr.rel target = $region3
    $region8: #{setr_forward.21} parent=1 // loop_exit
      _
    %750 = vsyncpa [#allocation3], 1
    %s751 = scalar_lea.sflag [#allocation3], 1
    %752 = vsyncpa %s751, 1
    %753 = vsyncpa [#allocation6], 1
    %754 = vsyncpa [#allocation4], 1
    %s755 = scalar_lea.sflag [#allocation4], 1
    %756 = vsyncpa %s755, 1

</llo_original>
